<compile_context>
chip_gen: v6e
topology: v6e:2x2x1
jax: 0.10.0
libtpu: 0.0.40
codegen_flags: <defaults>
</compile_context>

<pallas_src>
import functools

import jax
import jax.numpy as jnp
from jax.experimental import pallas as pl
from jax.experimental.pallas import tpu as pltpu


_GEMM_ROW_TILE = 2048   # GEMM-style kernels: per-operand blocks stay ~1-4 MiB (bf16)
_EW_ROW_TILE = 512      # (N, 784) element-wise/coordinate kernels: keeps the f32
                        # streams well under the 32 MiB scoped-VMEM default (v7x: 64 MiB)


def _mosaic_params(**kwargs):
    """Mosaic CompilerParams with graceful degradation on older jax versions."""
    try:
        return pltpu.CompilerParams(**kwargs)
    except Exception:  # pragma: no cover - compat fallback only
        return None


def _row_tile(m, cap):
    """Row-block size: 16-sublane aligned, >= 2 grid steps whenever possible so
    v7x's two TensorCores both get work, capped to bound double-buffered VMEM."""
    if m <= 16:
        return m
    half = (((m + 1) // 2) + 15) // 16 * 16
    return min(cap, half, m)


# ----------------------------------------------------------------------------
# Pallas kernels
# ----------------------------------------------------------------------------
def _conv_pool_relu_kernel(p00, p01, p10, p11, w_ref, b_ref, o_ref):
    """Fused conv stage: max over the 4 pool-corner GEMMs, + bias, ReLU -> bf16.

    p??: (TM, K) bf16 im2col patches for one 2x2-pool corner.
    w  : (K, Cout) bf16,  b: (1, Cout) f32,  o: (TM, Cout) bf16.
    """
    w = w_ref[...]
    # TODO(synk): if a bundle dump shows the shared RHS re-pushed to the MXU per dot,
    # switch to a single (4*TM, K) dot + max over a (4, TM, Cout) view.
    y = jnp.dot(p00[...], w, preferred_element_type=jnp.float32)
    y = jnp.maximum(y, jnp.dot(p01[...], w, preferred_element_type=jnp.float32))
    y = jnp.maximum(y, jnp.dot(p10[...], w, preferred_element_type=jnp.float32))
    y = jnp.maximum(y, jnp.dot(p11[...], w, preferred_element_type=jnp.float32))
    o_ref[...] = jnp.maximum(y + b_ref[...], 0.0).astype(o_ref.dtype)


def _mlp_kernel(logsoftmax, x_ref, w1_ref, b1_ref, w2_ref, b2_ref, o_ref):
    """Fused 2-layer head: x @ W1 + b1 -> ReLU -> @ W2 + b2 (-> log_softmax)."""
    h = jnp.dot(x_ref[...], w1_ref[...], preferred_element_type=jnp.float32) + b1_ref[...]
    h = jnp.maximum(h, 0.0).astype(jnp.bfloat16)
    # TODO(synk): F.dropout(training=True) mask not modeled (eval-mode identity).
    y = jnp.dot(h, w2_ref[...], preferred_element_type=jnp.float32) + b2_ref[...]
    if logsoftmax:
        y = y - jnp.max(y, axis=-1, keepdims=True)
        y = y - jnp.log(jnp.sum(jnp.exp(y), axis=-1, keepdims=True))
    o_ref[...] = y.astype(o_ref.dtype)


def _loc_head_kernel(H, W, x_ref, w1_ref, b1_ref, w2_ref, b2_ref, bx_ref, by_ref,
                     ix_ref, iy_ref):
    """fc_loc1 -> ReLU -> fc_loc2 -> affine_grid -> pixel coords, fully fused.

    Emits lane-dense (TM, H*W) pixel coordinates ix/iy (f32) instead of a narrow
    (TM, 6) theta, folding the theta->grid einsum glue into the kernel epilogue.
    """
    h = jnp.dot(x_ref[...], w1_ref[...], preferred_element_type=jnp.float32) + b1_ref[...]
    h = jnp.maximum(h, 0.0).astype(jnp.bfloat16)
    th = jnp.dot(h, w2_ref[...], preferred_element_type=jnp.float32) + b2_ref[...]  # (TM, 6)
    bx = bx_ref[...]                             # (1, H*W): normalized x per pixel
    by = by_ref[...]                             # (1, H*W): normalized y per pixel
    gx = th[:, 0:1] * bx + th[:, 1:2] * by + th[:, 2:3]
    gy = th[:, 3:4] * bx + th[:, 4:5] * by + th[:, 5:6]
    ix_ref[...] = (gx + 1.0) * (0.5 * W) - 0.5   # align_corners=False convention
    iy_ref[...] = (gy + 1.0) * (0.5 * H) - 0.5


def _grid_sample_kernel(H, W, va, vb, vc, vd, ix_ref, iy_ref, o_ref):
    """Bilinear grid_sample combine; fractional weights + zero-pad masks in-kernel.

    v?: bf16 (TB, H*W) gathered corner values in order (x0,y0),(x1,y0),(x0,y1),(x1,y1).
    ix/iy: f32 (TB, H*W) pixel coordinates.  o: bf16 (TB, H*W).
    """
    ix = ix_ref[...]
    iy = iy_ref[...]
    x0 = jnp.floor(ix)
    y0 = jnp.floor(iy)
    wx1 = ix - x0
    wy1 = iy - y0
    wx0 = 1.0 - wx1
    wy0 = 1.0 - wy1
    # zero-padding masks folded into the per-axis weights (padding_mode='zeros')
    wx0 = jnp.where((x0 >= 0.0) & (x0 <= W - 1.0), wx0, 0.0)
    wx1 = jnp.where((x0 >= -1.0) & (x0 <= W - 2.0), wx1, 0.0)
    wy0 = jnp.where((y0 >= 0.0) & (y0 <= H - 1.0), wy0, 0.0)
    wy1 = jnp.where((y0 >= -1.0) & (y0 <= H - 2.0), wy1, 0.0)
    out = (va[...].astype(jnp.float32) * (wx0 * wy0) +
           vb[...].astype(jnp.float32) * (wx1 * wy0) +
           vc[...].astype(jnp.float32) * (wx0 * wy1) +
           vd[...].astype(jnp.float32) * (wx1 * wy1))
    o_ref[...] = out.astype(o_ref.dtype)


# ----------------------------------------------------------------------------
# Pallas-backed ops
# ----------------------------------------------------------------------------
def conv_pool_relu(x_nhwc, w_oihw, b):
    """Fused: valid stride-1 conv (KxK) + bias + 2x2/2 max-pool (floor) + ReLU.

    Per-pool-corner im2col patches are built with plain-JAX strided slicing (XLA
    fuses the slices + concat); the 4 GEMMs / corner-max / bias / ReLU run in one
    pallas_call and the un-pooled conv output never touches HBM.
    """
    N, H, W, Cin = x_nhwc.shape
    Cout, _, KH, KW = w_oihw.shape
    OH, OW = H - KH + 1, W - KW + 1
    H2, W2 = OH // 2, OW // 2                    # floor-mode pool (matches torch)
    M, K = N * H2 * W2, KH * KW * Cin

    # TODO(synk): im2col still materializes 4x(M,K) bf16 patch arrays in HBM; building
    # them in-kernel from a VMEM-resident image block needs a taps->lanes relayout
    # that Mosaic lowers poorly, so it stays XLA-side for now.
    def corner_patches(dy, dx):
        # pool output (h2,w2), corner (dy,dx) <- conv output (2*h2+dy, 2*w2+dx)
        taps = [x_nhwc[:, dy + kh: dy + kh + 2 * H2: 2,
                       dx + kw: dx + kw + 2 * W2: 2, :]
                for kh in range(KH) for kw in range(KW)]          # each (N,H2,W2,Cin)
        return jnp.concatenate(taps, axis=-1).reshape(M, K).astype(jnp.bfloat16)

    patches = [corner_patches(dy, dx) for dy in (0, 1) for dx in (0, 1)]
    # (Cout,Cin,KH,KW) -> (KH*KW*Cin, Cout) to match the patch feature order
    wmat = jnp.transpose(w_oihw, (2, 3, 1, 0)).reshape(K, Cout).astype(jnp.bfloat16)
    b2 = b.reshape(1, Cout).astype(jnp.float32)

    tm = _row_tile(M, _GEMM_ROW_TILE)
    # TODO(synk): (tm, Cout<=20) rows are masked lane stores; a lane-dense
    # (tb_images, H2*W2*Cout) output slab needs an in-kernel relayout that risks
    # lowering failures, so it is intentionally left narrow.
    out = pl.pallas_call(
        _conv_pool_relu_kernel,
        out_shape=jax.ShapeDtypeStruct((M, Cout), jnp.bfloat16),
        grid=(pl.cdiv(M, tm),),
        in_specs=[pl.BlockSpec((tm, K), lambda i: (i, 0)) for _ in range(4)]
                 + [pl.BlockSpec((K, Cout), lambda i: (0, 0)),
                    pl.BlockSpec((1, Cout), lambda i: (0, 0))],
        out_specs=pl.BlockSpec((tm, Cout), lambda i: (i, 0)),
        compiler_params=_mosaic_params(dimension_semantics=("parallel",)),
    )(*patches, wmat, b2)
    return out.reshape(N, H2, W2, Cout)


def fused_mlp(x, w1, b1, w2, b2, logsoftmax):
    """Fused Linear -> ReLU -> Linear (-> log_softmax). Weights as (in, out)."""
    M, K1 = x.shape
    N1, N2 = w1.shape[1], w2.shape[1]
    tm = _row_tile(M, _GEMM_ROW_TILE)
    return pl.pallas_call(
        functools.partial(_mlp_kernel, logsoftmax),
        out_shape=jax.ShapeDtypeStruct((M, N2), jnp.float32),
        grid=(pl.cdiv(M, tm),),
        in_specs=[pl.BlockSpec((tm, K1), lambda i: (i, 0)),
                  pl.BlockSpec((K1, N1), lambda i: (0, 0)),
                  pl.BlockSpec((1, N1), lambda i: (0, 0)),
                  pl.BlockSpec((N1, N2), lambda i: (0, 0)),
                  pl.BlockSpec((1, N2), lambda i: (0, 0))],
        out_specs=pl.BlockSpec((tm, N2), lambda i: (i, 0)),
        compiler_params=_mosaic_params(dimension_semantics=("parallel",)),
    )(x.astype(jnp.bfloat16), w1.astype(jnp.bfloat16),
      b1.reshape(1, N1).astype(jnp.float32),
      w2.astype(jnp.bfloat16), b2.reshape(1, N2).astype(jnp.float32))


def fused_loc_head(x, w1, b1, w2, b2, H, W):
    """fc_loc (Linear->ReLU->Linear) fused with affine_grid; returns pixel coords.

    Output: ix, iy of shape (N, H*W), f32 (align_corners=False, torch default).
    """
    M, K1 = x.shape
    N1 = w1.shape[1]
    HW = H * W
    xs = (2.0 * jnp.arange(W, dtype=jnp.float32) + 1.0) / W - 1.0
    ys = (2.0 * jnp.arange(H, dtype=jnp.float32) + 1.0) / H - 1.0
    bx = jnp.tile(xs[None, :], (H, 1)).reshape(1, HW)     # bx[h*W+w] = xs[w]
    by = jnp.tile(ys[:, None], (1, W)).reshape(1, HW)     # by[h*W+w] = ys[h]

    tm = _row_tile(M, _EW_ROW_TILE)   # two f32 (tm, 784) outputs -> smaller tile
    ix, iy = pl.pallas_call(
        functools.partial(_loc_head_kernel, float(H), float(W)),
        out_shape=(jax.ShapeDtypeStruct((M, HW), jnp.float32),
                   jax.ShapeDtypeStruct((M, HW), jnp.float32)),
        grid=(pl.cdiv(M, tm),),
        in_specs=[pl.BlockSpec((tm, K1), lambda i: (i, 0)),
                  pl.BlockSpec((K1, N1), lambda i: (0, 0)),
                  pl.BlockSpec((1, N1), lambda i: (0, 0)),
                  pl.BlockSpec((N1, 6), lambda i: (0, 0)),
                  pl.BlockSpec((1, 6), lambda i: (0, 0)),
                  pl.BlockSpec((1, HW), lambda i: (0, 0)),
                  pl.BlockSpec((1, HW), lambda i: (0, 0))],
        out_specs=[pl.BlockSpec((tm, HW), lambda i: (i, 0)),
                   pl.BlockSpec((tm, HW), lambda i: (i, 0))],
        compiler_params=_mosaic_params(dimension_semantics=("parallel",)),
    )(x.astype(jnp.bfloat16), w1.astype(jnp.bfloat16),
      b1.reshape(1, N1).astype(jnp.float32),
      w2.astype(jnp.bfloat16), b2.reshape(1, 6).astype(jnp.float32),
      bx, by)
    return ix, iy


def grid_sample_bilinear(x_nhwc, ix, iy):
    """F.grid_sample(bilinear, padding='zeros', align_corners=False), C == 1.

    ix/iy are (N, H*W) pixel coordinates from the fused localization head.  The
    four corner values are fetched with ONE fused take_along_axis gather; the
    bilinear weights and zero-padding masks are computed inside the Pallas kernel.
    """
    N, H, W, _ = x_nhwc.shape            # single channel for this model
    HW = H * W
    img = x_nhwc.reshape(N, HW)
    x0 = jnp.floor(ix)
    y0 = jnp.floor(iy)
    x1 = x0 + 1.0
    y1 = y0 + 1.0

    def flat_idx(cx, cy):
        cxi = jnp.clip(cx, 0, W - 1).astype(jnp.int32)
        cyi = jnp.clip(cy, 0, H - 1).astype(jnp.int32)
        return cyi * W + cxi

    idx = jnp.concatenate([flat_idx(x0, y0), flat_idx(x1, y0),
                           flat_idx(x0, y1), flat_idx(x1, y1)], axis=1)   # (N, 4*HW)
    # TODO(synk): data-dependent gather stays in plain JAX (single fused gather);
    # a per-image dynamic-slice Pallas gather is a possible large-batch follow-up.
    vals = jnp.take_along_axis(img, idx, axis=1).astype(jnp.bfloat16)     # (N, 4*HW)
    va, vb, vc, vd = (vals[:, i * HW:(i + 1) * HW] for i in range(4))

    tb = _row_tile(N, _EW_ROW_TILE)
    out = pl.pallas_call(
        functools.partial(_grid_sample_kernel, float(H), float(W)),
        out_shape=jax.ShapeDtypeStruct((N, HW), jnp.bfloat16),
        grid=(pl.cdiv(N, tb),),
        in_specs=[pl.BlockSpec((tb, HW), lambda i: (i, 0)) for _ in range(6)],
        out_specs=pl.BlockSpec((tb, HW), lambda i: (i, 0)),
        compiler_params=_mosaic_params(dimension_semantics=("parallel",)),
    )(va, vb, vc, vd, ix, iy)
    return out.reshape(N, H, W, 1)


def _nchw_rows_to_nhwc(w_in_out, C, H, W):
    """Permute FC weight rows from NCHW-flat to NHWC-flat feature order.

    Lets the FC kernels consume the conv-pool kernel's natural (N*H*W, C) output
    (reshaped for free to (N, H*W*C)) with no runtime activation transpose, while
    matching torch's `x.view(-1, C*H*W)` semantics.
    """
    out = w_in_out.shape[1]
    return w_in_out.reshape(C, H, W, out).transpose(1, 2, 0, 3).reshape(C * H * W, out)


# ----------------------------------------------------------------------------
# parameters (deterministic, shapes from the nn.Module __init__)
# ----------------------------------------------------------------------------
def _kaiming_uniform(key, shape, fan_in):
    bound = 1.0 / jnp.sqrt(jnp.float32(fan_in))
    return jax.random.uniform(key, shape, jnp.float32, -bound, bound)


def init_params(key):
    ks = jax.random.split(key, 16)
    p = {}
    p["c1_w"] = _kaiming_uniform(ks[0], (10, 1, 5, 5), 1 * 25)
    p["c1_b"] = _kaiming_uniform(ks[1], (10,), 1 * 25)
    p["c2_w"] = _kaiming_uniform(ks[2], (20, 10, 5, 5), 10 * 25)
    p["c2_b"] = _kaiming_uniform(ks[3], (20,), 10 * 25)
    p["fc1_w"] = _kaiming_uniform(ks[4], (320, 50), 320)      # stored as (in, out)
    p["fc1_b"] = _kaiming_uniform(ks[5], (50,), 320)
    p["fc2_w"] = _kaiming_uniform(ks[6], (50, 10), 50)
    p["fc2_b"] = _kaiming_uniform(ks[7], (10,), 50)
    p["loc_c1_w"] = _kaiming_uniform(ks[8], (8, 1, 7, 7), 1 * 49)
    p["loc_c1_b"] = _kaiming_uniform(ks[9], (8,), 1 * 49)
    p["loc_c2_w"] = _kaiming_uniform(ks[10], (10, 8, 5, 5), 8 * 25)
    p["loc_c2_b"] = _kaiming_uniform(ks[11], (10,), 8 * 25)
    p["fc_loc1_w"] = _kaiming_uniform(ks[12], (90, 32), 90)
    p["fc_loc1_b"] = _kaiming_uniform(ks[13], (32,), 90)
    # fc_loc[2]: weight zeroed, bias = identity affine (as in the PyTorch module)
    p["fc_loc2_w"] = jnp.zeros((32, 6), jnp.float32)
    p["fc_loc2_b"] = jnp.array([1, 0, 0, 0, 1, 0], jnp.float32)
    return p


# ----------------------------------------------------------------------------
# forward pass
# ----------------------------------------------------------------------------
def forward(params, x_nchw):
    # NCHW at the boundary (PyTorch convention); NHWC inside the kernels.
    x = jnp.transpose(x_nchw.astype(jnp.float32), (0, 2, 3, 1))       # (N,28,28,1)
    N, H, W, _ = x.shape

    # ----- stn: localization net (2 fused conv+pool+relu stages + fused head) -----
    xs = conv_pool_relu(x, params["loc_c1_w"], params["loc_c1_b"])    # (N,11,11,8) bf16
    xs = conv_pool_relu(xs, params["loc_c2_w"], params["loc_c2_b"])   # (N,3,3,10)  bf16
    xs = xs.reshape(N, 90)                                            # free NHWC-flat reshape
    ix, iy = fused_loc_head(xs, _nchw_rows_to_nhwc(params["fc_loc1_w"], 10, 3, 3),
                            params["fc_loc1_b"], params["fc_loc2_w"],
                            params["fc_loc2_b"], H, W)                # 2 x (N, 784) f32

    # ----- stn: grid_sample (fused gather + in-kernel bilinear weights) -----
    x = grid_sample_bilinear(x, ix, iy)                               # (N,28,28,1) bf16

    # ----- main classifier (2 fused conv+pool+relu stages + fused FC tail) -----
    x = conv_pool_relu(x, params["c1_w"], params["c1_b"])             # (N,12,12,10) bf16
    x = conv_pool_relu(x, params["c2_w"], params["c2_b"])             # (N,4,4,20)   bf16
    x = x.reshape(N, 320)                                             # free NHWC-flat reshape
    out = fused_mlp(x, _nchw_rows_to_nhwc(params["fc1_w"], 20, 4, 4),
                    params["fc1_b"], params["fc2_w"], params["fc2_b"],
                    logsoftmax=True)                                  # (N,10) log-probs f32
    return out


# ----------------------------------------------------------------------------
if __name__ == "__main__":
    root = jax.random.PRNGKey(0)
    k_params, k_x = jax.random.split(root)
    params = init_params(k_params)
    # MNIST-shaped input implied by the module (view(-1, 320) / 10*3*3): (N,1,28,28)
    x = jax.random.normal(k_x, (2, 1, 28, 28), dtype=jnp.float32)

    out = jax.jit(forward)(params, x)
    out = jax.block_until_ready(out)

    assert out.shape == (2, 10)
    # log_softmax rows must (approximately) exponentiate-sum to 1
    assert jnp.allclose(jnp.sum(jnp.exp(out), axis=1), 1.0, atol=1e-4)
    print("KERNEL_OK")
</pallas_src>

<mosaic_0001>
module attributes {stable_mosaic.version = 11 : i64} {
  func.func @_conv_pool_relu_kernel(%arg0: i32, %arg1: memref<128x49xbf16, #tpu.memory_space<vmem>>, %arg2: memref<128x49xbf16, #tpu.memory_space<vmem>>, %arg3: memref<128x49xbf16, #tpu.memory_space<vmem>>, %arg4: memref<128x49xbf16, #tpu.memory_space<vmem>>, %arg5: memref<49x8xbf16, #tpu.memory_space<vmem>>, %arg6: memref<1x8xf32, #tpu.memory_space<vmem>>, %arg7: memref<128x8xbf16, #tpu.memory_space<vmem>>) attributes {dimension_semantics = [#tpu.dimension_semantics<parallel>], iteration_bounds = array<i64: 2>, scalar_prefetch = 0 : i64, scratch_operands = 0 : i64, tpu.core_type = #tpu.core_type<tc>, window_params = [{transform_indices = @transform_0, window_bounds = array<i64: 128, 49>}, {transform_indices = @transform_1, window_bounds = array<i64: 128, 49>}, {transform_indices = @transform_2, window_bounds = array<i64: 128, 49>}, {transform_indices = @transform_3, window_bounds = array<i64: 128, 49>}, {pipeline_mode = #tpu.pipeline_mode<synchronous>, transform_indices = @transform_4, window_bounds = array<i64: 49, 8>}, {pipeline_mode = #tpu.pipeline_mode<synchronous>, transform_indices = @transform_5, window_bounds = array<i64: 1, 8>}, {transform_indices = @transform_6, window_bounds = array<i64: 128, 8>}]} {
    %c0 = arith.constant 0 : index
    %c0_0 = arith.constant 0 : index
    %0 = vector.load %arg5[%c0, %c0_0] : memref<49x8xbf16, #tpu.memory_space<vmem>>, vector<49x8xbf16>
    %c0_1 = arith.constant 0 : index
    %c0_2 = arith.constant 0 : index
    %1 = vector.load %arg1[%c0_1, %c0_2] : memref<128x49xbf16, #tpu.memory_space<vmem>>, vector<128x49xbf16>
    %cst = arith.constant dense<0.000000e+00> : vector<128x8xf32>
    %2 = tpu.matmul %1, %0, %cst {dimension_numbers = #tpu.dot_dimension_numbers<[1], [0], [0], [1], [0, 0, 1, 1], [], []>} : vector<128x49xbf16>, vector<49x8xbf16>, vector<128x8xf32> -> vector<128x8xf32>
    %c0_3 = arith.constant 0 : index
    %c0_4 = arith.constant 0 : index
    %3 = vector.load %arg2[%c0_3, %c0_4] : memref<128x49xbf16, #tpu.memory_space<vmem>>, vector<128x49xbf16>
    %cst_5 = arith.constant dense<0.000000e+00> : vector<128x8xf32>
    %4 = tpu.matmul %3, %0, %cst_5 {dimension_numbers = #tpu.dot_dimension_numbers<[1], [0], [0], [1], [0, 0, 1, 1], [], []>} : vector<128x49xbf16>, vector<49x8xbf16>, vector<128x8xf32> -> vector<128x8xf32>
    %5 = arith.maximumf %2, %4 : vector<128x8xf32>
    %c0_6 = arith.constant 0 : index
    %c0_7 = arith.constant 0 : index
    %6 = vector.load %arg3[%c0_6, %c0_7] : memref<128x49xbf16, #tpu.memory_space<vmem>>, vector<128x49xbf16>
    %cst_8 = arith.constant dense<0.000000e+00> : vector<128x8xf32>
    %7 = tpu.matmul %6, %0, %cst_8 {dimension_numbers = #tpu.dot_dimension_numbers<[1], [0], [0], [1], [0, 0, 1, 1], [], []>} : vector<128x49xbf16>, vector<49x8xbf16>, vector<128x8xf32> -> vector<128x8xf32>
    %8 = arith.maximumf %5, %7 : vector<128x8xf32>
    %c0_9 = arith.constant 0 : index
    %c0_10 = arith.constant 0 : index
    %9 = vector.load %arg4[%c0_9, %c0_10] : memref<128x49xbf16, #tpu.memory_space<vmem>>, vector<128x49xbf16>
    %cst_11 = arith.constant dense<0.000000e+00> : vector<128x8xf32>
    %10 = tpu.matmul %9, %0, %cst_11 {dimension_numbers = #tpu.dot_dimension_numbers<[1], [0], [0], [1], [0, 0, 1, 1], [], []>} : vector<128x49xbf16>, vector<49x8xbf16>, vector<128x8xf32> -> vector<128x8xf32>
    %11 = arith.maximumf %8, %10 : vector<128x8xf32>
    %c0_12 = arith.constant 0 : index
    %c0_13 = arith.constant 0 : index
    %12 = vector.load %arg6[%c0_12, %c0_13] : memref<1x8xf32, #tpu.memory_space<vmem>>, vector<1x8xf32>
    %13 = vector.broadcast %12 : vector<1x8xf32> to vector<128x8xf32>
    %14 = arith.addf %11, %13 : vector<128x8xf32>
    %cst_14 = arith.constant 0.000000e+00 : f32
    %15 = vector.broadcast %cst_14 : f32 to vector<128x8xf32>
    %16 = arith.maximumf %14, %15 : vector<128x8xf32>
    %17 = arith.truncf %16 : vector<128x8xf32> to vector<128x8xbf16>
    %c0_15 = arith.constant 0 : index
    %c0_16 = arith.constant 0 : index
    %18 = vector.load %arg7[%c0_15, %c0_16] : memref<128x8xbf16, #tpu.memory_space<vmem>>, vector<128x8xbf16>
    tpu.vector_store %arg7[%c0_15, %c0_16], %17 {strides = array<i32>} : memref<128x8xbf16, #tpu.memory_space<vmem>>, vector<128x8xbf16>,
    return
  }
  func.func @transform_0(%arg0: i32) -> (i32, i32) {
    %c0_i32 = arith.constant 0 : i32
    %c0_i32_0 = arith.constant 0 : i32
    return %arg0, %c0_i32 : i32, i32
  }
  func.func @transform_1(%arg0: i32) -> (i32, i32) {
    %c0_i32 = arith.constant 0 : i32
    %c0_i32_0 = arith.constant 0 : i32
    return %arg0, %c0_i32 : i32, i32
  }
  func.func @transform_2(%arg0: i32) -> (i32, i32) {
    %c0_i32 = arith.constant 0 : i32
    %c0_i32_0 = arith.constant 0 : i32
    return %arg0, %c0_i32 : i32, i32
  }
  func.func @transform_3(%arg0: i32) -> (i32, i32) {
    %c0_i32 = arith.constant 0 : i32
    %c0_i32_0 = arith.constant 0 : i32
    return %arg0, %c0_i32 : i32, i32
  }
  func.func @transform_4(%arg0: i32) -> (i32, i32) {
    %c0_i32 = arith.constant 0 : i32
    %c0_i32_0 = arith.constant 0 : i32
    %c0_i32_1 = arith.constant 0 : i32
    return %c0_i32, %c0_i32_0 : i32, i32
  }
  func.func @transform_5(%arg0: i32) -> (i32, i32) {
    %c0_i32 = arith.constant 0 : i32
    %c0_i32_0 = arith.constant 0 : i32
    %c0_i32_1 = arith.constant 0 : i32
    return %c0_i32, %c0_i32_0 : i32, i32
  }
  func.func @transform_6(%arg0: i32) -> (i32, i32) {
    %c0_i32 = arith.constant 0 : i32
    %c0_i32_0 = arith.constant 0 : i32
    return %arg0, %c0_i32 : i32, i32
  }
}

module attributes {stable_mosaic.version = 11 : i64} {
  func.func @_conv_pool_relu_kernel(%arg0: i32, %arg1: memref<16x200xbf16, #tpu.memory_space<vmem>>, %arg2: memref<16x200xbf16, #tpu.memory_space<vmem>>, %arg3: memref<16x200xbf16, #tpu.memory_space<vmem>>, %arg4: memref<16x200xbf16, #tpu.memory_space<vmem>>, %arg5: memref<200x10xbf16, #tpu.memory_space<vmem>>, %arg6: memref<1x10xf32, #tpu.memory_space<vmem>>, %arg7: memref<16x10xbf16, #tpu.memory_space<vmem>>) attributes {dimension_semantics = [#tpu.dimension_semantics<parallel>], iteration_bounds = array<i64: 2>, scalar_prefetch = 0 : i64, scratch_operands = 0 : i64, tpu.core_type = #tpu.core_type<tc>, window_params = [{transform_indices = @transform_0, window_bounds = array<i64: 16, 200>}, {transform_indices = @transform_1, window_bounds = array<i64: 16, 200>}, {transform_indices = @transform_2, window_bounds = array<i64: 16, 200>}, {transform_indices = @transform_3, window_bounds = array<i64: 16, 200>}, {pipeline_mode = #tpu.pipeline_mode<synchronous>, transform_indices = @transform_4, window_bounds = array<i64: 200, 10>}, {pipeline_mode = #tpu.pipeline_mode<synchronous>, transform_indices = @transform_5, window_bounds = array<i64: 1, 10>}, {transform_indices = @transform_6, window_bounds = array<i64: 16, 10>}]} {
    %c0 = arith.constant 0 : index
    %c0_0 = arith.constant 0 : index
    %0 = vector.load %arg5[%c0, %c0_0] : memref<200x10xbf16, #tpu.memory_space<vmem>>, vector<200x10xbf16>
    %c0_1 = arith.constant 0 : index
    %c0_2 = arith.constant 0 : index
    %1 = vector.load %arg1[%c0_1, %c0_2] : memref<16x200xbf16, #tpu.memory_space<vmem>>, vector<16x200xbf16>
    %cst = arith.constant dense<0.000000e+00> : vector<16x10xf32>
    %2 = tpu.matmul %1, %0, %cst {dimension_numbers = #tpu.dot_dimension_numbers<[1], [0], [0], [1], [0, 0, 1, 1], [], []>} : vector<16x200xbf16>, vector<200x10xbf16>, vector<16x10xf32> -> vector<16x10xf32>
    %c0_3 = arith.constant 0 : index
    %c0_4 = arith.constant 0 : index
    %3 = vector.load %arg2[%c0_3, %c0_4] : memref<16x200xbf16, #tpu.memory_space<vmem>>, vector<16x200xbf16>
    %cst_5 = arith.constant dense<0.000000e+00> : vector<16x10xf32>
    %4 = tpu.matmul %3, %0, %cst_5 {dimension_numbers = #tpu.dot_dimension_numbers<[1], [0], [0], [1], [0, 0, 1, 1], [], []>} : vector<16x200xbf16>, vector<200x10xbf16>, vector<16x10xf32> -> vector<16x10xf32>
    %5 = arith.maximumf %2, %4 : vector<16x10xf32>
    %c0_6 = arith.constant 0 : index
    %c0_7 = arith.constant 0 : index
    %6 = vector.load %arg3[%c0_6, %c0_7] : memref<16x200xbf16, #tpu.memory_space<vmem>>, vector<16x200xbf16>
    %cst_8 = arith.constant dense<0.000000e+00> : vector<16x10xf32>
    %7 = tpu.matmul %6, %0, %cst_8 {dimension_numbers = #tpu.dot_dimension_numbers<[1], [0], [0], [1], [0, 0, 1, 1], [], []>} : vector<16x200xbf16>, vector<200x10xbf16>, vector<16x10xf32> -> vector<16x10xf32>
    %8 = arith.maximumf %5, %7 : vector<16x10xf32>
    %c0_9 = arith.constant 0 : index
    %c0_10 = arith.constant 0 : index
    %9 = vector.load %arg4[%c0_9, %c0_10] : memref<16x200xbf16, #tpu.memory_space<vmem>>, vector<16x200xbf16>
    %cst_11 = arith.constant dense<0.000000e+00> : vector<16x10xf32>
    %10 = tpu.matmul %9, %0, %cst_11 {dimension_numbers = #tpu.dot_dimension_numbers<[1], [0], [0], [1], [0, 0, 1, 1], [], []>} : vector<16x200xbf16>, vector<200x10xbf16>, vector<16x10xf32> -> vector<16x10xf32>
    %11 = arith.maximumf %8, %10 : vector<16x10xf32>
    %c0_12 = arith.constant 0 : index
    %c0_13 = arith.constant 0 : index
    %12 = vector.load %arg6[%c0_12, %c0_13] : memref<1x10xf32, #tpu.memory_space<vmem>>, vector<1x10xf32>
    %13 = vector.broadcast %12 : vector<1x10xf32> to vector<16x10xf32>
    %14 = arith.addf %11, %13 : vector<16x10xf32>
    %cst_14 = arith.constant 0.000000e+00 : f32
    %15 = vector.broadcast %cst_14 : f32 to vector<16x10xf32>
    %16 = arith.maximumf %14, %15 : vector<16x10xf32>
    %17 = arith.truncf %16 : vector<16x10xf32> to vector<16x10xbf16>
    %c0_15 = arith.constant 0 : index
    %c0_16 = arith.constant 0 : index
    %18 = vector.load %arg7[%c0_15, %c0_16] : memref<16x10xbf16, #tpu.memory_space<vmem>>, vector<16x10xbf16>
    tpu.vector_store %arg7[%c0_15, %c0_16], %17 {strides = array<i32>} : memref<16x10xbf16, #tpu.memory_space<vmem>>, vector<16x10xbf16>,
    return
  }
  func.func @transform_0(%arg0: i32) -> (i32, i32) {
    %c0_i32 = arith.constant 0 : i32
    %c0_i32_0 = arith.constant 0 : i32
    return %arg0, %c0_i32 : i32, i32
  }
  func.func @transform_1(%arg0: i32) -> (i32, i32) {
    %c0_i32 = arith.constant 0 : i32
    %c0_i32_0 = arith.constant 0 : i32
    return %arg0, %c0_i32 : i32, i32
  }
  func.func @transform_2(%arg0: i32) -> (i32, i32) {
    %c0_i32 = arith.constant 0 : i32
    %c0_i32_0 = arith.constant 0 : i32
    return %arg0, %c0_i32 : i32, i32
  }
  func.func @transform_3(%arg0: i32) -> (i32, i32) {
    %c0_i32 = arith.constant 0 : i32
    %c0_i32_0 = arith.constant 0 : i32
    return %arg0, %c0_i32 : i32, i32
  }
  func.func @transform_4(%arg0: i32) -> (i32, i32) {
    %c0_i32 = arith.constant 0 : i32
    %c0_i32_0 = arith.constant 0 : i32
    %c0_i32_1 = arith.constant 0 : i32
    return %c0_i32, %c0_i32_0 : i32, i32
  }
  func.func @transform_5(%arg0: i32) -> (i32, i32) {
    %c0_i32 = arith.constant 0 : i32
    %c0_i32_0 = arith.constant 0 : i32
    %c0_i32_1 = arith.constant 0 : i32
    return %c0_i32, %c0_i32_0 : i32, i32
  }
  func.func @transform_6(%arg0: i32) -> (i32, i32) {
    %c0_i32 = arith.constant 0 : i32
    %c0_i32_0 = arith.constant 0 : i32
    return %arg0, %c0_i32 : i32, i32
  }
}

module attributes {stable_mosaic.version = 11 : i64} {
  func.func @_loc_head_kernel(%arg0: i32, %arg1: memref<2x90xbf16, #tpu.memory_space<vmem>>, %arg2: memref<90x32xbf16, #tpu.memory_space<vmem>>, %arg3: memref<1x32xf32, #tpu.memory_space<vmem>>, %arg4: memref<32x6xbf16, #tpu.memory_space<vmem>>, %arg5: memref<1x6xf32, #tpu.memory_space<vmem>>, %arg6: memref<1x784xf32, #tpu.memory_space<vmem>>, %arg7: memref<1x784xf32, #tpu.memory_space<vmem>>, %arg8: memref<2x784xf32, #tpu.memory_space<vmem>>, %arg9: memref<2x784xf32, #tpu.memory_space<vmem>>) attributes {dimension_semantics = [#tpu.dimension_semantics<parallel>], iteration_bounds = array<i64: 1>, scalar_prefetch = 0 : i64, scratch_operands = 0 : i64, tpu.core_type = #tpu.core_type<tc>, window_params = [{transform_indices = @transform_0, window_bounds = array<i64: 2, 90>}, {pipeline_mode = #tpu.pipeline_mode<synchronous>, transform_indices = @transform_1, window_bounds = array<i64: 90, 32>}, {pipeline_mode = #tpu.pipeline_mode<synchronous>, transform_indices = @transform_2, window_bounds = array<i64: 1, 32>}, {pipeline_mode = #tpu.pipeline_mode<synchronous>, transform_indices = @transform_3, window_bounds = array<i64: 32, 6>}, {pipeline_mode = #tpu.pipeline_mode<synchronous>, transform_indices = @transform_4, window_bounds = array<i64: 1, 6>}, {pipeline_mode = #tpu.pipeline_mode<synchronous>, transform_indices = @transform_5, window_bounds = array<i64: 1, 784>}, {pipeline_mode = #tpu.pipeline_mode<synchronous>, transform_indices = @transform_6, window_bounds = array<i64: 1, 784>}, {transform_indices = @transform_7, window_bounds = array<i64: 2, 784>}, {transform_indices = @transform_8, window_bounds = array<i64: 2, 784>}]} {
    %c0 = arith.constant 0 : index
    %c0_0 = arith.constant 0 : index
    %0 = vector.load %arg1[%c0, %c0_0] : memref<2x90xbf16, #tpu.memory_space<vmem>>, vector<2x90xbf16>
    %c0_1 = arith.constant 0 : index
    %c0_2 = arith.constant 0 : index
    %1 = vector.load %arg2[%c0_1, %c0_2] : memref<90x32xbf16, #tpu.memory_space<vmem>>, vector<90x32xbf16>
    %cst = arith.constant dense<0.000000e+00> : vector<2x32xf32>
    %2 = tpu.matmul %0, %1, %cst {dimension_numbers = #tpu.dot_dimension_numbers<[1], [0], [0], [1], [0, 0, 1, 1], [], []>} : vector<2x90xbf16>, vector<90x32xbf16>, vector<2x32xf32> -> vector<2x32xf32>
    %c0_3 = arith.constant 0 : index
    %c0_4 = arith.constant 0 : index
    %3 = vector.load %arg3[%c0_3, %c0_4] : memref<1x32xf32, #tpu.memory_space<vmem>>, vector<1x32xf32>
    %4 = vector.broadcast %3 : vector<1x32xf32> to vector<2x32xf32>
    %5 = arith.addf %2, %4 : vector<2x32xf32>
    %cst_5 = arith.constant 0.000000e+00 : f32
    %6 = vector.broadcast %cst_5 : f32 to vector<2x32xf32>
    %7 = arith.maximumf %5, %6 : vector<2x32xf32>
    %8 = arith.truncf %7 : vector<2x32xf32> to vector<2x32xbf16>
    %c0_6 = arith.constant 0 : index
    %c0_7 = arith.constant 0 : index
    %9 = vector.load %arg4[%c0_6, %c0_7] : memref<32x6xbf16, #tpu.memory_space<vmem>>, vector<32x6xbf16>
    %cst_8 = arith.constant dense<0.000000e+00> : vector<2x6xf32>
    %10 = tpu.matmul %8, %9, %cst_8 {dimension_numbers = #tpu.dot_dimension_numbers<[1], [0], [0], [1], [0, 0, 1, 1], [], []>} : vector<2x32xbf16>, vector<32x6xbf16>, vector<2x6xf32> -> vector<2x6xf32>
    %c0_9 = arith.constant 0 : index
    %c0_10 = arith.constant 0 : index
    %11 = vector.load %arg5[%c0_9, %c0_10] : memref<1x6xf32, #tpu.memory_space<vmem>>, vector<1x6xf32>
    %12 = vector.broadcast %11 : vector<1x6xf32> to vector<2x6xf32>
    %13 = arith.addf %10, %12 : vector<2x6xf32>
    %c0_11 = arith.constant 0 : index
    %c0_12 = arith.constant 0 : index
    %14 = vector.load %arg6[%c0_11, %c0_12] : memref<1x784xf32, #tpu.memory_space<vmem>>, vector<1x784xf32>
    %c0_13 = arith.constant 0 : index
    %c0_14 = arith.constant 0 : index
    %15 = vector.load %arg7[%c0_13, %c0_14] : memref<1x784xf32, #tpu.memory_space<vmem>>, vector<1x784xf32>
    %16 = vector.extract_strided_slice %13 {offsets = [0, 0], sizes = [2, 1], strides = [1, 1]} : vector<2x6xf32> to vector<2x1xf32>
    %17 = vector.broadcast %16 : vector<2x1xf32> to vector<2x784xf32>
    %18 = vector.broadcast %14 : vector<1x784xf32> to vector<2x784xf32>
    %19 = arith.mulf %17, %18 : vector<2x784xf32>
    %20 = vector.extract_strided_slice %13 {offsets = [0, 1], sizes = [2, 1], strides = [1, 1]} : vector<2x6xf32> to vector<2x1xf32>
    %21 = vector.broadcast %20 : vector<2x1xf32> to vector<2x784xf32>
    %22 = vector.broadcast %15 : vector<1x784xf32> to vector<2x784xf32>
    %23 = arith.mulf %21, %22 : vector<2x784xf32>
    %24 = arith.addf %19, %23 : vector<2x784xf32>
    %25 = vector.extract_strided_slice %13 {offsets = [0, 2], sizes = [2, 1], strides = [1, 1]} : vector<2x6xf32> to vector<2x1xf32>
    %26 = vector.broadcast %25 : vector<2x1xf32> to vector<2x784xf32>
    %27 = arith.addf %24, %26 : vector<2x784xf32>
    %28 = vector.extract_strided_slice %13 {offsets = [0, 3], sizes = [2, 1], strides = [1, 1]} : vector<2x6xf32> to vector<2x1xf32>
    %29 = vector.broadcast %28 : vector<2x1xf32> to vector<2x784xf32>
    %30 = vector.broadcast %14 : vector<1x784xf32> to vector<2x784xf32>
    %31 = arith.mulf %29, %30 : vector<2x784xf32>
    %32 = vector.extract_strided_slice %13 {offsets = [0, 4], sizes = [2, 1], strides = [1, 1]} : vector<2x6xf32> to vector<2x1xf32>
    %33 = vector.broadcast %32 : vector<2x1xf32> to vector<2x784xf32>
    %34 = vector.broadcast %15 : vector<1x784xf32> to vector<2x784xf32>
    %35 = arith.mulf %33, %34 : vector<2x784xf32>
    %36 = arith.addf %31, %35 : vector<2x784xf32>
    %37 = vector.extract_strided_slice %13 {offsets = [0, 5], sizes = [2, 1], strides = [1, 1]} : vector<2x6xf32> to vector<2x1xf32>
    %38 = vector.broadcast %37 : vector<2x1xf32> to vector<2x784xf32>
    %39 = arith.addf %36, %38 : vector<2x784xf32>
    %cst_15 = arith.constant 1.000000e+00 : f32
    %40 = vector.broadcast %cst_15 : f32 to vector<2x784xf32>
    %41 = arith.addf %27, %40 : vector<2x784xf32>
    %cst_16 = arith.constant 1.400000e+01 : f32
    %42 = vector.broadcast %cst_16 : f32 to vector<2x784xf32>
    %43 = arith.mulf %41, %42 : vector<2x784xf32>
    %cst_17 = arith.constant 5.000000e-01 : f32
    %44 = vector.broadcast %cst_17 : f32 to vector<2x784xf32>
    %45 = arith.subf %43, %44 : vector<2x784xf32>
    %c0_18 = arith.constant 0 : index
    %c0_19 = arith.constant 0 : index
    %46 = vector.load %arg8[%c0_18, %c0_19] : memref<2x784xf32, #tpu.memory_space<vmem>>, vector<2x784xf32>
    tpu.vector_store %arg8[%c0_18, %c0_19], %45 {strides = array<i32>} : memref<2x784xf32, #tpu.memory_space<vmem>>, vector<2x784xf32>,
    %cst_20 = arith.constant 1.000000e+00 : f32
    %47 = vector.broadcast %cst_20 : f32 to vector<2x784xf32>
    %48 = arith.addf %39, %47 : vector<2x784xf32>
    %cst_21 = arith.constant 1.400000e+01 : f32
    %49 = vector.broadcast %cst_21 : f32 to vector<2x784xf32>
    %50 = arith.mulf %48, %49 : vector<2x784xf32>
    %cst_22 = arith.constant 5.000000e-01 : f32
    %51 = vector.broadcast %cst_22 : f32 to vector<2x784xf32>
    %52 = arith.subf %50, %51 : vector<2x784xf32>
    %c0_23 = arith.constant 0 : index
    %c0_24 = arith.constant 0 : index
    %53 = vector.load %arg9[%c0_23, %c0_24] : memref<2x784xf32, #tpu.memory_space<vmem>>, vector<2x784xf32>
    tpu.vector_store %arg9[%c0_23, %c0_24], %52 {strides = array<i32>} : memref<2x784xf32, #tpu.memory_space<vmem>>, vector<2x784xf32>,
    return
  }
  func.func @transform_0(%arg0: i32) -> (i32, i32) {
    %c0_i32 = arith.constant 0 : i32
    %c0_i32_0 = arith.constant 0 : i32
    return %arg0, %c0_i32 : i32, i32
  }
  func.func @transform_1(%arg0: i32) -> (i32, i32) {
    %c0_i32 = arith.constant 0 : i32
    %c0_i32_0 = arith.constant 0 : i32
    %c0_i32_1 = arith.constant 0 : i32
    return %c0_i32, %c0_i32_0 : i32, i32
  }
  func.func @transform_2(%arg0: i32) -> (i32, i32) {
    %c0_i32 = arith.constant 0 : i32
    %c0_i32_0 = arith.constant 0 : i32
    %c0_i32_1 = arith.constant 0 : i32
    return %c0_i32, %c0_i32_0 : i32, i32
  }
  func.func @transform_3(%arg0: i32) -> (i32, i32) {
    %c0_i32 = arith.constant 0 : i32
    %c0_i32_0 = arith.constant 0 : i32
    %c0_i32_1 = arith.constant 0 : i32
    return %c0_i32, %c0_i32_0 : i32, i32
  }
  func.func @transform_4(%arg0: i32) -> (i32, i32) {
    %c0_i32 = arith.constant 0 : i32
    %c0_i32_0 = arith.constant 0 : i32
    %c0_i32_1 = arith.constant 0 : i32
    return %c0_i32, %c0_i32_0 : i32, i32
  }
  func.func @transform_5(%arg0: i32) -> (i32, i32) {
    %c0_i32 = arith.constant 0 : i32
    %c0_i32_0 = arith.constant 0 : i32
    %c0_i32_1 = arith.constant 0 : i32
    return %c0_i32, %c0_i32_0 : i32, i32
  }
  func.func @transform_6(%arg0: i32) -> (i32, i32) {
    %c0_i32 = arith.constant 0 : i32
    %c0_i32_0 = arith.constant 0 : i32
    %c0_i32_1 = arith.constant 0 : i32
    return %c0_i32, %c0_i32_0 : i32, i32
  }
  func.func @transform_7(%arg0: i32) -> (i32, i32) {
    %c0_i32 = arith.constant 0 : i32
    %c0_i32_0 = arith.constant 0 : i32
    return %arg0, %c0_i32 : i32, i32
  }
  func.func @transform_8(%arg0: i32) -> (i32, i32) {
    %c0_i32 = arith.constant 0 : i32
    %c0_i32_0 = arith.constant 0 : i32
    return %arg0, %c0_i32 : i32, i32
  }
}

module attributes {stable_mosaic.version = 11 : i64} {
  func.func @_grid_sample_kernel(%arg0: i32, %arg1: memref<2x784xbf16, #tpu.memory_space<vmem>>, %arg2: memref<2x784xbf16, #tpu.memory_space<vmem>>, %arg3: memref<2x784xbf16, #tpu.memory_space<vmem>>, %arg4: memref<2x784xbf16, #tpu.memory_space<vmem>>, %arg5: memref<2x784xf32, #tpu.memory_space<vmem>>, %arg6: memref<2x784xf32, #tpu.memory_space<vmem>>, %arg7: memref<2x784xbf16, #tpu.memory_space<vmem>>) attributes {dimension_semantics = [#tpu.dimension_semantics<parallel>], iteration_bounds = array<i64: 1>, scalar_prefetch = 0 : i64, scratch_operands = 0 : i64, tpu.core_type = #tpu.core_type<tc>, window_params = [{transform_indices = @transform_0, window_bounds = array<i64: 2, 784>}, {transform_indices = @transform_1, window_bounds = array<i64: 2, 784>}, {transform_indices = @transform_2, window_bounds = array<i64: 2, 784>}, {transform_indices = @transform_3, window_bounds = array<i64: 2, 784>}, {transform_indices = @transform_4, window_bounds = array<i64: 2, 784>}, {transform_indices = @transform_5, window_bounds = array<i64: 2, 784>}, {transform_indices = @transform_6, window_bounds = array<i64: 2, 784>}]} {
    %c0 = arith.constant 0 : index
    %c0_0 = arith.constant 0 : index
    %0 = vector.load %arg5[%c0, %c0_0] : memref<2x784xf32, #tpu.memory_space<vmem>>, vector<2x784xf32>
    %c0_1 = arith.constant 0 : index
    %c0_2 = arith.constant 0 : index
    %1 = vector.load %arg6[%c0_1, %c0_2] : memref<2x784xf32, #tpu.memory_space<vmem>>, vector<2x784xf32>
    %2 = math.floor %0 : vector<2x784xf32>
    %3 = math.floor %1 : vector<2x784xf32>
    %4 = arith.subf %0, %2 : vector<2x784xf32>
    %5 = arith.subf %1, %3 : vector<2x784xf32>
    %cst = arith.constant 1.000000e+00 : f32
    %6 = vector.broadcast %cst : f32 to vector<2x784xf32>
    %7 = arith.subf %6, %4 : vector<2x784xf32>
    %cst_3 = arith.constant 1.000000e+00 : f32
    %8 = vector.broadcast %cst_3 : f32 to vector<2x784xf32>
    %9 = arith.subf %8, %5 : vector<2x784xf32>
    %cst_4 = arith.constant 0.000000e+00 : f32
    %10 = vector.broadcast %cst_4 : f32 to vector<2x784xf32>
    %11 = arith.cmpf oge, %2, %10 : vector<2x784xf32>
    %cst_5 = arith.constant 2.700000e+01 : f32
    %12 = vector.broadcast %cst_5 : f32 to vector<2x784xf32>
    %13 = arith.cmpf ole, %2, %12 : vector<2x784xf32>
    %14 = arith.andi %11, %13 : vector<2x784xi1>
    %cst_6 = arith.constant 0.000000e+00 : f32
    %15 = vector.broadcast %cst_6 : f32 to vector<2x784xf32>
    %16 = arith.select %14, %7, %15 : vector<2x784xi1>, vector<2x784xf32>
    %cst_7 = arith.constant -1.000000e+00 : f32
    %17 = vector.broadcast %cst_7 : f32 to vector<2x784xf32>
    %18 = arith.cmpf oge, %2, %17 : vector<2x784xf32>
    %cst_8 = arith.constant 2.600000e+01 : f32
    %19 = vector.broadcast %cst_8 : f32 to vector<2x784xf32>
    %20 = arith.cmpf ole, %2, %19 : vector<2x784xf32>
    %21 = arith.andi %18, %20 : vector<2x784xi1>
    %cst_9 = arith.constant 0.000000e+00 : f32
    %22 = vector.broadcast %cst_9 : f32 to vector<2x784xf32>
    %23 = arith.select %21, %4, %22 : vector<2x784xi1>, vector<2x784xf32>
    %cst_10 = arith.constant 0.000000e+00 : f32
    %24 = vector.broadcast %cst_10 : f32 to vector<2x784xf32>
    %25 = arith.cmpf oge, %3, %24 : vector<2x784xf32>
    %cst_11 = arith.constant 2.700000e+01 : f32
    %26 = vector.broadcast %cst_11 : f32 to vector<2x784xf32>
    %27 = arith.cmpf ole, %3, %26 : vector<2x784xf32>
    %28 = arith.andi %25, %27 : vector<2x784xi1>
    %cst_12 = arith.constant 0.000000e+00 : f32
    %29 = vector.broadcast %cst_12 : f32 to vector<2x784xf32>
    %30 = arith.select %28, %9, %29 : vector<2x784xi1>, vector<2x784xf32>
    %cst_13 = arith.constant -1.000000e+00 : f32
    %31 = vector.broadcast %cst_13 : f32 to vector<2x784xf32>
    %32 = arith.cmpf oge, %3, %31 : vector<2x784xf32>
    %cst_14 = arith.constant 2.600000e+01 : f32
    %33 = vector.broadcast %cst_14 : f32 to vector<2x784xf32>
    %34 = arith.cmpf ole, %3, %33 : vector<2x784xf32>
    %35 = arith.andi %32, %34 : vector<2x784xi1>
    %cst_15 = arith.constant 0.000000e+00 : f32
    %36 = vector.broadcast %cst_15 : f32 to vector<2x784xf32>
    %37 = arith.select %35, %5, %36 : vector<2x784xi1>, vector<2x784xf32>
    %c0_16 = arith.constant 0 : index
    %c0_17 = arith.constant 0 : index
    %38 = vector.load %arg1[%c0_16, %c0_17] : memref<2x784xbf16, #tpu.memory_space<vmem>>, vector<2x784xbf16>
    %39 = arith.extf %38 : vector<2x784xbf16> to vector<2x784xf32>
    %40 = arith.mulf %16, %30 : vector<2x784xf32>
    %41 = arith.mulf %39, %40 : vector<2x784xf32>
    %c0_18 = arith.constant 0 : index
    %c0_19 = arith.constant 0 : index
    %42 = vector.load %arg2[%c0_18, %c0_19] : memref<2x784xbf16, #tpu.memory_space<vmem>>, vector<2x784xbf16>
    %43 = arith.extf %42 : vector<2x784xbf16> to vector<2x784xf32>
    %44 = arith.mulf %23, %30 : vector<2x784xf32>
    %45 = arith.mulf %43, %44 : vector<2x784xf32>
    %46 = arith.addf %41, %45 : vector<2x784xf32>
    %c0_20 = arith.constant 0 : index
    %c0_21 = arith.constant 0 : index
    %47 = vector.load %arg3[%c0_20, %c0_21] : memref<2x784xbf16, #tpu.memory_space<vmem>>, vector<2x784xbf16>
    %48 = arith.extf %47 : vector<2x784xbf16> to vector<2x784xf32>
    %49 = arith.mulf %16, %37 : vector<2x784xf32>
    %50 = arith.mulf %48, %49 : vector<2x784xf32>
    %51 = arith.addf %46, %50 : vector<2x784xf32>
    %c0_22 = arith.constant 0 : index
    %c0_23 = arith.constant 0 : index
    %52 = vector.load %arg4[%c0_22, %c0_23] : memref<2x784xbf16, #tpu.memory_space<vmem>>, vector<2x784xbf16>
    %53 = arith.extf %52 : vector<2x784xbf16> to vector<2x784xf32>
    %54 = arith.mulf %23, %37 : vector<2x784xf32>
    %55 = arith.mulf %53, %54 : vector<2x784xf32>
    %56 = arith.addf %51, %55 : vector<2x784xf32>
    %57 = arith.truncf %56 : vector<2x784xf32> to vector<2x784xbf16>
    %c0_24 = arith.constant 0 : index
    %c0_25 = arith.constant 0 : index
    %58 = vector.load %arg7[%c0_24, %c0_25] : memref<2x784xbf16, #tpu.memory_space<vmem>>, vector<2x784xbf16>
    tpu.vector_store %arg7[%c0_24, %c0_25], %57 {strides = array<i32>} : memref<2x784xbf16, #tpu.memory_space<vmem>>, vector<2x784xbf16>,
    return
  }
  func.func @transform_0(%arg0: i32) -> (i32, i32) {
    %c0_i32 = arith.constant 0 : i32
    %c0_i32_0 = arith.constant 0 : i32
    return %arg0, %c0_i32 : i32, i32
  }
  func.func @transform_1(%arg0: i32) -> (i32, i32) {
    %c0_i32 = arith.constant 0 : i32
    %c0_i32_0 = arith.constant 0 : i32
    return %arg0, %c0_i32 : i32, i32
  }
  func.func @transform_2(%arg0: i32) -> (i32, i32) {
    %c0_i32 = arith.constant 0 : i32
    %c0_i32_0 = arith.constant 0 : i32
    return %arg0, %c0_i32 : i32, i32
  }
  func.func @transform_3(%arg0: i32) -> (i32, i32) {
    %c0_i32 = arith.constant 0 : i32
    %c0_i32_0 = arith.constant 0 : i32
    return %arg0, %c0_i32 : i32, i32
  }
  func.func @transform_4(%arg0: i32) -> (i32, i32) {
    %c0_i32 = arith.constant 0 : i32
    %c0_i32_0 = arith.constant 0 : i32
    return %arg0, %c0_i32 : i32, i32
  }
  func.func @transform_5(%arg0: i32) -> (i32, i32) {
    %c0_i32 = arith.constant 0 : i32
    %c0_i32_0 = arith.constant 0 : i32
    return %arg0, %c0_i32 : i32, i32
  }
  func.func @transform_6(%arg0: i32) -> (i32, i32) {
    %c0_i32 = arith.constant 0 : i32
    %c0_i32_0 = arith.constant 0 : i32
    return %arg0, %c0_i32 : i32, i32
  }
}

module attributes {stable_mosaic.version = 11 : i64} {
  func.func @_conv_pool_relu_kernel(%arg0: i32, %arg1: memref<144x25xbf16, #tpu.memory_space<vmem>>, %arg2: memref<144x25xbf16, #tpu.memory_space<vmem>>, %arg3: memref<144x25xbf16, #tpu.memory_space<vmem>>, %arg4: memref<144x25xbf16, #tpu.memory_space<vmem>>, %arg5: memref<25x10xbf16, #tpu.memory_space<vmem>>, %arg6: memref<1x10xf32, #tpu.memory_space<vmem>>, %arg7: memref<144x10xbf16, #tpu.memory_space<vmem>>) attributes {dimension_semantics = [#tpu.dimension_semantics<parallel>], iteration_bounds = array<i64: 2>, scalar_prefetch = 0 : i64, scratch_operands = 0 : i64, tpu.core_type = #tpu.core_type<tc>, window_params = [{transform_indices = @transform_0, window_bounds = array<i64: 144, 25>}, {transform_indices = @transform_1, window_bounds = array<i64: 144, 25>}, {transform_indices = @transform_2, window_bounds = array<i64: 144, 25>}, {transform_indices = @transform_3, window_bounds = array<i64: 144, 25>}, {pipeline_mode = #tpu.pipeline_mode<synchronous>, transform_indices = @transform_4, window_bounds = array<i64: 25, 10>}, {pipeline_mode = #tpu.pipeline_mode<synchronous>, transform_indices = @transform_5, window_bounds = array<i64: 1, 10>}, {transform_indices = @transform_6, window_bounds = array<i64: 144, 10>}]} {
    %c0 = arith.constant 0 : index
    %c0_0 = arith.constant 0 : index
    %0 = vector.load %arg5[%c0, %c0_0] : memref<25x10xbf16, #tpu.memory_space<vmem>>, vector<25x10xbf16>
    %c0_1 = arith.constant 0 : index
    %c0_2 = arith.constant 0 : index
    %1 = vector.load %arg1[%c0_1, %c0_2] : memref<144x25xbf16, #tpu.memory_space<vmem>>, vector<144x25xbf16>
    %cst = arith.constant dense<0.000000e+00> : vector<144x10xf32>
    %2 = tpu.matmul %1, %0, %cst {dimension_numbers = #tpu.dot_dimension_numbers<[1], [0], [0], [1], [0, 0, 1, 1], [], []>} : vector<144x25xbf16>, vector<25x10xbf16>, vector<144x10xf32> -> vector<144x10xf32>
    %c0_3 = arith.constant 0 : index
    %c0_4 = arith.constant 0 : index
    %3 = vector.load %arg2[%c0_3, %c0_4] : memref<144x25xbf16, #tpu.memory_space<vmem>>, vector<144x25xbf16>
    %cst_5 = arith.constant dense<0.000000e+00> : vector<144x10xf32>
    %4 = tpu.matmul %3, %0, %cst_5 {dimension_numbers = #tpu.dot_dimension_numbers<[1], [0], [0], [1], [0, 0, 1, 1], [], []>} : vector<144x25xbf16>, vector<25x10xbf16>, vector<144x10xf32> -> vector<144x10xf32>
    %5 = arith.maximumf %2, %4 : vector<144x10xf32>
    %c0_6 = arith.constant 0 : index
    %c0_7 = arith.constant 0 : index
    %6 = vector.load %arg3[%c0_6, %c0_7] : memref<144x25xbf16, #tpu.memory_space<vmem>>, vector<144x25xbf16>
    %cst_8 = arith.constant dense<0.000000e+00> : vector<144x10xf32>
    %7 = tpu.matmul %6, %0, %cst_8 {dimension_numbers = #tpu.dot_dimension_numbers<[1], [0], [0], [1], [0, 0, 1, 1], [], []>} : vector<144x25xbf16>, vector<25x10xbf16>, vector<144x10xf32> -> vector<144x10xf32>
    %8 = arith.maximumf %5, %7 : vector<144x10xf32>
    %c0_9 = arith.constant 0 : index
    %c0_10 = arith.constant 0 : index
    %9 = vector.load %arg4[%c0_9, %c0_10] : memref<144x25xbf16, #tpu.memory_space<vmem>>, vector<144x25xbf16>
    %cst_11 = arith.constant dense<0.000000e+00> : vector<144x10xf32>
    %10 = tpu.matmul %9, %0, %cst_11 {dimension_numbers = #tpu.dot_dimension_numbers<[1], [0], [0], [1], [0, 0, 1, 1], [], []>} : vector<144x25xbf16>, vector<25x10xbf16>, vector<144x10xf32> -> vector<144x10xf32>
    %11 = arith.maximumf %8, %10 : vector<144x10xf32>
    %c0_12 = arith.constant 0 : index
    %c0_13 = arith.constant 0 : index
    %12 = vector.load %arg6[%c0_12, %c0_13] : memref<1x10xf32, #tpu.memory_space<vmem>>, vector<1x10xf32>
    %13 = vector.broadcast %12 : vector<1x10xf32> to vector<144x10xf32>
    %14 = arith.addf %11, %13 : vector<144x10xf32>
    %cst_14 = arith.constant 0.000000e+00 : f32
    %15 = vector.broadcast %cst_14 : f32 to vector<144x10xf32>
    %16 = arith.maximumf %14, %15 : vector<144x10xf32>
    %17 = arith.truncf %16 : vector<144x10xf32> to vector<144x10xbf16>
    %c0_15 = arith.constant 0 : index
    %c0_16 = arith.constant 0 : index
    %18 = vector.load %arg7[%c0_15, %c0_16] : memref<144x10xbf16, #tpu.memory_space<vmem>>, vector<144x10xbf16>
    tpu.vector_store %arg7[%c0_15, %c0_16], %17 {strides = array<i32>} : memref<144x10xbf16, #tpu.memory_space<vmem>>, vector<144x10xbf16>,
    return
  }
  func.func @transform_0(%arg0: i32) -> (i32, i32) {
    %c0_i32 = arith.constant 0 : i32
    %c0_i32_0 = arith.constant 0 : i32
    return %arg0, %c0_i32 : i32, i32
  }
  func.func @transform_1(%arg0: i32) -> (i32, i32) {
    %c0_i32 = arith.constant 0 : i32
    %c0_i32_0 = arith.constant 0 : i32
    return %arg0, %c0_i32 : i32, i32
  }
  func.func @transform_2(%arg0: i32) -> (i32, i32) {
    %c0_i32 = arith.constant 0 : i32
    %c0_i32_0 = arith.constant 0 : i32
    return %arg0, %c0_i32 : i32, i32
  }
  func.func @transform_3(%arg0: i32) -> (i32, i32) {
    %c0_i32 = arith.constant 0 : i32
    %c0_i32_0 = arith.constant 0 : i32
    return %arg0, %c0_i32 : i32, i32
  }
  func.func @transform_4(%arg0: i32) -> (i32, i32) {
    %c0_i32 = arith.constant 0 : i32
    %c0_i32_0 = arith.constant 0 : i32
    %c0_i32_1 = arith.constant 0 : i32
    return %c0_i32, %c0_i32_0 : i32, i32
  }
  func.func @transform_5(%arg0: i32) -> (i32, i32) {
    %c0_i32 = arith.constant 0 : i32
    %c0_i32_0 = arith.constant 0 : i32
    %c0_i32_1 = arith.constant 0 : i32
    return %c0_i32, %c0_i32_0 : i32, i32
  }
  func.func @transform_6(%arg0: i32) -> (i32, i32) {
    %c0_i32 = arith.constant 0 : i32
    %c0_i32_0 = arith.constant 0 : i32
    return %arg0, %c0_i32 : i32, i32
  }
}

module attributes {stable_mosaic.version = 11 : i64} {
  func.func @_conv_pool_relu_kernel(%arg0: i32, %arg1: memref<16x250xbf16, #tpu.memory_space<vmem>>, %arg2: memref<16x250xbf16, #tpu.memory_space<vmem>>, %arg3: memref<16x250xbf16, #tpu.memory_space<vmem>>, %arg4: memref<16x250xbf16, #tpu.memory_space<vmem>>, %arg5: memref<250x20xbf16, #tpu.memory_space<vmem>>, %arg6: memref<1x20xf32, #tpu.memory_space<vmem>>, %arg7: memref<16x20xbf16, #tpu.memory_space<vmem>>) attributes {dimension_semantics = [#tpu.dimension_semantics<parallel>], iteration_bounds = array<i64: 2>, scalar_prefetch = 0 : i64, scratch_operands = 0 : i64, tpu.core_type = #tpu.core_type<tc>, window_params = [{transform_indices = @transform_0, window_bounds = array<i64: 16, 250>}, {transform_indices = @transform_1, window_bounds = array<i64: 16, 250>}, {transform_indices = @transform_2, window_bounds = array<i64: 16, 250>}, {transform_indices = @transform_3, window_bounds = array<i64: 16, 250>}, {pipeline_mode = #tpu.pipeline_mode<synchronous>, transform_indices = @transform_4, window_bounds = array<i64: 250, 20>}, {pipeline_mode = #tpu.pipeline_mode<synchronous>, transform_indices = @transform_5, window_bounds = array<i64: 1, 20>}, {transform_indices = @transform_6, window_bounds = array<i64: 16, 20>}]} {
    %c0 = arith.constant 0 : index
    %c0_0 = arith.constant 0 : index
    %0 = vector.load %arg5[%c0, %c0_0] : memref<250x20xbf16, #tpu.memory_space<vmem>>, vector<250x20xbf16>
    %c0_1 = arith.constant 0 : index
    %c0_2 = arith.constant 0 : index
    %1 = vector.load %arg1[%c0_1, %c0_2] : memref<16x250xbf16, #tpu.memory_space<vmem>>, vector<16x250xbf16>
    %cst = arith.constant dense<0.000000e+00> : vector<16x20xf32>
    %2 = tpu.matmul %1, %0, %cst {dimension_numbers = #tpu.dot_dimension_numbers<[1], [0], [0], [1], [0, 0, 1, 1], [], []>} : vector<16x250xbf16>, vector<250x20xbf16>, vector<16x20xf32> -> vector<16x20xf32>
    %c0_3 = arith.constant 0 : index
    %c0_4 = arith.constant 0 : index
    %3 = vector.load %arg2[%c0_3, %c0_4] : memref<16x250xbf16, #tpu.memory_space<vmem>>, vector<16x250xbf16>
    %cst_5 = arith.constant dense<0.000000e+00> : vector<16x20xf32>
    %4 = tpu.matmul %3, %0, %cst_5 {dimension_numbers = #tpu.dot_dimension_numbers<[1], [0], [0], [1], [0, 0, 1, 1], [], []>} : vector<16x250xbf16>, vector<250x20xbf16>, vector<16x20xf32> -> vector<16x20xf32>
    %5 = arith.maximumf %2, %4 : vector<16x20xf32>
    %c0_6 = arith.constant 0 : index
    %c0_7 = arith.constant 0 : index
    %6 = vector.load %arg3[%c0_6, %c0_7] : memref<16x250xbf16, #tpu.memory_space<vmem>>, vector<16x250xbf16>
    %cst_8 = arith.constant dense<0.000000e+00> : vector<16x20xf32>
    %7 = tpu.matmul %6, %0, %cst_8 {dimension_numbers = #tpu.dot_dimension_numbers<[1], [0], [0], [1], [0, 0, 1, 1], [], []>} : vector<16x250xbf16>, vector<250x20xbf16>, vector<16x20xf32> -> vector<16x20xf32>
    %8 = arith.maximumf %5, %7 : vector<16x20xf32>
    %c0_9 = arith.constant 0 : index
    %c0_10 = arith.constant 0 : index
    %9 = vector.load %arg4[%c0_9, %c0_10] : memref<16x250xbf16, #tpu.memory_space<vmem>>, vector<16x250xbf16>
    %cst_11 = arith.constant dense<0.000000e+00> : vector<16x20xf32>
    %10 = tpu.matmul %9, %0, %cst_11 {dimension_numbers = #tpu.dot_dimension_numbers<[1], [0], [0], [1], [0, 0, 1, 1], [], []>} : vector<16x250xbf16>, vector<250x20xbf16>, vector<16x20xf32> -> vector<16x20xf32>
    %11 = arith.maximumf %8, %10 : vector<16x20xf32>
    %c0_12 = arith.constant 0 : index
    %c0_13 = arith.constant 0 : index
    %12 = vector.load %arg6[%c0_12, %c0_13] : memref<1x20xf32, #tpu.memory_space<vmem>>, vector<1x20xf32>
    %13 = vector.broadcast %12 : vector<1x20xf32> to vector<16x20xf32>
    %14 = arith.addf %11, %13 : vector<16x20xf32>
    %cst_14 = arith.constant 0.000000e+00 : f32
    %15 = vector.broadcast %cst_14 : f32 to vector<16x20xf32>
    %16 = arith.maximumf %14, %15 : vector<16x20xf32>
    %17 = arith.truncf %16 : vector<16x20xf32> to vector<16x20xbf16>
    %c0_15 = arith.constant 0 : index
    %c0_16 = arith.constant 0 : index
    %18 = vector.load %arg7[%c0_15, %c0_16] : memref<16x20xbf16, #tpu.memory_space<vmem>>, vector<16x20xbf16>
    tpu.vector_store %arg7[%c0_15, %c0_16], %17 {strides = array<i32>} : memref<16x20xbf16, #tpu.memory_space<vmem>>, vector<16x20xbf16>,
    return
  }
  func.func @transform_0(%arg0: i32) -> (i32, i32) {
    %c0_i32 = arith.constant 0 : i32
    %c0_i32_0 = arith.constant 0 : i32
    return %arg0, %c0_i32 : i32, i32
  }
  func.func @transform_1(%arg0: i32) -> (i32, i32) {
    %c0_i32 = arith.constant 0 : i32
    %c0_i32_0 = arith.constant 0 : i32
    return %arg0, %c0_i32 : i32, i32
  }
  func.func @transform_2(%arg0: i32) -> (i32, i32) {
    %c0_i32 = arith.constant 0 : i32
    %c0_i32_0 = arith.constant 0 : i32
    return %arg0, %c0_i32 : i32, i32
  }
  func.func @transform_3(%arg0: i32) -> (i32, i32) {
    %c0_i32 = arith.constant 0 : i32
    %c0_i32_0 = arith.constant 0 : i32
    return %arg0, %c0_i32 : i32, i32
  }
  func.func @transform_4(%arg0: i32) -> (i32, i32) {
    %c0_i32 = arith.constant 0 : i32
    %c0_i32_0 = arith.constant 0 : i32
    %c0_i32_1 = arith.constant 0 : i32
    return %c0_i32, %c0_i32_0 : i32, i32
  }
  func.func @transform_5(%arg0: i32) -> (i32, i32) {
    %c0_i32 = arith.constant 0 : i32
    %c0_i32_0 = arith.constant 0 : i32
    %c0_i32_1 = arith.constant 0 : i32
    return %c0_i32, %c0_i32_0 : i32, i32
  }
  func.func @transform_6(%arg0: i32) -> (i32, i32) {
    %c0_i32 = arith.constant 0 : i32
    %c0_i32_0 = arith.constant 0 : i32
    return %arg0, %c0_i32 : i32, i32
  }
}

module attributes {stable_mosaic.version = 11 : i64} {
  func.func @_mlp_kernel(%arg0: i32, %arg1: memref<2x320xbf16, #tpu.memory_space<vmem>>, %arg2: memref<320x50xbf16, #tpu.memory_space<vmem>>, %arg3: memref<1x50xf32, #tpu.memory_space<vmem>>, %arg4: memref<50x10xbf16, #tpu.memory_space<vmem>>, %arg5: memref<1x10xf32, #tpu.memory_space<vmem>>, %arg6: memref<2x10xf32, #tpu.memory_space<vmem>>) attributes {dimension_semantics = [#tpu.dimension_semantics<parallel>], iteration_bounds = array<i64: 1>, scalar_prefetch = 0 : i64, scratch_operands = 0 : i64, tpu.core_type = #tpu.core_type<tc>, window_params = [{transform_indices = @transform_0, window_bounds = array<i64: 2, 320>}, {pipeline_mode = #tpu.pipeline_mode<synchronous>, transform_indices = @transform_1, window_bounds = array<i64: 320, 50>}, {pipeline_mode = #tpu.pipeline_mode<synchronous>, transform_indices = @transform_2, window_bounds = array<i64: 1, 50>}, {pipeline_mode = #tpu.pipeline_mode<synchronous>, transform_indices = @transform_3, window_bounds = array<i64: 50, 10>}, {pipeline_mode = #tpu.pipeline_mode<synchronous>, transform_indices = @transform_4, window_bounds = array<i64: 1, 10>}, {transform_indices = @transform_5, window_bounds = array<i64: 2, 10>}]} {
    %c0 = arith.constant 0 : index
    %c0_0 = arith.constant 0 : index
    %0 = vector.load %arg1[%c0, %c0_0] : memref<2x320xbf16, #tpu.memory_space<vmem>>, vector<2x320xbf16>
    %c0_1 = arith.constant 0 : index
    %c0_2 = arith.constant 0 : index
    %1 = vector.load %arg2[%c0_1, %c0_2] : memref<320x50xbf16, #tpu.memory_space<vmem>>, vector<320x50xbf16>
    %cst = arith.constant dense<0.000000e+00> : vector<2x50xf32>
    %2 = tpu.matmul %0, %1, %cst {dimension_numbers = #tpu.dot_dimension_numbers<[1], [0], [0], [1], [0, 0, 1, 1], [], []>} : vector<2x320xbf16>, vector<320x50xbf16>, vector<2x50xf32> -> vector<2x50xf32>
    %c0_3 = arith.constant 0 : index
    %c0_4 = arith.constant 0 : index
    %3 = vector.load %arg3[%c0_3, %c0_4] : memref<1x50xf32, #tpu.memory_space<vmem>>, vector<1x50xf32>
    %4 = vector.broadcast %3 : vector<1x50xf32> to vector<2x50xf32>
    %5 = arith.addf %2, %4 : vector<2x50xf32>
    %cst_5 = arith.constant 0.000000e+00 : f32
    %6 = vector.broadcast %cst_5 : f32 to vector<2x50xf32>
    %7 = arith.maximumf %5, %6 : vector<2x50xf32>
    %8 = arith.truncf %7 : vector<2x50xf32> to vector<2x50xbf16>
    %c0_6 = arith.constant 0 : index
    %c0_7 = arith.constant 0 : index
    %9 = vector.load %arg4[%c0_6, %c0_7] : memref<50x10xbf16, #tpu.memory_space<vmem>>, vector<50x10xbf16>
    %cst_8 = arith.constant dense<0.000000e+00> : vector<2x10xf32>
    %10 = tpu.matmul %8, %9, %cst_8 {dimension_numbers = #tpu.dot_dimension_numbers<[1], [0], [0], [1], [0, 0, 1, 1], [], []>} : vector<2x50xbf16>, vector<50x10xbf16>, vector<2x10xf32> -> vector<2x10xf32>
    %c0_9 = arith.constant 0 : index
    %c0_10 = arith.constant 0 : index
    %11 = vector.load %arg5[%c0_9, %c0_10] : memref<1x10xf32, #tpu.memory_space<vmem>>, vector<1x10xf32>
    %12 = vector.broadcast %11 : vector<1x10xf32> to vector<2x10xf32>
    %13 = arith.addf %10, %12 : vector<2x10xf32>
    %cst_11 = arith.constant dense<0xFF800000> : vector<2xf32>
    %14 = vector.multi_reduction <maximumf>, %13, %cst_11 [1] : vector<2x10xf32> to vector<2xf32>
    %15 = vector.shape_cast %14 : vector<2xf32> to vector<2x1xf32>
    %16 = vector.broadcast %15 : vector<2x1xf32> to vector<2x10xf32>
    %17 = arith.subf %13, %16 : vector<2x10xf32>
    %18 = math.exp %17 : vector<2x10xf32>
    %cst_12 = arith.constant dense<0.000000e+00> : vector<2xf32>
    %19 = vector.multi_reduction <add>, %18, %cst_12 [1] : vector<2x10xf32> to vector<2xf32>
    %20 = vector.shape_cast %19 : vector<2xf32> to vector<2x1xf32>
    %21 = math.log %20 : vector<2x1xf32>
    %22 = vector.broadcast %21 : vector<2x1xf32> to vector<2x10xf32>
    %23 = arith.subf %17, %22 : vector<2x10xf32>
    %c0_13 = arith.constant 0 : index
    %c0_14 = arith.constant 0 : index
    %24 = vector.load %arg6[%c0_13, %c0_14] : memref<2x10xf32, #tpu.memory_space<vmem>>, vector<2x10xf32>
    tpu.vector_store %arg6[%c0_13, %c0_14], %23 {strides = array<i32>} : memref<2x10xf32, #tpu.memory_space<vmem>>, vector<2x10xf32>,
    return
  }
  func.func @transform_0(%arg0: i32) -> (i32, i32) {
    %c0_i32 = arith.constant 0 : i32
    %c0_i32_0 = arith.constant 0 : i32
    return %arg0, %c0_i32 : i32, i32
  }
  func.func @transform_1(%arg0: i32) -> (i32, i32) {
    %c0_i32 = arith.constant 0 : i32
    %c0_i32_0 = arith.constant 0 : i32
    %c0_i32_1 = arith.constant 0 : i32
    return %c0_i32, %c0_i32_0 : i32, i32
  }
  func.func @transform_2(%arg0: i32) -> (i32, i32) {
    %c0_i32 = arith.constant 0 : i32
    %c0_i32_0 = arith.constant 0 : i32
    %c0_i32_1 = arith.constant 0 : i32
    return %c0_i32, %c0_i32_0 : i32, i32
  }
  func.func @transform_3(%arg0: i32) -> (i32, i32) {
    %c0_i32 = arith.constant 0 : i32
    %c0_i32_0 = arith.constant 0 : i32
    %c0_i32_1 = arith.constant 0 : i32
    return %c0_i32, %c0_i32_0 : i32, i32
  }
  func.func @transform_4(%arg0: i32) -> (i32, i32) {
    %c0_i32 = arith.constant 0 : i32
    %c0_i32_0 = arith.constant 0 : i32
    %c0_i32_1 = arith.constant 0 : i32
    return %c0_i32, %c0_i32_0 : i32, i32
  }
  func.func @transform_5(%arg0: i32) -> (i32, i32) {
    %c0_i32 = arith.constant 0 : i32
    %c0_i32_0 = arith.constant 0 : i32
    return %arg0, %c0_i32 : i32, i32
  }
}

</mosaic_0001>

<llo_original>
// kernel: forward.7
$region0: #{forward.7}
  #allocation0 [shape = 'u32[]', space=smem, size = 0x4, offset = 0x4, fixed_abs, tag = 'smem constant byte address 0x4 - core index']
  #allocation1 [shape = 'u32[144,128]{1,0:T(1,128)}', space=vmem, size = 0x12000, scoped, tag = 'internal scratch']
  %s0 = inlined_call_operand.vmem [shape: bf16[242,49], index: 0, kind: input, shape index: {}]
  %s1 = inlined_call_operand.vmem [shape: bf16[242,49], index: 1, kind: input, shape index: {}]
  %s2 = inlined_call_operand.vmem [shape: bf16[242,49], index: 2, kind: input, shape index: {}]
  %s3 = inlined_call_operand.vmem [shape: bf16[242,49], index: 3, kind: input, shape index: {}]
  %s4 = inlined_call_operand.vmem [shape: bf16[49,8], index: 4, kind: input, shape index: {}]
  %s5 = inlined_call_operand.vmem [shape: f32[1,8], index: 5, kind: input, shape index: {}]
  %s6 = inlined_call_operand.vmem [shape: bf16[242,8], index: 6, kind: output, shape index: {}]
  %s7 = sld [smem:[#allocation0]]
  $region101: #{forward.7} parent=0
    _
  %s9 = ssub.s32 1, %s7
  %s10 = scalar_select 0, %s9, %s7
  $region1: #{forward.7} parent=0
    #allocation2 [shape = 'u8[65536]{0}', space=vmem, size = 0x10000, scoped, tag = 'output window, operand 0']
    loop: start=0, step=1, limit=4
    $region2: #{forward.7} parent=1 // loop_pre_header
      _
    $region3: #{forward.7} parent=1 // loop_header
      %s12 = sphi 0, %s16
      %p13 = scmp.ge.s32.totalorder %s12, 4
      %s22 = sphi 0, %s24
      %s25 = sphi 0, %s22
      %s26 = sphi 0, %s25
      %s42 = sphi 0, %s26
      %s48 = sphi 0, %s50
      %s51 = sphi 0, %s48
      %s52 = sphi 0, %s51
      %s68 = sphi 0, %s52
      %s74 = sphi 0, %s76
      %s77 = sphi 0, %s74
      %s78 = sphi 0, %s77
      %s94 = sphi 0, %s78
      %s100 = sphi 0, %s102
      %s103 = sphi 0, %s100
      %s104 = sphi 0, %s103
      %s120 = sphi 0, %s104
      %s124 = sphi 0, %s124
      %s126 = sphi 0, %s124
      %s127 = sphi 0, %s126
      %s141 = sphi 0, %s127
      %s145 = sphi 0, %s145
      %s147 = sphi 0, %s145
      %s148 = sphi 0, %s147
      %s162 = sphi 0, %s148
      %s168 = sphi 0, %s170
      %s171 = sphi 0, %s168
      %s172 = sphi 0, %s171
      %s188 = sphi 0, %s172
    $region4: #{forward.7} parent=1 // loop_header_branch
      %15 = sbr.rel (%p13) target = $region8
    $region5: #{forward.7} parent=1 // loop_body
      %s17 = ssub.s32 %s12, 1
      %s18 = ssub.s32 %s12, 2
      %s19 = sadd.s32 %s12, 1
      %s20 = ssub.s32 %s12, %s19
      %p21 = scmp.eq.s32.totalorder %s20, 0
      %s23 = sadd.s32 %s22, 1
      %s24 = scalar_select %p21, %s22, %s23
      %p27 = pneg %p21
      %p28 = scmp.eq.s32.totalorder %s12, 1
      %p29 = por %p27, %p28
      %p30 = scmp.ne.s32.totalorder %s22, %s25
      %p31 = scmp.eq.s32.totalorder %s12, 0
      %p32 = por %p30, %p31
      %p33 = scmp.ne.s32.totalorder %s22, %s25
      %p34 = scmp.eq.s32.totalorder %s17, 1
      %p35 = por %p33, %p34
      %p36 = scmp.ne.s32.totalorder %s25, %s26
      %p37 = scmp.eq.s32.totalorder %s17, 0
      %p38 = por %p36, %p37
      %p39 = scmp.ne.s32.totalorder %s25, %s26
      %p40 = scmp.eq.s32.totalorder %s18, 1
      %p41 = por %p39, %p40
      %p43 = scmp.ne.s32.totalorder %s26, %s42
      %p44 = scmp.eq.s32.totalorder %s18, 0
      %p45 = por %p43, %p44
      %s46 = ssub.s32 %s12, %s19
      %p47 = scmp.eq.s32.totalorder %s46, 0
      %s49 = sadd.s32 %s48, 1
      %s50 = scalar_select %p47, %s48, %s49
      %p53 = pneg %p47
      %p54 = scmp.eq.s32.totalorder %s12, 1
      %p55 = por %p53, %p54
      %p56 = scmp.ne.s32.totalorder %s48, %s51
      %p57 = scmp.eq.s32.totalorder %s12, 0
      %p58 = por %p56, %p57
      %p59 = scmp.ne.s32.totalorder %s48, %s51
      %p60 = scmp.eq.s32.totalorder %s17, 1
      %p61 = por %p59, %p60
      %p62 = scmp.ne.s32.totalorder %s51, %s52
      %p63 = scmp.eq.s32.totalorder %s17, 0
      %p64 = por %p62, %p63
      %p65 = scmp.ne.s32.totalorder %s51, %s52
      %p66 = scmp.eq.s32.totalorder %s18, 1
      %p67 = por %p65, %p66
      %p69 = scmp.ne.s32.totalorder %s52, %s68
      %p70 = scmp.eq.s32.totalorder %s18, 0
      %p71 = por %p69, %p70
      %s72 = ssub.s32 %s12, %s19
      %p73 = scmp.eq.s32.totalorder %s72, 0
      %s75 = sadd.s32 %s74, 1
      %s76 = scalar_select %p73, %s74, %s75
      %p79 = pneg %p73
      %p80 = scmp.eq.s32.totalorder %s12, 1
      %p81 = por %p79, %p80
      %p82 = scmp.ne.s32.totalorder %s74, %s77
      %p83 = scmp.eq.s32.totalorder %s12, 0
      %p84 = por %p82, %p83
      %p85 = scmp.ne.s32.totalorder %s74, %s77
      %p86 = scmp.eq.s32.totalorder %s17, 1
      %p87 = por %p85, %p86
      %p88 = scmp.ne.s32.totalorder %s77, %s78
      %p89 = scmp.eq.s32.totalorder %s17, 0
      %p90 = por %p88, %p89
      %p91 = scmp.ne.s32.totalorder %s77, %s78
      %p92 = scmp.eq.s32.totalorder %s18, 1
      %p93 = por %p91, %p92
      %p95 = scmp.ne.s32.totalorder %s78, %s94
      %p96 = scmp.eq.s32.totalorder %s18, 0
      %p97 = por %p95, %p96
      %s98 = ssub.s32 %s12, %s19
      %p99 = scmp.eq.s32.totalorder %s98, 0
      %s101 = sadd.s32 %s100, 1
      %s102 = scalar_select %p99, %s100, %s101
      %p105 = pneg %p99
      %p106 = scmp.eq.s32.totalorder %s12, 1
      %p107 = por %p105, %p106
      %p108 = scmp.ne.s32.totalorder %s100, %s103
      %p109 = scmp.eq.s32.totalorder %s12, 0
      %p110 = por %p108, %p109
      %p111 = scmp.ne.s32.totalorder %s100, %s103
      %p112 = scmp.eq.s32.totalorder %s17, 1
      %p113 = por %p111, %p112
      %p114 = scmp.ne.s32.totalorder %s103, %s104
      %p115 = scmp.eq.s32.totalorder %s17, 0
      %p116 = por %p114, %p115
      %p117 = scmp.ne.s32.totalorder %s103, %s104
      %p118 = scmp.eq.s32.totalorder %s18, 1
      %p119 = por %p117, %p118
      %p121 = scmp.ne.s32.totalorder %s104, %s120
      %p122 = scmp.eq.s32.totalorder %s18, 0
      %p123 = por %p121, %p122
      %s125 = sadd.s32 %s124, 1
      %p128 = scmp.eq.s32.totalorder %s12, 1
      %p129 = scmp.ne.s32.totalorder %s124, %s126
      %p130 = scmp.eq.s32.totalorder %s12, 0
      %p131 = por %p129, %p130
      %p132 = scmp.ne.s32.totalorder %s124, %s126
      %p133 = scmp.eq.s32.totalorder %s17, 1
      %p134 = por %p132, %p133
      %p135 = scmp.ne.s32.totalorder %s126, %s127
      %p136 = scmp.eq.s32.totalorder %s17, 0
      %p137 = por %p135, %p136
      %p138 = scmp.ne.s32.totalorder %s126, %s127
      %p139 = scmp.eq.s32.totalorder %s18, 1
      %p140 = por %p138, %p139
      %p142 = scmp.ne.s32.totalorder %s127, %s141
      %p143 = scmp.eq.s32.totalorder %s18, 0
      %p144 = por %p142, %p143
      %s146 = sadd.s32 %s145, 1
      %p149 = scmp.eq.s32.totalorder %s12, 1
      %p150 = scmp.ne.s32.totalorder %s145, %s147
      %p151 = scmp.eq.s32.totalorder %s12, 0
      %p152 = por %p150, %p151
      %p153 = scmp.ne.s32.totalorder %s145, %s147
      %p154 = scmp.eq.s32.totalorder %s17, 1
      %p155 = por %p153, %p154
      %p156 = scmp.ne.s32.totalorder %s147, %s148
      %p157 = scmp.eq.s32.totalorder %s17, 0
      %p158 = por %p156, %p157
      %p159 = scmp.ne.s32.totalorder %s147, %s148
      %p160 = scmp.eq.s32.totalorder %s18, 1
      %p161 = por %p159, %p160
      %p163 = scmp.ne.s32.totalorder %s148, %s162
      %p164 = scmp.eq.s32.totalorder %s18, 0
      %p165 = por %p163, %p164
      %s166 = ssub.s32 %s12, %s19
      %p167 = scmp.eq.s32.totalorder %s166, 0
      %s169 = sadd.s32 %s168, 1
      %s170 = scalar_select %p167, %s168, %s169
      %p173 = pneg %p167
      %p174 = scmp.eq.s32.totalorder %s12, 1
      %p175 = por %p173, %p174
      %p176 = scmp.ne.s32.totalorder %s168, %s171
      %p177 = scmp.eq.s32.totalorder %s12, 0
      %p178 = por %p176, %p177
      %p179 = scmp.ne.s32.totalorder %s168, %s171
      %p180 = scmp.eq.s32.totalorder %s17, 1
      %p181 = por %p179, %p180
      %p182 = scmp.ne.s32.totalorder %s171, %s172
      %p183 = scmp.eq.s32.totalorder %s17, 0
      %p184 = por %p182, %p183
      %p185 = scmp.ne.s32.totalorder %s171, %s172
      %p186 = scmp.eq.s32.totalorder %s18, 1
      %p187 = por %p185, %p186
      %p189 = scmp.ne.s32.totalorder %s172, %s188
      %p190 = scmp.eq.s32.totalorder %s18, 0
      %p191 = por %p189, %p190
      %p192 = scmp.le.s32.totalorder 1, %s12
      %p193 = scmp.lt.s32.totalorder %s12, 3
      %p194 = pnand %p192, %p193
      %p195 = pneg %p194
      // Predicated region
      $region9: #{forward.7} parent=5 // pred_check
        _
      $region10: #{forward.7} parent=5 // pred_check_branch
        %197 = sbr.rel (%p194) target = $region12
      $region11: #{forward.7} parent=5 // pred_region
        %s198 = ssub.s32 %s12, 1
        // Predicated region
        $region13: #{forward.7} parent=11 // pred_check
          %p199 = pneg %p137
        $region14: #{forward.7} parent=11 // pred_check_branch
          %201 = sbr.rel (%p199) target = $region16
        $region15: #{forward.7} parent=11 // pred_region
          _
        $region16: #{forward.7} parent=11 // pred_fallthru
          _
        // Predicated region
        $region17: #{forward.7} parent=11 // pred_check
          %p202 = pneg %p158
        $region18: #{forward.7} parent=11 // pred_check_branch
          %204 = sbr.rel (%p202) target = $region20
        $region19: #{forward.7} parent=11 // pred_region
          _
        $region20: #{forward.7} parent=11 // pred_fallthru
          _
      $region12: #{forward.7} parent=5 // pred_fallthru
        _
      %p205 = scmp.lt.s32.totalorder %s12, 2
      // Predicated region
      $region21: #{forward.7} parent=5 // pred_check
        %p206 = pneg %p205
      $region22: #{forward.7} parent=5 // pred_check_branch
        %208 = sbr.rel (%p206) target = $region24
      $region23: #{forward.7} parent=5 // pred_region
        // Predicated region
        $region25: #{forward.7} parent=23 // pred_check
          %p209 = pneg %p32
        $region26: #{forward.7} parent=23 // pred_check_branch
          %211 = sbr.rel (%p209) target = $region28
        $region27: #{forward.7} parent=23 // pred_region
          %s212 = smul.u32 16, %s12
          %s213 = ssub.s32 31, %s212
          %p214 = scmp.lt.s32.totalorder %s213, 16
          %s215 = scalar_select %p214, %s213, 16
          %s216 = smul.u32 64, %s215
          %p217 = scmp.lt.s32.totalorder %s212, 30
          %s218 = scalar_select %p217, %s212, 30
          %s219 = smul.addr %s218, 4
          %s220 = scalar_lea.vmem %s0, %s219
          %s221 = smul.u32 16, %s12
          %s222 = ssub.s32 31, %s221
          %p223 = scmp.lt.s32.totalorder %s222, 16
          %s224 = scalar_select %p223, %s222, 16
          %s225 = smul.u32 64, %s224
        $region28: #{forward.7} parent=23 // pred_fallthru
          _
        // Predicated region
        $region29: #{forward.7} parent=23 // pred_check
          %p226 = pneg %p58
        $region30: #{forward.7} parent=23 // pred_check_branch
          %228 = sbr.rel (%p226) target = $region32
        $region31: #{forward.7} parent=23 // pred_region
          %s229 = smul.u32 16, %s12
          %s230 = ssub.s32 31, %s229
          %p231 = scmp.lt.s32.totalorder %s230, 16
          %s232 = scalar_select %p231, %s230, 16
          %s233 = smul.u32 64, %s232
          %p234 = scmp.lt.s32.totalorder %s229, 30
          %s235 = scalar_select %p234, %s229, 30
          %s236 = smul.addr %s235, 4
          %s237 = scalar_lea.vmem %s1, %s236
          %s238 = smul.u32 16, %s12
          %s239 = ssub.s32 31, %s238
          %p240 = scmp.lt.s32.totalorder %s239, 16
          %s241 = scalar_select %p240, %s239, 16
          %s242 = smul.u32 64, %s241
        $region32: #{forward.7} parent=23 // pred_fallthru
          _
        // Predicated region
        $region33: #{forward.7} parent=23 // pred_check
          %p243 = pneg %p84
        $region34: #{forward.7} parent=23 // pred_check_branch
          %245 = sbr.rel (%p243) target = $region36
        $region35: #{forward.7} parent=23 // pred_region
          %s246 = smul.u32 16, %s12
          %s247 = ssub.s32 31, %s246
          %p248 = scmp.lt.s32.totalorder %s247, 16
          %s249 = scalar_select %p248, %s247, 16
          %s250 = smul.u32 64, %s249
          %p251 = scmp.lt.s32.totalorder %s246, 30
          %s252 = scalar_select %p251, %s246, 30
          %s253 = smul.addr %s252, 4
          %s254 = scalar_lea.vmem %s2, %s253
          %s255 = smul.u32 16, %s12
          %s256 = ssub.s32 31, %s255
          %p257 = scmp.lt.s32.totalorder %s256, 16
          %s258 = scalar_select %p257, %s256, 16
          %s259 = smul.u32 64, %s258
        $region36: #{forward.7} parent=23 // pred_fallthru
          _
        // Predicated region
        $region37: #{forward.7} parent=23 // pred_check
          %p260 = pneg %p110
        $region38: #{forward.7} parent=23 // pred_check_branch
          %262 = sbr.rel (%p260) target = $region40
        $region39: #{forward.7} parent=23 // pred_region
          %s263 = smul.u32 16, %s12
          %s264 = ssub.s32 31, %s263
          %p265 = scmp.lt.s32.totalorder %s264, 16
          %s266 = scalar_select %p265, %s264, 16
          %s267 = smul.u32 64, %s266
          %p268 = scmp.lt.s32.totalorder %s263, 30
          %s269 = scalar_select %p268, %s263, 30
          %s270 = smul.addr %s269, 4
          %s271 = scalar_lea.vmem %s3, %s270
          %s272 = smul.u32 16, %s12
          %s273 = ssub.s32 31, %s272
          %p274 = scmp.lt.s32.totalorder %s273, 16
          %s275 = scalar_select %p274, %s273, 16
          %s276 = smul.u32 64, %s275
        $region40: #{forward.7} parent=23 // pred_fallthru
          _
      $region24: #{forward.7} parent=5 // pred_fallthru
        _
      %p277 = scmp.le.s32.totalorder 1, %s12
      %p278 = scmp.lt.s32.totalorder %s12, 3
      %p279 = pnand %p277, %p278
      %p280 = pneg %p279
      // Predicated region
      $region41: #{forward.7} parent=5 // pred_check
        _
      $region42: #{forward.7} parent=5 // pred_check_branch
        %282 = sbr.rel (%p279) target = $region44
      $region43: #{forward.7} parent=5 // pred_region
        %s283 = ssub.s32 %s12, 1
        %s284 = smul.u32 16, %s17
        %s285 = ssub.s32 31, %s284
        %p286 = scmp.lt.s32.totalorder %s285, 16
        %s287 = scalar_select %p286, %s285, 16
        %s288 = smul.u32 64, %s287
        %p289 = scmp.lt.s32.totalorder %s284, 30
        %s290 = scalar_select %p289, %s284, 30
        %s291 = smul.addr %s290, 4
        %s292 = scalar_lea.vmem %s0, %s291
        %p293 = pneg %p38
        %p294 = pneg %p35
        %s295 = smul.u32 16, %s17
        %s296 = ssub.s32 31, %s295
        %p297 = scmp.lt.s32.totalorder %s296, 16
        %s298 = scalar_select %p297, %s296, 16
        %s299 = smul.u32 64, %s298
        %p300 = scmp.lt.s32.totalorder %s295, 30
        %s301 = scalar_select %p300, %s295, 30
        %s302 = smul.addr %s301, 4
        %s303 = scalar_lea.vmem %s1, %s302
        %p304 = pneg %p64
        %p305 = pneg %p61
        %s306 = smul.u32 16, %s17
        %s307 = ssub.s32 31, %s306
        %p308 = scmp.lt.s32.totalorder %s307, 16
        %s309 = scalar_select %p308, %s307, 16
        %s310 = smul.u32 64, %s309
        %p311 = scmp.lt.s32.totalorder %s306, 30
        %s312 = scalar_select %p311, %s306, 30
        %s313 = smul.addr %s312, 4
        %s314 = scalar_lea.vmem %s2, %s313
        %p315 = pneg %p90
        %p316 = pneg %p87
        %s317 = smul.u32 16, %s17
        %s318 = ssub.s32 31, %s317
        %p319 = scmp.lt.s32.totalorder %s318, 16
        %s320 = scalar_select %p319, %s318, 16
        %s321 = smul.u32 64, %s320
        %p322 = scmp.lt.s32.totalorder %s317, 30
        %s323 = scalar_select %p322, %s317, 30
        %s324 = smul.addr %s323, 4
        %s325 = scalar_lea.vmem %s3, %s324
        %p326 = pneg %p116
        %p327 = pneg %p113
        %p328 = pneg %p137
        %p329 = pneg %p134
        %p330 = pneg %p158
        %p331 = pneg %p155
        %p332 = pneg %p184
        %p333 = pneg %p181
        %s334 = sand.u32 %s171, 1
        %s335 = sand.u32 %s171, 1
        %s336 = smul.addr %s335, 64
        %s337 = scalar_lea.vmem [#allocation2], %s336
        %s338 = smul.u32 16, %s17
        %s339 = ssub.s32 31, %s338
        %p340 = scmp.lt.s32.totalorder %s339, 16
        %s341 = scalar_select %p340, %s339, 16
        %s342 = smul.u32 64, %s341
        %p343 = scmp.lt.s32.totalorder %s338, 30
        %s344 = scalar_select %p343, %s338, 30
        %s345 = smul.addr %s344, 4
        %s346 = scalar_lea.vmem %s0, %s345
        %s347 = smul.u32 16, %s17
        %s348 = ssub.s32 31, %s347
        %p349 = scmp.lt.s32.totalorder %s348, 16
        %s350 = scalar_select %p349, %s348, 16
        %s351 = smul.u32 64, %s350
        %s352 = smul.u32 16, %s17
        %s353 = ssub.s32 31, %s352
        %p354 = scmp.lt.s32.totalorder %s353, 16
        %s355 = scalar_select %p354, %s353, 16
        %s356 = smul.u32 64, %s355
        %p357 = scmp.lt.s32.totalorder %s352, 30
        %s358 = scalar_select %p357, %s352, 30
        %s359 = smul.addr %s358, 4
        %s360 = scalar_lea.vmem %s1, %s359
        %s361 = smul.u32 16, %s17
        %s362 = ssub.s32 31, %s361
        %p363 = scmp.lt.s32.totalorder %s362, 16
        %s364 = scalar_select %p363, %s362, 16
        %s365 = smul.u32 64, %s364
        %s366 = smul.u32 16, %s17
        %s367 = ssub.s32 31, %s366
        %p368 = scmp.lt.s32.totalorder %s367, 16
        %s369 = scalar_select %p368, %s367, 16
        %s370 = smul.u32 64, %s369
        %p371 = scmp.lt.s32.totalorder %s366, 30
        %s372 = scalar_select %p371, %s366, 30
        %s373 = smul.addr %s372, 4
        %s374 = scalar_lea.vmem %s2, %s373
        %s375 = smul.u32 16, %s17
        %s376 = ssub.s32 31, %s375
        %p377 = scmp.lt.s32.totalorder %s376, 16
        %s378 = scalar_select %p377, %s376, 16
        %s379 = smul.u32 64, %s378
        %s380 = smul.u32 16, %s17
        %s381 = ssub.s32 31, %s380
        %p382 = scmp.lt.s32.totalorder %s381, 16
        %s383 = scalar_select %p382, %s381, 16
        %s384 = smul.u32 64, %s383
        %p385 = scmp.lt.s32.totalorder %s380, 30
        %s386 = scalar_select %p385, %s380, 30
        %s387 = smul.addr %s386, 4
        %s388 = scalar_lea.vmem %s3, %s387
        %s389 = smul.u32 16, %s17
        %s390 = ssub.s32 31, %s389
        %p391 = scmp.lt.s32.totalorder %s390, 16
        %s392 = scalar_select %p391, %s390, 16
        %s393 = smul.u32 64, %s392
        %s394 = smul.u32 16, %s17
        %s395 = ssub.s32 31, %s394
        %p396 = scmp.lt.s32.totalorder %s395, 16
        %s397 = scalar_select %p396, %s395, 16
        %s398 = smul.u32 64, %s397
        %v400 = vld [vmem:[%s4] sm:$0xf]
        %v401 = vld [vmem:[%s4 + $0x4] sm:$0xf]
        %v402 = vld [vmem:[%s4 + $0x8] sm:$0xf]
        %v403 = vld [vmem:[%s4 + $0xc] sm:$0xf]
        %v404 = vld [vmem:[%s4 + $0x10] sm:$0xf]
        %v405 = vld [vmem:[%s4 + $0x14] sm:$0xf]
        %v406 = vld [vmem:[%s4 + $0x18] sm:$0x1]
        %v407 = vld [vmem:[%s346] sm:$0xf]
        %v408 = vld [vmem:[%s346 + $0x4] sm:$0xf]
        %v409 = vld [vmem:[%s346 + $0x8] sm:$0xf]
        %v410 = vld [vmem:[%s346 + $0xc] sm:$0xf]
        %v411 = vld [vmem:[%s346 + $0x10] sm:$0xf]
        %v412 = vld [vmem:[%s346 + $0x14] sm:$0xf]
        %v413 = vld [vmem:[%s346 + $0x18] sm:$0xf]
        %v414 = vld [vmem:[%s346 + $0x1c] sm:$0xf]
        %v415 = vld [vmem:[%s346 + $0x20] sm:$0xf]
        %v416 = vld [vmem:[%s346 + $0x24] sm:$0xf]
        %v417 = vld [vmem:[%s346 + $0x28] sm:$0xf]
        %v418 = vld [vmem:[%s346 + $0x2c] sm:$0xf]
        %v419 = vld [vmem:[%s346 + $0x30] sm:$0xf]
        %v420 = vld [vmem:[%s346 + $0x34] sm:$0xf]
        %v421 = vld [vmem:[%s346 + $0x38] sm:$0xf]
        %v422 = vld [vmem:[%s346 + $0x3c] sm:$0xf]
        %v439 = vunpack.c.l.b16 %v407
        %v440 = vunpack.c.l.b16 %v408
        %v441 = vunpack.c.l.b16 %v409
        %v442 = vunpack.c.l.b16 %v410
        %v443 = vunpack.c.l.b16 %v411
        %v444 = vunpack.c.l.b16 %v412
        %v445 = vunpack.c.l.b16 %v413
        %v446 = vunpack.c.l.b16 %v414
        %v447 = vunpack.c.l.b16 %v415
        %v448 = vunpack.c.l.b16 %v416
        %v449 = vunpack.c.l.b16 %v417
        %v450 = vunpack.c.l.b16 %v418
        %v451 = vunpack.c.l.b16 %v419
        %v452 = vunpack.c.l.b16 %v420
        %v453 = vunpack.c.l.b16 %v421
        %v454 = vunpack.c.l.b16 %v422
        %v455 = vpack.c.b16 %v440, %v439
        %v456 = vpack.c.b16 %v442, %v441
        %v457 = vpack.c.b16 %v444, %v443
        %v458 = vpack.c.b16 %v446, %v445
        %v459 = vpack.c.b16 %v448, %v447
        %v460 = vpack.c.b16 %v450, %v449
        %v461 = vpack.c.b16 %v452, %v451
        %v462 = vpack.c.b16 %v454, %v453
        %v470 = vunpack.c.l.b16 %v400
        %v471 = vunpack.c.l.b16 %v401
        %v472 = vunpack.c.l.b16 %v402
        %v473 = vunpack.c.l.b16 %v403
        %v474 = vunpack.c.l.b16 %v404
        %v475 = vunpack.c.l.b16 %v405
        %v476 = vunpack.c.l.b16 %v406
        %v477 = vpack.c.b16 %v471, %v470
        %v478 = vpack.c.b16 %v473, %v472
        %v479 = vpack.c.b16 %v475, %v474
        %v480 = vpack.c.b16 %v476, %v476
        %vm484 = vcmask 400384
        %v486 = vsel %vm484, %v455, 0
        %v489 = vsel %vm484, %v456, 0
        %v492 = vsel %vm484, %v457, 0
        %v495 = vsel %vm484, %v458, 0
        %v498 = vsel %vm484, %v459, 0
        %v501 = vsel %vm484, %v460, 0
        %v504 = vsel %vm484, %v461, 0
        %v507 = vsel %vm484, %v462, 0
        %vm509 = vcmask 1040384
        %v510 = vsel 0, 4294967295, 65535
        %v511 = vsel %vm509, %v510, 0
        %v513 = vand.u32 %v480, %v511
        %515 = vmatprep.subr.bf16.mxu0 0
        %516 = vmatpush1.bf16.msra.mxu0 0
        %517 = vmatprep.subr.bf16.mxu0 0
        %518 = vmatpush1.bf16.msra.mxu0 0
        %519 = vmatprep.subr.bf16.mxu0 0
        %520 = vmatpush1.bf16.msra.mxu0 0
        %521 = vmatprep.subr.bf16.mxu0 0
        %522 = vmatpush1.bf16.msra.mxu0 0
        %523 = vmatprep.subr.bf16.mxu0 0
        %524 = vmatpush1.bf16.msra.mxu0 %v513
        %525 = vmatprep.subr.bf16.mxu0 0
        %526 = vmatpush1.bf16.msra.mxu0 %v479
        %527 = vmatprep.subr.bf16.mxu0 0
        %528 = vmatpush1.bf16.msra.mxu0 %v478
        %529 = vmatprep.subr.bf16.mxu0 0
        %530 = vmatpush1.bf16.msra.mxu0 %v477
        %531 = vmatprep.subr.bf16.mxu0 0
        %532 = vmatpush2.bf16.msra.mxu0 0
        %533 = vmatprep.subr.bf16.mxu0 0
        %534 = vmatpush2.bf16.msra.mxu0 0
        %535 = vmatprep.subr.bf16.mxu0 0
        %536 = vmatpush2.bf16.msra.mxu0 0
        %537 = vmatprep.subr.bf16.mxu0 0
        %538 = vmatpush2.bf16.msra.mxu0 0
        %539 = vmatprep.subr.bf16.mxu0 0
        %540 = vmatpush2.bf16.msra.mxu0 0
        %541 = vmatprep.subr.bf16.mxu0 0
        %542 = vmatpush2.bf16.msra.mxu0 0
        %543 = vmatprep.subr.bf16.mxu0 0
        %544 = vmatpush2.bf16.msra.mxu0 0
        %545 = vmatprep.subr.bf16.mxu0 0
        %546 = vmatpush2.bf16.msra.mxu0 0
        %547 = vmatprep.mubr.bf16.mxu0 0
        %548 = vmatmul.mubr.bf16.gmra.mxu0 %v486
        %v549 = vpop.f32.mrf.mxu0
        %v550 = vadd.f32 0.0, %v549
        %v551 = vpop.f32.mrf.mxu0
        %v552 = vpop.f32.mrf.mxu0
        %v553 = vadd.f32 0.0, %v552
        %v554 = vpop.f32.mrf.mxu0
        %555 = vmatprep.mubr.bf16.mxu0 0
        %556 = vmatmul.mubr.bf16.gmra.mxu0 %v489
        %v557 = vpop.f32.mrf.mxu0
        %v558 = vadd.f32 0.0, %v557
        %v559 = vpop.f32.mrf.mxu0
        %v560 = vpop.f32.mrf.mxu0
        %v561 = vadd.f32 0.0, %v560
        %v562 = vpop.f32.mrf.mxu0
        %563 = vmatprep.mubr.bf16.mxu0 0
        %564 = vmatmul.mubr.bf16.gmra.mxu0 %v492
        %v565 = vpop.f32.mrf.mxu0
        %v566 = vadd.f32 0.0, %v565
        %v567 = vpop.f32.mrf.mxu0
        %v568 = vpop.f32.mrf.mxu0
        %v569 = vadd.f32 0.0, %v568
        %v570 = vpop.f32.mrf.mxu0
        %571 = vmatprep.mubr.bf16.mxu0 0
        %572 = vmatmul.mubr.bf16.gmra.mxu0 %v495
        %v573 = vpop.f32.mrf.mxu0
        %v574 = vadd.f32 0.0, %v573
        %v575 = vpop.f32.mrf.mxu0
        %v576 = vpop.f32.mrf.mxu0
        %v577 = vadd.f32 0.0, %v576
        %v578 = vpop.f32.mrf.mxu0
        %579 = vmatprep.mubr.bf16.mxu0 0
        %580 = vmatmul.mubr.bf16.gmra.mxu0 %v498
        %v581 = vpop.f32.mrf.mxu0
        %v582 = vadd.f32 0.0, %v581
        %v583 = vpop.f32.mrf.mxu0
        %v584 = vpop.f32.mrf.mxu0
        %v585 = vadd.f32 0.0, %v584
        %v586 = vpop.f32.mrf.mxu0
        %587 = vmatprep.mubr.bf16.mxu0 0
        %588 = vmatmul.mubr.bf16.gmra.mxu0 %v501
        %v589 = vpop.f32.mrf.mxu0
        %v590 = vadd.f32 0.0, %v589
        %v591 = vpop.f32.mrf.mxu0
        %v592 = vpop.f32.mrf.mxu0
        %v593 = vadd.f32 0.0, %v592
        %v594 = vpop.f32.mrf.mxu0
        %595 = vmatprep.mubr.bf16.mxu0 0
        %596 = vmatmul.mubr.bf16.gmra.mxu0 %v504
        %v597 = vpop.f32.mrf.mxu0
        %v598 = vadd.f32 0.0, %v597
        %v599 = vpop.f32.mrf.mxu0
        %v600 = vpop.f32.mrf.mxu0
        %v601 = vadd.f32 0.0, %v600
        %v602 = vpop.f32.mrf.mxu0
        %603 = vmatprep.mubr.bf16.mxu0 0
        %604 = vmatmul.mubr.bf16.gmra.mxu0 %v507
        %v605 = vpop.f32.mrf.mxu0
        %v606 = vadd.f32 0.0, %v605
        %v607 = vpop.f32.mrf.mxu0
        %v608 = vpop.f32.mrf.mxu0
        %v609 = vadd.f32 0.0, %v608
        %v610 = vpop.f32.mrf.mxu0
        %611 = vdwg.mxu0
        %v612 = vld [vmem:[%s360] sm:$0xf]
        %v613 = vld [vmem:[%s360 + $0x4] sm:$0xf]
        %v614 = vld [vmem:[%s360 + $0x8] sm:$0xf]
        %v615 = vld [vmem:[%s360 + $0xc] sm:$0xf]
        %v616 = vld [vmem:[%s360 + $0x10] sm:$0xf]
        %v617 = vld [vmem:[%s360 + $0x14] sm:$0xf]
        %v618 = vld [vmem:[%s360 + $0x18] sm:$0xf]
        %v619 = vld [vmem:[%s360 + $0x1c] sm:$0xf]
        %v620 = vld [vmem:[%s360 + $0x20] sm:$0xf]
        %v621 = vld [vmem:[%s360 + $0x24] sm:$0xf]
        %v622 = vld [vmem:[%s360 + $0x28] sm:$0xf]
        %v623 = vld [vmem:[%s360 + $0x2c] sm:$0xf]
        %v624 = vld [vmem:[%s360 + $0x30] sm:$0xf]
        %v625 = vld [vmem:[%s360 + $0x34] sm:$0xf]
        %v626 = vld [vmem:[%s360 + $0x38] sm:$0xf]
        %v627 = vld [vmem:[%s360 + $0x3c] sm:$0xf]
        %v644 = vunpack.c.l.b16 %v612
        %v645 = vunpack.c.l.b16 %v613
        %v646 = vunpack.c.l.b16 %v614
        %v647 = vunpack.c.l.b16 %v615
        %v648 = vunpack.c.l.b16 %v616
        %v649 = vunpack.c.l.b16 %v617
        %v650 = vunpack.c.l.b16 %v618
        %v651 = vunpack.c.l.b16 %v619
        %v652 = vunpack.c.l.b16 %v620
        %v653 = vunpack.c.l.b16 %v621
        %v654 = vunpack.c.l.b16 %v622
        %v655 = vunpack.c.l.b16 %v623
        %v656 = vunpack.c.l.b16 %v624
        %v657 = vunpack.c.l.b16 %v625
        %v658 = vunpack.c.l.b16 %v626
        %v659 = vunpack.c.l.b16 %v627
        %v660 = vpack.c.b16 %v645, %v644
        %v661 = vpack.c.b16 %v647, %v646
        %v662 = vpack.c.b16 %v649, %v648
        %v663 = vpack.c.b16 %v651, %v650
        %v664 = vpack.c.b16 %v653, %v652
        %v665 = vpack.c.b16 %v655, %v654
        %v666 = vpack.c.b16 %v657, %v656
        %v667 = vpack.c.b16 %v659, %v658
        %v669 = vsel %vm484, %v660, 0
        %v672 = vsel %vm484, %v661, 0
        %v675 = vsel %vm484, %v662, 0
        %v678 = vsel %vm484, %v663, 0
        %v681 = vsel %vm484, %v664, 0
        %v684 = vsel %vm484, %v665, 0
        %v687 = vsel %vm484, %v666, 0
        %v690 = vsel %vm484, %v667, 0
        %692 = vmatprep.subr.bf16.mxu0 0
        %693 = vmatpush1.bf16.msra.mxu0 0
        %694 = vmatprep.subr.bf16.mxu0 0
        %695 = vmatpush1.bf16.msra.mxu0 0
        %696 = vmatprep.subr.bf16.mxu0 0
        %697 = vmatpush1.bf16.msra.mxu0 0
        %698 = vmatprep.subr.bf16.mxu0 0
        %699 = vmatpush1.bf16.msra.mxu0 0
        %700 = vmatprep.subr.bf16.mxu0 0
        %701 = vmatpush1.bf16.msra.mxu0 %v513
        %702 = vmatprep.subr.bf16.mxu0 0
        %703 = vmatpush1.bf16.msra.mxu0 %v479
        %704 = vmatprep.subr.bf16.mxu0 0
        %705 = vmatpush1.bf16.msra.mxu0 %v478
        %706 = vmatprep.subr.bf16.mxu0 0
        %707 = vmatpush1.bf16.msra.mxu0 %v477
        %708 = vmatprep.subr.bf16.mxu0 0
        %709 = vmatpush2.bf16.msra.mxu0 0
        %710 = vmatprep.subr.bf16.mxu0 0
        %711 = vmatpush2.bf16.msra.mxu0 0
        %712 = vmatprep.subr.bf16.mxu0 0
        %713 = vmatpush2.bf16.msra.mxu0 0
        %714 = vmatprep.subr.bf16.mxu0 0
        %715 = vmatpush2.bf16.msra.mxu0 0
        %716 = vmatprep.subr.bf16.mxu0 0
        %717 = vmatpush2.bf16.msra.mxu0 0
        %718 = vmatprep.subr.bf16.mxu0 0
        %719 = vmatpush2.bf16.msra.mxu0 0
        %720 = vmatprep.subr.bf16.mxu0 0
        %721 = vmatpush2.bf16.msra.mxu0 0
        %722 = vmatprep.subr.bf16.mxu0 0
        %723 = vmatpush2.bf16.msra.mxu0 0
        %724 = vmatprep.mubr.bf16.mxu0 0
        %725 = vmatmul.mubr.bf16.gmra.mxu0 %v669
        %v726 = vpop.f32.mrf.mxu0
        %v727 = vadd.f32 0.0, %v726
        %v728 = vpop.f32.mrf.mxu0
        %v729 = vpop.f32.mrf.mxu0
        %v730 = vadd.f32 0.0, %v729
        %v731 = vpop.f32.mrf.mxu0
        %732 = vmatprep.mubr.bf16.mxu0 0
        %733 = vmatmul.mubr.bf16.gmra.mxu0 %v672
        %v734 = vpop.f32.mrf.mxu0
        %v735 = vadd.f32 0.0, %v734
        %v736 = vpop.f32.mrf.mxu0
        %v737 = vpop.f32.mrf.mxu0
        %v738 = vadd.f32 0.0, %v737
        %v739 = vpop.f32.mrf.mxu0
        %740 = vmatprep.mubr.bf16.mxu0 0
        %741 = vmatmul.mubr.bf16.gmra.mxu0 %v675
        %v742 = vpop.f32.mrf.mxu0
        %v743 = vadd.f32 0.0, %v742
        %v744 = vpop.f32.mrf.mxu0
        %v745 = vpop.f32.mrf.mxu0
        %v746 = vadd.f32 0.0, %v745
        %v747 = vpop.f32.mrf.mxu0
        %748 = vmatprep.mubr.bf16.mxu0 0
        %749 = vmatmul.mubr.bf16.gmra.mxu0 %v678
        %v750 = vpop.f32.mrf.mxu0
        %v751 = vadd.f32 0.0, %v750
        %v752 = vpop.f32.mrf.mxu0
        %v753 = vpop.f32.mrf.mxu0
        %v754 = vadd.f32 0.0, %v753
        %v755 = vpop.f32.mrf.mxu0
        %756 = vmatprep.mubr.bf16.mxu0 0
        %757 = vmatmul.mubr.bf16.gmra.mxu0 %v681
        %v758 = vpop.f32.mrf.mxu0
        %v759 = vadd.f32 0.0, %v758
        %v760 = vpop.f32.mrf.mxu0
        %v761 = vpop.f32.mrf.mxu0
        %v762 = vadd.f32 0.0, %v761
        %v763 = vpop.f32.mrf.mxu0
        %764 = vmatprep.mubr.bf16.mxu0 0
        %765 = vmatmul.mubr.bf16.gmra.mxu0 %v684
        %v766 = vpop.f32.mrf.mxu0
        %v767 = vadd.f32 0.0, %v766
        %v768 = vpop.f32.mrf.mxu0
        %v769 = vpop.f32.mrf.mxu0
        %v770 = vadd.f32 0.0, %v769
        %v771 = vpop.f32.mrf.mxu0
        %772 = vmatprep.mubr.bf16.mxu0 0
        %773 = vmatmul.mubr.bf16.gmra.mxu0 %v687
        %v774 = vpop.f32.mrf.mxu0
        %v775 = vadd.f32 0.0, %v774
        %v776 = vpop.f32.mrf.mxu0
        %v777 = vpop.f32.mrf.mxu0
        %v778 = vadd.f32 0.0, %v777
        %v779 = vpop.f32.mrf.mxu0
        %780 = vmatprep.mubr.bf16.mxu0 0
        %781 = vmatmul.mubr.bf16.gmra.mxu0 %v690
        %v782 = vpop.f32.mrf.mxu0
        %v783 = vadd.f32 0.0, %v782
        %v784 = vpop.f32.mrf.mxu0
        %v785 = vpop.f32.mrf.mxu0
        %v786 = vadd.f32 0.0, %v785
        %v787 = vpop.f32.mrf.mxu0
        %788 = vdwg.mxu0
        %v789 = vmax.f32 %v550, %v727
        %v790 = vmax.f32 %v553, %v730
        %v791 = vmax.f32 %v558, %v735
        %v792 = vmax.f32 %v561, %v738
        %v793 = vmax.f32 %v566, %v743
        %v794 = vmax.f32 %v569, %v746
        %v795 = vmax.f32 %v574, %v751
        %v796 = vmax.f32 %v577, %v754
        %v797 = vmax.f32 %v582, %v759
        %v798 = vmax.f32 %v585, %v762
        %v799 = vmax.f32 %v590, %v767
        %v800 = vmax.f32 %v593, %v770
        %v801 = vmax.f32 %v598, %v775
        %v802 = vmax.f32 %v601, %v778
        %v803 = vmax.f32 %v606, %v783
        %v804 = vmax.f32 %v609, %v786
        %v805 = vld [vmem:[%s374] sm:$0xf]
        %v806 = vld [vmem:[%s374 + $0x4] sm:$0xf]
        %v807 = vld [vmem:[%s374 + $0x8] sm:$0xf]
        %v808 = vld [vmem:[%s374 + $0xc] sm:$0xf]
        %v809 = vld [vmem:[%s374 + $0x10] sm:$0xf]
        %v810 = vld [vmem:[%s374 + $0x14] sm:$0xf]
        %v811 = vld [vmem:[%s374 + $0x18] sm:$0xf]
        %v812 = vld [vmem:[%s374 + $0x1c] sm:$0xf]
        %v813 = vld [vmem:[%s374 + $0x20] sm:$0xf]
        %v814 = vld [vmem:[%s374 + $0x24] sm:$0xf]
        %v815 = vld [vmem:[%s374 + $0x28] sm:$0xf]
        %v816 = vld [vmem:[%s374 + $0x2c] sm:$0xf]
        %v817 = vld [vmem:[%s374 + $0x30] sm:$0xf]
        %v818 = vld [vmem:[%s374 + $0x34] sm:$0xf]
        %v819 = vld [vmem:[%s374 + $0x38] sm:$0xf]
        %v820 = vld [vmem:[%s374 + $0x3c] sm:$0xf]
        %v837 = vunpack.c.l.b16 %v805
        %v838 = vunpack.c.l.b16 %v806
        %v839 = vunpack.c.l.b16 %v807
        %v840 = vunpack.c.l.b16 %v808
        %v841 = vunpack.c.l.b16 %v809
        %v842 = vunpack.c.l.b16 %v810
        %v843 = vunpack.c.l.b16 %v811
        %v844 = vunpack.c.l.b16 %v812
        %v845 = vunpack.c.l.b16 %v813
        %v846 = vunpack.c.l.b16 %v814
        %v847 = vunpack.c.l.b16 %v815
        %v848 = vunpack.c.l.b16 %v816
        %v849 = vunpack.c.l.b16 %v817
        %v850 = vunpack.c.l.b16 %v818
        %v851 = vunpack.c.l.b16 %v819
        %v852 = vunpack.c.l.b16 %v820
        %v853 = vpack.c.b16 %v838, %v837
        %v854 = vpack.c.b16 %v840, %v839
        %v855 = vpack.c.b16 %v842, %v841
        %v856 = vpack.c.b16 %v844, %v843
        %v857 = vpack.c.b16 %v846, %v845
        %v858 = vpack.c.b16 %v848, %v847
        %v859 = vpack.c.b16 %v850, %v849
        %v860 = vpack.c.b16 %v852, %v851
        %v862 = vsel %vm484, %v853, 0
        %v865 = vsel %vm484, %v854, 0
        %v868 = vsel %vm484, %v855, 0
        %v871 = vsel %vm484, %v856, 0
        %v874 = vsel %vm484, %v857, 0
        %v877 = vsel %vm484, %v858, 0
        %v880 = vsel %vm484, %v859, 0
        %v883 = vsel %vm484, %v860, 0
        %885 = vmatprep.subr.bf16.mxu0 0
        %886 = vmatpush1.bf16.msra.mxu0 0
        %887 = vmatprep.subr.bf16.mxu0 0
        %888 = vmatpush1.bf16.msra.mxu0 0
        %889 = vmatprep.subr.bf16.mxu0 0
        %890 = vmatpush1.bf16.msra.mxu0 0
        %891 = vmatprep.subr.bf16.mxu0 0
        %892 = vmatpush1.bf16.msra.mxu0 0
        %893 = vmatprep.subr.bf16.mxu0 0
        %894 = vmatpush1.bf16.msra.mxu0 %v513
        %895 = vmatprep.subr.bf16.mxu0 0
        %896 = vmatpush1.bf16.msra.mxu0 %v479
        %897 = vmatprep.subr.bf16.mxu0 0
        %898 = vmatpush1.bf16.msra.mxu0 %v478
        %899 = vmatprep.subr.bf16.mxu0 0
        %900 = vmatpush1.bf16.msra.mxu0 %v477
        %901 = vmatprep.subr.bf16.mxu0 0
        %902 = vmatpush2.bf16.msra.mxu0 0
        %903 = vmatprep.subr.bf16.mxu0 0
        %904 = vmatpush2.bf16.msra.mxu0 0
        %905 = vmatprep.subr.bf16.mxu0 0
        %906 = vmatpush2.bf16.msra.mxu0 0
        %907 = vmatprep.subr.bf16.mxu0 0
        %908 = vmatpush2.bf16.msra.mxu0 0
        %909 = vmatprep.subr.bf16.mxu0 0
        %910 = vmatpush2.bf16.msra.mxu0 0
        %911 = vmatprep.subr.bf16.mxu0 0
        %912 = vmatpush2.bf16.msra.mxu0 0
        %913 = vmatprep.subr.bf16.mxu0 0
        %914 = vmatpush2.bf16.msra.mxu0 0
        %915 = vmatprep.subr.bf16.mxu0 0
        %916 = vmatpush2.bf16.msra.mxu0 0
        %917 = vmatprep.mubr.bf16.mxu0 0
        %918 = vmatmul.mubr.bf16.gmra.mxu0 %v862
        %v919 = vpop.f32.mrf.mxu0
        %v920 = vadd.f32 0.0, %v919
        %v921 = vpop.f32.mrf.mxu0
        %v922 = vpop.f32.mrf.mxu0
        %v923 = vadd.f32 0.0, %v922
        %v924 = vpop.f32.mrf.mxu0
        %925 = vmatprep.mubr.bf16.mxu0 0
        %926 = vmatmul.mubr.bf16.gmra.mxu0 %v865
        %v927 = vpop.f32.mrf.mxu0
        %v928 = vadd.f32 0.0, %v927
        %v929 = vpop.f32.mrf.mxu0
        %v930 = vpop.f32.mrf.mxu0
        %v931 = vadd.f32 0.0, %v930
        %v932 = vpop.f32.mrf.mxu0
        %933 = vmatprep.mubr.bf16.mxu0 0
        %934 = vmatmul.mubr.bf16.gmra.mxu0 %v868
        %v935 = vpop.f32.mrf.mxu0
        %v936 = vadd.f32 0.0, %v935
        %v937 = vpop.f32.mrf.mxu0
        %v938 = vpop.f32.mrf.mxu0
        %v939 = vadd.f32 0.0, %v938
        %v940 = vpop.f32.mrf.mxu0
        %941 = vmatprep.mubr.bf16.mxu0 0
        %942 = vmatmul.mubr.bf16.gmra.mxu0 %v871
        %v943 = vpop.f32.mrf.mxu0
        %v944 = vadd.f32 0.0, %v943
        %v945 = vpop.f32.mrf.mxu0
        %v946 = vpop.f32.mrf.mxu0
        %v947 = vadd.f32 0.0, %v946
        %v948 = vpop.f32.mrf.mxu0
        %949 = vmatprep.mubr.bf16.mxu0 0
        %950 = vmatmul.mubr.bf16.gmra.mxu0 %v874
        %v951 = vpop.f32.mrf.mxu0
        %v952 = vadd.f32 0.0, %v951
        %v953 = vpop.f32.mrf.mxu0
        %v954 = vpop.f32.mrf.mxu0
        %v955 = vadd.f32 0.0, %v954
        %v956 = vpop.f32.mrf.mxu0
        %957 = vmatprep.mubr.bf16.mxu0 0
        %958 = vmatmul.mubr.bf16.gmra.mxu0 %v877
        %v959 = vpop.f32.mrf.mxu0
        %v960 = vadd.f32 0.0, %v959
        %v961 = vpop.f32.mrf.mxu0
        %v962 = vpop.f32.mrf.mxu0
        %v963 = vadd.f32 0.0, %v962
        %v964 = vpop.f32.mrf.mxu0
        %965 = vmatprep.mubr.bf16.mxu0 0
        %966 = vmatmul.mubr.bf16.gmra.mxu0 %v880
        %v967 = vpop.f32.mrf.mxu0
        %v968 = vadd.f32 0.0, %v967
        %v969 = vpop.f32.mrf.mxu0
        %v970 = vpop.f32.mrf.mxu0
        %v971 = vadd.f32 0.0, %v970
        %v972 = vpop.f32.mrf.mxu0
        %973 = vmatprep.mubr.bf16.mxu0 0
        %974 = vmatmul.mubr.bf16.gmra.mxu0 %v883
        %v975 = vpop.f32.mrf.mxu0
        %v976 = vadd.f32 0.0, %v975
        %v977 = vpop.f32.mrf.mxu0
        %v978 = vpop.f32.mrf.mxu0
        %v979 = vadd.f32 0.0, %v978
        %v980 = vpop.f32.mrf.mxu0
        %981 = vdwg.mxu0
        %v982 = vmax.f32 %v789, %v920
        %v983 = vmax.f32 %v790, %v923
        %v984 = vmax.f32 %v791, %v928
        %v985 = vmax.f32 %v792, %v931
        %v986 = vmax.f32 %v793, %v936
        %v987 = vmax.f32 %v794, %v939
        %v988 = vmax.f32 %v795, %v944
        %v989 = vmax.f32 %v796, %v947
        %v990 = vmax.f32 %v797, %v952
        %v991 = vmax.f32 %v798, %v955
        %v992 = vmax.f32 %v799, %v960
        %v993 = vmax.f32 %v800, %v963
        %v994 = vmax.f32 %v801, %v968
        %v995 = vmax.f32 %v802, %v971
        %v996 = vmax.f32 %v803, %v976
        %v997 = vmax.f32 %v804, %v979
        %v998 = vld [vmem:[%s388] sm:$0xf]
        %v999 = vld [vmem:[%s388 + $0x4] sm:$0xf]
        %v1000 = vld [vmem:[%s388 + $0x8] sm:$0xf]
        %v1001 = vld [vmem:[%s388 + $0xc] sm:$0xf]
        %v1002 = vld [vmem:[%s388 + $0x10] sm:$0xf]
        %v1003 = vld [vmem:[%s388 + $0x14] sm:$0xf]
        %v1004 = vld [vmem:[%s388 + $0x18] sm:$0xf]
        %v1005 = vld [vmem:[%s388 + $0x1c] sm:$0xf]
        %v1006 = vld [vmem:[%s388 + $0x20] sm:$0xf]
        %v1007 = vld [vmem:[%s388 + $0x24] sm:$0xf]
        %v1008 = vld [vmem:[%s388 + $0x28] sm:$0xf]
        %v1009 = vld [vmem:[%s388 + $0x2c] sm:$0xf]
        %v1010 = vld [vmem:[%s388 + $0x30] sm:$0xf]
        %v1011 = vld [vmem:[%s388 + $0x34] sm:$0xf]
        %v1012 = vld [vmem:[%s388 + $0x38] sm:$0xf]
        %v1013 = vld [vmem:[%s388 + $0x3c] sm:$0xf]
        %v1030 = vunpack.c.l.b16 %v998
        %v1031 = vunpack.c.l.b16 %v999
        %v1032 = vunpack.c.l.b16 %v1000
        %v1033 = vunpack.c.l.b16 %v1001
        %v1034 = vunpack.c.l.b16 %v1002
        %v1035 = vunpack.c.l.b16 %v1003
        %v1036 = vunpack.c.l.b16 %v1004
        %v1037 = vunpack.c.l.b16 %v1005
        %v1038 = vunpack.c.l.b16 %v1006
        %v1039 = vunpack.c.l.b16 %v1007
        %v1040 = vunpack.c.l.b16 %v1008
        %v1041 = vunpack.c.l.b16 %v1009
        %v1042 = vunpack.c.l.b16 %v1010
        %v1043 = vunpack.c.l.b16 %v1011
        %v1044 = vunpack.c.l.b16 %v1012
        %v1045 = vunpack.c.l.b16 %v1013
        %v1046 = vpack.c.b16 %v1031, %v1030
        %v1047 = vpack.c.b16 %v1033, %v1032
        %v1048 = vpack.c.b16 %v1035, %v1034
        %v1049 = vpack.c.b16 %v1037, %v1036
        %v1050 = vpack.c.b16 %v1039, %v1038
        %v1051 = vpack.c.b16 %v1041, %v1040
        %v1052 = vpack.c.b16 %v1043, %v1042
        %v1053 = vpack.c.b16 %v1045, %v1044
        %v1055 = vsel %vm484, %v1046, 0
        %v1058 = vsel %vm484, %v1047, 0
        %v1061 = vsel %vm484, %v1048, 0
        %v1064 = vsel %vm484, %v1049, 0
        %v1067 = vsel %vm484, %v1050, 0
        %v1070 = vsel %vm484, %v1051, 0
        %v1073 = vsel %vm484, %v1052, 0
        %v1076 = vsel %vm484, %v1053, 0
        %1078 = vmatprep.subr.bf16.mxu0 0
        %1079 = vmatpush1.bf16.msra.mxu0 0
        %1080 = vmatprep.subr.bf16.mxu0 0
        %1081 = vmatpush1.bf16.msra.mxu0 0
        %1082 = vmatprep.subr.bf16.mxu0 0
        %1083 = vmatpush1.bf16.msra.mxu0 0
        %1084 = vmatprep.subr.bf16.mxu0 0
        %1085 = vmatpush1.bf16.msra.mxu0 0
        %1086 = vmatprep.subr.bf16.mxu0 0
        %1087 = vmatpush1.bf16.msra.mxu0 %v513
        %1088 = vmatprep.subr.bf16.mxu0 0
        %1089 = vmatpush1.bf16.msra.mxu0 %v479
        %1090 = vmatprep.subr.bf16.mxu0 0
        %1091 = vmatpush1.bf16.msra.mxu0 %v478
        %1092 = vmatprep.subr.bf16.mxu0 0
        %1093 = vmatpush1.bf16.msra.mxu0 %v477
        %1094 = vmatprep.subr.bf16.mxu0 0
        %1095 = vmatpush2.bf16.msra.mxu0 0
        %1096 = vmatprep.subr.bf16.mxu0 0
        %1097 = vmatpush2.bf16.msra.mxu0 0
        %1098 = vmatprep.subr.bf16.mxu0 0
        %1099 = vmatpush2.bf16.msra.mxu0 0
        %1100 = vmatprep.subr.bf16.mxu0 0
        %1101 = vmatpush2.bf16.msra.mxu0 0
        %1102 = vmatprep.subr.bf16.mxu0 0
        %1103 = vmatpush2.bf16.msra.mxu0 0
        %1104 = vmatprep.subr.bf16.mxu0 0
        %1105 = vmatpush2.bf16.msra.mxu0 0
        %1106 = vmatprep.subr.bf16.mxu0 0
        %1107 = vmatpush2.bf16.msra.mxu0 0
        %1108 = vmatprep.subr.bf16.mxu0 0
        %1109 = vmatpush2.bf16.msra.mxu0 0
        %1110 = vmatprep.mubr.bf16.mxu0 0
        %1111 = vmatmul.mubr.bf16.gmra.mxu0 %v1055
        %v1112 = vpop.f32.mrf.mxu0
        %v1113 = vadd.f32 0.0, %v1112
        %v1114 = vpop.f32.mrf.mxu0
        %v1115 = vpop.f32.mrf.mxu0
        %v1116 = vadd.f32 0.0, %v1115
        %v1117 = vpop.f32.mrf.mxu0
        %1118 = vmatprep.mubr.bf16.mxu0 0
        %1119 = vmatmul.mubr.bf16.gmra.mxu0 %v1058
        %v1120 = vpop.f32.mrf.mxu0
        %v1121 = vadd.f32 0.0, %v1120
        %v1122 = vpop.f32.mrf.mxu0
        %v1123 = vpop.f32.mrf.mxu0
        %v1124 = vadd.f32 0.0, %v1123
        %v1125 = vpop.f32.mrf.mxu0
        %1126 = vmatprep.mubr.bf16.mxu0 0
        %1127 = vmatmul.mubr.bf16.gmra.mxu0 %v1061
        %v1128 = vpop.f32.mrf.mxu0
        %v1129 = vadd.f32 0.0, %v1128
        %v1130 = vpop.f32.mrf.mxu0
        %v1131 = vpop.f32.mrf.mxu0
        %v1132 = vadd.f32 0.0, %v1131
        %v1133 = vpop.f32.mrf.mxu0
        %1134 = vmatprep.mubr.bf16.mxu0 0
        %1135 = vmatmul.mubr.bf16.gmra.mxu0 %v1064
        %v1136 = vpop.f32.mrf.mxu0
        %v1137 = vadd.f32 0.0, %v1136
        %v1138 = vpop.f32.mrf.mxu0
        %v1139 = vpop.f32.mrf.mxu0
        %v1140 = vadd.f32 0.0, %v1139
        %v1141 = vpop.f32.mrf.mxu0
        %1142 = vmatprep.mubr.bf16.mxu0 0
        %1143 = vmatmul.mubr.bf16.gmra.mxu0 %v1067
        %v1144 = vpop.f32.mrf.mxu0
        %v1145 = vadd.f32 0.0, %v1144
        %v1146 = vpop.f32.mrf.mxu0
        %v1147 = vpop.f32.mrf.mxu0
        %v1148 = vadd.f32 0.0, %v1147
        %v1149 = vpop.f32.mrf.mxu0
        %1150 = vmatprep.mubr.bf16.mxu0 0
        %1151 = vmatmul.mubr.bf16.gmra.mxu0 %v1070
        %v1152 = vpop.f32.mrf.mxu0
        %v1153 = vadd.f32 0.0, %v1152
        %v1154 = vpop.f32.mrf.mxu0
        %v1155 = vpop.f32.mrf.mxu0
        %v1156 = vadd.f32 0.0, %v1155
        %v1157 = vpop.f32.mrf.mxu0
        %1158 = vmatprep.mubr.bf16.mxu0 0
        %1159 = vmatmul.mubr.bf16.gmra.mxu0 %v1073
        %v1160 = vpop.f32.mrf.mxu0
        %v1161 = vadd.f32 0.0, %v1160
        %v1162 = vpop.f32.mrf.mxu0
        %v1163 = vpop.f32.mrf.mxu0
        %v1164 = vadd.f32 0.0, %v1163
        %v1165 = vpop.f32.mrf.mxu0
        %1166 = vmatprep.mubr.bf16.mxu0 0
        %1167 = vmatmul.mubr.bf16.gmra.mxu0 %v1076
        %v1168 = vpop.f32.mrf.mxu0
        %v1169 = vadd.f32 0.0, %v1168
        %v1170 = vpop.f32.mrf.mxu0
        %v1171 = vpop.f32.mrf.mxu0
        %v1172 = vadd.f32 0.0, %v1171
        %v1173 = vpop.f32.mrf.mxu0
        %1174 = vdwg.mxu0
        %v1175 = vmax.f32 %v982, %v1113
        %v1176 = vmax.f32 %v983, %v1116
        %v1177 = vmax.f32 %v984, %v1121
        %v1178 = vmax.f32 %v985, %v1124
        %v1179 = vmax.f32 %v986, %v1129
        %v1180 = vmax.f32 %v987, %v1132
        %v1181 = vmax.f32 %v988, %v1137
        %v1182 = vmax.f32 %v989, %v1140
        %v1183 = vmax.f32 %v990, %v1145
        %v1184 = vmax.f32 %v991, %v1148
        %v1185 = vmax.f32 %v992, %v1153
        %v1186 = vmax.f32 %v993, %v1156
        %v1187 = vmax.f32 %v994, %v1161
        %v1188 = vmax.f32 %v995, %v1164
        %v1189 = vmax.f32 %v996, %v1169
        %v1190 = vmax.f32 %v997, %v1172
        %v1191 = vld [vmem:[%s5] sm:$0x1]
        %v1193 = vlaneseq
        %v1194 = vshrl.u32 %v1193, 7
        %v1195 = vsub.s32 0, %v1194
        %v1196 = vrot.slane %v1191, %v1195
        %v1198 = vadd.f32 %v1175, %v1196
        %v1199 = vadd.f32 %v1176, %v1196
        %v1200 = vadd.f32 %v1177, %v1196
        %v1201 = vadd.f32 %v1178, %v1196
        %v1202 = vadd.f32 %v1179, %v1196
        %v1203 = vadd.f32 %v1180, %v1196
        %v1204 = vadd.f32 %v1181, %v1196
        %v1205 = vadd.f32 %v1182, %v1196
        %v1206 = vadd.f32 %v1183, %v1196
        %v1207 = vadd.f32 %v1184, %v1196
        %v1208 = vadd.f32 %v1185, %v1196
        %v1209 = vadd.f32 %v1186, %v1196
        %v1210 = vadd.f32 %v1187, %v1196
        %v1211 = vadd.f32 %v1188, %v1196
        %v1212 = vadd.f32 %v1189, %v1196
        %v1213 = vadd.f32 %v1190, %v1196
        %v1214 = vmax.f32 %v1198, 0.0
        %v1215 = vmax.f32 %v1199, 0.0
        %v1216 = vmax.f32 %v1200, 0.0
        %v1217 = vmax.f32 %v1201, 0.0
        %v1218 = vmax.f32 %v1202, 0.0
        %v1219 = vmax.f32 %v1203, 0.0
        %v1220 = vmax.f32 %v1204, 0.0
        %v1221 = vmax.f32 %v1205, 0.0
        %v1222 = vmax.f32 %v1206, 0.0
        %v1223 = vmax.f32 %v1207, 0.0
        %v1224 = vmax.f32 %v1208, 0.0
        %v1225 = vmax.f32 %v1209, 0.0
        %v1226 = vmax.f32 %v1210, 0.0
        %v1227 = vmax.f32 %v1211, 0.0
        %v1228 = vmax.f32 %v1212, 0.0
        %v1229 = vmax.f32 %v1213, 0.0
        %v1230 = vpack.c.bf16 %v1215, %v1214
        %v1231 = vpack.c.bf16 %v1217, %v1216
        %v1232 = vpack.c.bf16 %v1219, %v1218
        %v1233 = vpack.c.bf16 %v1221, %v1220
        %v1234 = vpack.c.bf16 %v1223, %v1222
        %v1235 = vpack.c.bf16 %v1225, %v1224
        %v1236 = vpack.c.bf16 %v1227, %v1226
        %v1237 = vpack.c.bf16 %v1229, %v1228
        %v1246 = vunpack.c.l.b16 %v1230
        %v1247 = vunpack.c.h.b16 %v1230
        %v1248 = vunpack.c.l.b16 %v1231
        %v1249 = vunpack.c.h.b16 %v1231
        %v1250 = vunpack.c.l.b16 %v1232
        %v1251 = vunpack.c.h.b16 %v1232
        %v1252 = vunpack.c.l.b16 %v1233
        %v1253 = vunpack.c.h.b16 %v1233
        %v1254 = vunpack.c.l.b16 %v1234
        %v1255 = vunpack.c.h.b16 %v1234
        %v1256 = vunpack.c.l.b16 %v1235
        %v1257 = vunpack.c.h.b16 %v1235
        %v1258 = vunpack.c.l.b16 %v1236
        %v1259 = vunpack.c.h.b16 %v1236
        %v1260 = vunpack.c.l.b16 %v1237
        %v1261 = vunpack.c.h.b16 %v1237
        %v1262 = vpack.c.b16 %v1246, %v1246
        %v1263 = vpack.c.b16 %v1247, %v1247
        %v1264 = vpack.c.b16 %v1248, %v1248
        %v1265 = vpack.c.b16 %v1249, %v1249
        %v1266 = vpack.c.b16 %v1250, %v1250
        %v1267 = vpack.c.b16 %v1251, %v1251
        %v1268 = vpack.c.b16 %v1252, %v1252
        %v1269 = vpack.c.b16 %v1253, %v1253
        %v1270 = vpack.c.b16 %v1254, %v1254
        %v1271 = vpack.c.b16 %v1255, %v1255
        %v1272 = vpack.c.b16 %v1256, %v1256
        %v1273 = vpack.c.b16 %v1257, %v1257
        %v1274 = vpack.c.b16 %v1258, %v1258
        %v1275 = vpack.c.b16 %v1259, %v1259
        %v1276 = vpack.c.b16 %v1260, %v1260
        %v1277 = vpack.c.b16 %v1261, %v1261
        %vm1294 = vcmask 60416
        %1295 = vst.msk [vmem:[%s337] sm:$0xf] %vm1294, %v1262
        %1296 = vst.msk [vmem:[%s337 + $0x4] sm:$0xf] %vm1294, %v1263
        %1297 = vst.msk [vmem:[%s337 + $0x8] sm:$0xf] %vm1294, %v1264
        %1298 = vst.msk [vmem:[%s337 + $0xc] sm:$0xf] %vm1294, %v1265
        %1299 = vst.msk [vmem:[%s337 + $0x10] sm:$0xf] %vm1294, %v1266
        %1300 = vst.msk [vmem:[%s337 + $0x14] sm:$0xf] %vm1294, %v1267
        %1301 = vst.msk [vmem:[%s337 + $0x18] sm:$0xf] %vm1294, %v1268
        %1302 = vst.msk [vmem:[%s337 + $0x1c] sm:$0xf] %vm1294, %v1269
        %1303 = vst.msk [vmem:[%s337 + $0x20] sm:$0xf] %vm1294, %v1270
        %1304 = vst.msk [vmem:[%s337 + $0x24] sm:$0xf] %vm1294, %v1271
        %1305 = vst.msk [vmem:[%s337 + $0x28] sm:$0xf] %vm1294, %v1272
        %1306 = vst.msk [vmem:[%s337 + $0x2c] sm:$0xf] %vm1294, %v1273
        %1307 = vst.msk [vmem:[%s337 + $0x30] sm:$0xf] %vm1294, %v1274
        %1308 = vst.msk [vmem:[%s337 + $0x34] sm:$0xf] %vm1294, %v1275
        %1309 = vst.msk [vmem:[%s337 + $0x38] sm:$0xf] %vm1294, %v1276
        %1310 = vst.msk [vmem:[%s337 + $0x3c] sm:$0xf] %vm1294, %v1277
        %s1311 = sand.u32 %s171, 1
        %s1312 = sand.u32 %s171, 1
        %s1313 = smul.addr %s1312, 64
        %s1314 = scalar_lea.vmem [#allocation2], %s1313
        // Predicated region
        $region45: #{forward.7} parent=43 // pred_check
          %p1315 = pneg %p181
        $region46: #{forward.7} parent=43 // pred_check_branch
          %1317 = sbr.rel (%p1315) target = $region48
        $region47: #{forward.7} parent=43 // pred_region
          %s1318 = smul.u32 16, %s17
          %s1319 = ssub.s32 31, %s1318
          %p1320 = scmp.lt.s32.totalorder %s1319, 16
          %s1321 = scalar_select %p1320, %s1319, 16
          %s1322 = smul.u32 64, %s1321
          %p1323 = scmp.ne.s32.totalorder 0, %s1322
          %s1324 = smul.addr %s1318, 4
          %s1325 = scalar_lea.vmem %s6, %s1324
          // Predicated region
          $region49: #{forward.7} parent=47 // pred_check
            %p1326 = pneg %p1323
          $region50: #{forward.7} parent=47 // pred_check_branch
            %1328 = sbr.rel (%p1326) target = $region52
          $region51: #{forward.7} parent=47 // pred_region
            // Predicated region
            $region53: #{forward.7} parent=51 // pred_check
              _
            $region54: #{forward.7} parent=51 // pred_check_branch
              %1330 = sbr.rel target = $region56
            $region55: #{forward.7} parent=51 // pred_region
              // Predicated region
              $region75: #{forward.7} parent=55 // pred_check
                _
              $region76: #{forward.7} parent=55 // pred_check_branch
                %1410 = sbr.rel (0) target = $region78
              $region77: #{forward.7} parent=55 // pred_region
                %s1412 = ssub.s32 16, 1
                %s1413 = sshrl.u32 %s1321, 4
                // While loop
                $region79: #{forward.7} parent=77 // loop_pre_header
                  _
                $region80: #{forward.7} parent=77 // loop_header
                  %s1415 = sphi 0, %s1417
                  %p1416 = scmp.ge.s32.totalorder %s1415, %s1413
                  %s1420 = sphi 0, %s1457
                  %s1421 = sphi %s1314, %s1460
                  %s1422 = sphi %s1325, %s1461
                $region81: #{forward.7} parent=77 // loop_header_branch
                  %1419 = sbr.rel (%p1416) target = $region85
                $region82: #{forward.7} parent=77 // loop_body
                  %v1423 = vld [vmem:[%s1421] sm:%s1412]
                  %1424 = vst [vmem:[%s1422] sm:%s1412] %v1423
                  %v1425 = vld [vmem:[%s1421 + $0x4] sm:%s1412]
                  %1426 = vst [vmem:[%s1422 + $0x4] sm:%s1412] %v1425
                  %v1427 = vld [vmem:[%s1421 + $0x8] sm:%s1412]
                  %1428 = vst [vmem:[%s1422 + $0x8] sm:%s1412] %v1427
                  %v1429 = vld [vmem:[%s1421 + $0xc] sm:%s1412]
                  %1430 = vst [vmem:[%s1422 + $0xc] sm:%s1412] %v1429
                  %v1431 = vld [vmem:[%s1421 + $0x10] sm:%s1412]
                  %1432 = vst [vmem:[%s1422 + $0x10] sm:%s1412] %v1431
                  %v1433 = vld [vmem:[%s1421 + $0x14] sm:%s1412]
                  %1434 = vst [vmem:[%s1422 + $0x14] sm:%s1412] %v1433
                  %v1435 = vld [vmem:[%s1421 + $0x18] sm:%s1412]
                  %1436 = vst [vmem:[%s1422 + $0x18] sm:%s1412] %v1435
                  %v1437 = vld [vmem:[%s1421 + $0x1c] sm:%s1412]
                  %1438 = vst [vmem:[%s1422 + $0x1c] sm:%s1412] %v1437
                  %v1439 = vld [vmem:[%s1421 + $0x20] sm:%s1412]
                  %1440 = vst [vmem:[%s1422 + $0x20] sm:%s1412] %v1439
                  %v1441 = vld [vmem:[%s1421 + $0x24] sm:%s1412]
                  %1442 = vst [vmem:[%s1422 + $0x24] sm:%s1412] %v1441
                  %v1443 = vld [vmem:[%s1421 + $0x28] sm:%s1412]
                  %1444 = vst [vmem:[%s1422 + $0x28] sm:%s1412] %v1443
                  %v1445 = vld [vmem:[%s1421 + $0x2c] sm:%s1412]
                  %1446 = vst [vmem:[%s1422 + $0x2c] sm:%s1412] %v1445
                  %v1447 = vld [vmem:[%s1421 + $0x30] sm:%s1412]
                  %1448 = vst [vmem:[%s1422 + $0x30] sm:%s1412] %v1447
                  %v1449 = vld [vmem:[%s1421 + $0x34] sm:%s1412]
                  %1450 = vst [vmem:[%s1422 + $0x34] sm:%s1412] %v1449
                  %v1451 = vld [vmem:[%s1421 + $0x38] sm:%s1412]
                  %1452 = vst [vmem:[%s1422 + $0x38] sm:%s1412] %v1451
                  %v1453 = vld [vmem:[%s1421 + $0x3c] sm:%s1412]
                  %1454 = vst [vmem:[%s1422 + $0x3c] sm:%s1412] %v1453
                  %s1455 = sadd.s32 1, %s1420
                  %p1456 = scmp.ge.s32.totalorder %s1455, %s1413
                  %s1457 = scalar_select %p1456, 0, %s1455
                  %s1458 = smul.u32 %s1457, 64
                  %s1459 = smul.u32 %s1457, 64
                  %s1460 = scalar_lea.vmem %s1314, %s1458 [#allocation2]
                  %s1461 = scalar_lea.vmem %s1325, %s1459
                $region83: #{forward.7} parent=77 // loop_footer
                  %s1417 = sadd.s32 %s1415, 1
                $region84: #{forward.7} parent=77 // loop_footer_branch
                  %1414 = sbr.rel target = $region80
                $region85: #{forward.7} parent=77 // loop_exit
                  _
                %s1462 = sshrl.u32 %s1321, 4
                %s1463 = sand.u32 %s1321, 15
                %s1464 = smul.u32 %s1462, 16
                %s1465 = smul.u32 4, %s1464
                %s1466 = scalar_lea.vmem %s1314, %s1465 [#allocation2]
                %s1467 = smul.u32 4, %s1464
                %s1468 = scalar_lea.vmem %s1325, %s1467
                // While loop
                $region86: #{forward.7} parent=77 // loop_pre_header
                  _
                $region87: #{forward.7} parent=77 // loop_header
                  %s1470 = sphi 0, %s1472
                  %p1471 = scmp.ge.s32.totalorder %s1470, %s1463
                  %s1475 = sphi 0, %s1482
                  %s1476 = sphi %s1466, %s1485
                  %s1477 = sphi %s1468, %s1486
                $region88: #{forward.7} parent=77 // loop_header_branch
                  %1474 = sbr.rel (%p1471) target = $region92
                $region89: #{forward.7} parent=77 // loop_body
                  %v1478 = vld [vmem:[%s1476] sm:%s1412]
                  %1479 = vst [vmem:[%s1477] sm:%s1412] %v1478
                  %s1480 = sadd.s32 1, %s1475
                  %p1481 = scmp.ge.s32.totalorder %s1480, %s1463
                  %s1482 = scalar_select %p1481, 0, %s1480
                  %s1483 = smul.u32 %s1482, 4
                  %s1484 = smul.u32 %s1482, 4
                  %s1485 = scalar_lea.vmem %s1466, %s1483 [#allocation2]
                  %s1486 = scalar_lea.vmem %s1468, %s1484
                $region90: #{forward.7} parent=77 // loop_footer
                  %s1472 = sadd.s32 %s1470, 1
                $region91: #{forward.7} parent=77 // loop_footer_branch
                  %1469 = sbr.rel target = $region87
                $region92: #{forward.7} parent=77 // loop_exit
                  _
              $region78: #{forward.7} parent=55 // pred_fallthru
                _
            $region56: #{forward.7} parent=51 // pred_fallthru
              _
            // Predicated region
            $region57: #{forward.7} parent=51 // pred_check
              _
            $region58: #{forward.7} parent=51 // pred_check_branch
              %1332 = sbr.rel (0) target = $region60
            $region59: #{forward.7} parent=51 // pred_region
              %s1334 = ssub.s32 16, 1
              %s1335 = sshrl.u32 %s1321, 4
              // While loop
              $region61: #{forward.7} parent=59 // loop_pre_header
                _
              $region62: #{forward.7} parent=59 // loop_header
                %s1337 = sphi 0, %s1339
                %p1338 = scmp.ge.s32.totalorder %s1337, %s1335
                %s1342 = sphi 0, %s1379
                %s1343 = sphi %s1314, %s1382
                %s1344 = sphi %s1325, %s1383
              $region63: #{forward.7} parent=59 // loop_header_branch
                %1341 = sbr.rel (%p1338) target = $region67
              $region64: #{forward.7} parent=59 // loop_body
                %v1345 = vld [vmem:[%s1343] sm:%s1334]
                %1346 = vst [vmem:[%s1344] sm:%s1334] %v1345
                %v1347 = vld [vmem:[%s1343 + $0x4] sm:%s1334]
                %1348 = vst [vmem:[%s1344 + $0x4] sm:%s1334] %v1347
                %v1349 = vld [vmem:[%s1343 + $0x8] sm:%s1334]
                %1350 = vst [vmem:[%s1344 + $0x8] sm:%s1334] %v1349
                %v1351 = vld [vmem:[%s1343 + $0xc] sm:%s1334]
                %1352 = vst [vmem:[%s1344 + $0xc] sm:%s1334] %v1351
                %v1353 = vld [vmem:[%s1343 + $0x10] sm:%s1334]
                %1354 = vst [vmem:[%s1344 + $0x10] sm:%s1334] %v1353
                %v1355 = vld [vmem:[%s1343 + $0x14] sm:%s1334]
                %1356 = vst [vmem:[%s1344 + $0x14] sm:%s1334] %v1355
                %v1357 = vld [vmem:[%s1343 + $0x18] sm:%s1334]
                %1358 = vst [vmem:[%s1344 + $0x18] sm:%s1334] %v1357
                %v1359 = vld [vmem:[%s1343 + $0x1c] sm:%s1334]
                %1360 = vst [vmem:[%s1344 + $0x1c] sm:%s1334] %v1359
                %v1361 = vld [vmem:[%s1343 + $0x20] sm:%s1334]
                %1362 = vst [vmem:[%s1344 + $0x20] sm:%s1334] %v1361
                %v1363 = vld [vmem:[%s1343 + $0x24] sm:%s1334]
                %1364 = vst [vmem:[%s1344 + $0x24] sm:%s1334] %v1363
                %v1365 = vld [vmem:[%s1343 + $0x28] sm:%s1334]
                %1366 = vst [vmem:[%s1344 + $0x28] sm:%s1334] %v1365
                %v1367 = vld [vmem:[%s1343 + $0x2c] sm:%s1334]
                %1368 = vst [vmem:[%s1344 + $0x2c] sm:%s1334] %v1367
                %v1369 = vld [vmem:[%s1343 + $0x30] sm:%s1334]
                %1370 = vst [vmem:[%s1344 + $0x30] sm:%s1334] %v1369
                %v1371 = vld [vmem:[%s1343 + $0x34] sm:%s1334]
                %1372 = vst [vmem:[%s1344 + $0x34] sm:%s1334] %v1371
                %v1373 = vld [vmem:[%s1343 + $0x38] sm:%s1334]
                %1374 = vst [vmem:[%s1344 + $0x38] sm:%s1334] %v1373
                %v1375 = vld [vmem:[%s1343 + $0x3c] sm:%s1334]
                %1376 = vst [vmem:[%s1344 + $0x3c] sm:%s1334] %v1375
                %s1377 = sadd.s32 1, %s1342
                %p1378 = scmp.ge.s32.totalorder %s1377, %s1335
                %s1379 = scalar_select %p1378, 0, %s1377
                %s1380 = smul.u32 %s1379, 64
                %s1381 = smul.u32 %s1379, 64
                %s1382 = scalar_lea.vmem %s1314, %s1380 [#allocation2]
                %s1383 = scalar_lea.vmem %s1325, %s1381
              $region65: #{forward.7} parent=59 // loop_footer
                %s1339 = sadd.s32 %s1337, 1
              $region66: #{forward.7} parent=59 // loop_footer_branch
                %1336 = sbr.rel target = $region62
              $region67: #{forward.7} parent=59 // loop_exit
                _
              %s1384 = sshrl.u32 %s1321, 4
              %s1385 = sand.u32 %s1321, 15
              %s1386 = smul.u32 %s1384, 16
              %s1387 = smul.u32 4, %s1386
              %s1388 = scalar_lea.vmem %s1314, %s1387 [#allocation2]
              %s1389 = smul.u32 4, %s1386
              %s1390 = scalar_lea.vmem %s1325, %s1389
              // While loop
              $region68: #{forward.7} parent=59 // loop_pre_header
                _
              $region69: #{forward.7} parent=59 // loop_header
                %s1392 = sphi 0, %s1394
                %p1393 = scmp.ge.s32.totalorder %s1392, %s1385
                %s1397 = sphi 0, %s1404
                %s1398 = sphi %s1388, %s1407
                %s1399 = sphi %s1390, %s1408
              $region70: #{forward.7} parent=59 // loop_header_branch
                %1396 = sbr.rel (%p1393) target = $region74
              $region71: #{forward.7} parent=59 // loop_body
                %v1400 = vld [vmem:[%s1398] sm:%s1334]
                %1401 = vst [vmem:[%s1399] sm:%s1334] %v1400
                %s1402 = sadd.s32 1, %s1397
                %p1403 = scmp.ge.s32.totalorder %s1402, %s1385
                %s1404 = scalar_select %p1403, 0, %s1402
                %s1405 = smul.u32 %s1404, 4
                %s1406 = smul.u32 %s1404, 4
                %s1407 = scalar_lea.vmem %s1388, %s1405 [#allocation2]
                %s1408 = scalar_lea.vmem %s1390, %s1406
              $region72: #{forward.7} parent=59 // loop_footer
                %s1394 = sadd.s32 %s1392, 1
              $region73: #{forward.7} parent=59 // loop_footer_branch
                %1391 = sbr.rel target = $region69
              $region74: #{forward.7} parent=59 // loop_exit
                _
            $region60: #{forward.7} parent=51 // pred_fallthru
              _
          $region52: #{forward.7} parent=47 // pred_fallthru
            _
          %1487 = vnop
        $region48: #{forward.7} parent=43 // pred_fallthru
          _
      $region44: #{forward.7} parent=5 // pred_fallthru
        _
      %p1488 = scmp.le.s32.totalorder 2, %s12
      // Predicated region
      $region93: #{forward.7} parent=5 // pred_check
        %p1489 = pneg %p1488
      $region94: #{forward.7} parent=5 // pred_check_branch
        %1491 = sbr.rel (%p1489) target = $region96
      $region95: #{forward.7} parent=5 // pred_region
        %s1492 = ssub.s32 %s12, 2
        // Predicated region
        $region97: #{forward.7} parent=95 // pred_check
          %p1493 = pneg %p187
        $region98: #{forward.7} parent=95 // pred_check_branch
          %1495 = sbr.rel (%p1493) target = $region100
        $region99: #{forward.7} parent=95 // pred_region
          %s1496 = sand.u32 %s172, 1
          %s1497 = sand.u32 %s172, 1
          %s1498 = smul.addr %s1497, 64
          %s1499 = scalar_lea.vmem [#allocation2], %s1498
        $region100: #{forward.7} parent=95 // pred_fallthru
          _
      $region96: #{forward.7} parent=5 // pred_fallthru
        _
    $region6: #{forward.7} parent=1 // loop_footer
      %s16 = sadd.s32 1, %s12
    $region7: #{forward.7} parent=1 // loop_footer_branch
      %11 = sbr.rel target = $region3
    $region8: #{forward.7} parent=1 // loop_exit
      _

// kernel: tile.10
$region0: #{tile.10}
  #allocation0 [shape = 's32[1]{0}', space=sflag, size = 0x4, scoped, tag = 'scoped memory for tile.10']
  %s0 = inlined_call_operand.vmem [shape: f32[28], index: 0, kind: input, shape index: {}]
  %s1 = inlined_call_operand.vmem [shape: f32[28,1,1,28], index: 1, kind: output, shape index: {}]
  // Predicated region
  $region2: #{tile.10} parent=0 // pred_check
    _
  $region3: #{tile.10} parent=0 // pred_check_branch
    %3 = sbr.rel (0) target = $region5
  $region4: #{tile.10} parent=0 // pred_region
    _
  $region5: #{tile.10} parent=0 // pred_fallthru
    _
  %v4 = vld [vmem:[%s0] ss:$0 sm:$0xff]
  %5 = vst [vmem:[%s1] sm:$0xff] %v4
  %s6 = scalar_lea.vmem %s1, 8
  %7 = vst [vmem:[%s6] sm:$0xff] %v4
  %s8 = scalar_lea.vmem %s1, 16
  %9 = vst [vmem:[%s8] sm:$0xff] %v4
  %s10 = scalar_lea.vmem %s1, 24
  %11 = vst [vmem:[%s10] sm:$0xff] %v4

// kernel: tile.11
$region0: #{tile.11}
  %s0 = inlined_call_operand.vmem [shape: f32[28,1,1,28], index: 0, kind: input, shape index: {}]
  %s1 = inlined_call_operand.vmem [shape: f32[1,784], index: 1, kind: output, shape index: {}]
  $region1: #{tile.11} parent=0
    #allocation0 [shape = 'u8[28672]{0}', space=vmem, size = 0x7000, scoped, tag = 'scoped mem for output reshape']
    %v2 = vld [vmem:[%s0] sm:$0x1]
    %vm3 = vcmask 228352
    %4 = vst.msk [vmem:[#allocation0] sm:$0x1] %vm3, %v2
    %s5 = scalar_lea.vmem %s0, 9
    %v6 = vld [vmem:[%s5] sm:$0x1]
    %s7 = scalar_lea.vmem %s0, 9
    %v8 = vld [vmem:[%s7] sm:$0x1]
    %vm9 = vcmask 31744
    %v10 = vsel %vm9, %v8, %v6
    %11 = vrot.lane.b32.xlu0 %v10, 124
    %v12 = vpop.permute.xlu0 %11
    %vm13 = vcmask 195584
    %s14 = scalar_lea.vmem [#allocation0], 16
    %15 = vst.msk [vmem:[%s14] sm:$0x1] %vm13, %v12
    %vm16 = vcmask 1048544
    %s17 = scalar_lea.vmem [#allocation0], 8
    %18 = vst.msk [vmem:[%s17] sm:$0x1] %vm16, %v12
    %s19 = scalar_lea.vmem %s0, 18
    %v20 = vld [vmem:[%s19] sm:$0x1]
    %s21 = scalar_lea.vmem %s0, 18
    %v22 = vld [vmem:[%s21] sm:$0x1]
    %vm23 = vcmask 64512
    %v24 = vsel %vm23, %v22, %v20
    %25 = vrot.lane.b32.xlu0 %v24, 120
    %v26 = vpop.permute.xlu0 %25
    %vm27 = vcmask 162816
    %s28 = scalar_lea.vmem [#allocation0], 32
    %29 = vst.msk [vmem:[%s28] sm:$0x1] %vm27, %v26
    %vm30 = vcmask 1048512
    %s31 = scalar_lea.vmem [#allocation0], 24
    %32 = vst.msk [vmem:[%s31] sm:$0x1] %vm30, %v26
    %s33 = scalar_lea.vmem %s0, 27
    %v34 = vld [vmem:[%s33] sm:$0x1]
    %s35 = scalar_lea.vmem %s0, 27
    %v36 = vld [vmem:[%s35] sm:$0x1]
    %vm37 = vcmask 97280
    %v38 = vsel %vm37, %v36, %v34
    %39 = vrot.lane.b32.xlu0 %v38, 116
    %v40 = vpop.permute.xlu0 %39
    %vm41 = vcmask 130048
    %s42 = scalar_lea.vmem [#allocation0], 48
    %43 = vst.msk [vmem:[%s42] sm:$0x1] %vm41, %v40
    %vm44 = vcmask 1048480
    %s45 = scalar_lea.vmem [#allocation0], 40
    %46 = vst.msk [vmem:[%s45] sm:$0x1] %vm44, %v40
    %s47 = scalar_lea.vmem %s0, 4
    %v48 = vld [vmem:[%s47] sm:$0x1]
    %s49 = scalar_lea.vmem %s0, 4
    %v50 = vld [vmem:[%s49] sm:$0x1]
    %vm51 = vcmask 130048
    %v52 = vsel %vm51, %v50, %v48
    %53 = vrot.lane.b32.xlu0 %v52, 112
    %v54 = vpop.permute.xlu0 %53
    %vm55 = vcmask 97280
    %s56 = scalar_lea.vmem [#allocation0], 8
    %57 = vst.msk [vmem:[%s56] sm:$0x1] %vm55, %v54
    %vm58 = vcmask 1048448
    %59 = vst.msk [vmem:[#allocation0] sm:$0x1] %vm58, %v54
    %s60 = scalar_lea.vmem %s0, 13
    %v61 = vld [vmem:[%s60] sm:$0x1]
    %s62 = scalar_lea.vmem %s0, 13
    %v63 = vld [vmem:[%s62] sm:$0x1]
    %vm64 = vcmask 162816
    %v65 = vsel %vm64, %v63, %v61
    %66 = vrot.lane.b32.xlu0 %v65, 108
    %v67 = vpop.permute.xlu0 %66
    %vm68 = vcmask 64512
    %s69 = scalar_lea.vmem [#allocation0], 24
    %70 = vst.msk [vmem:[%s69] sm:$0x1] %vm68, %v67
    %vm71 = vcmask 1048416
    %s72 = scalar_lea.vmem [#allocation0], 16
    %73 = vst.msk [vmem:[%s72] sm:$0x1] %vm71, %v67
    %s74 = scalar_lea.vmem %s0, 22
    %v75 = vld [vmem:[%s74] sm:$0x1]
    %s76 = scalar_lea.vmem %s0, 22
    %v77 = vld [vmem:[%s76] sm:$0x1]
    %vm78 = vcmask 195584
    %v79 = vsel %vm78, %v77, %v75
    %80 = vrot.lane.b32.xlu0 %v79, 104
    %v81 = vpop.permute.xlu0 %80
    %vm82 = vcmask 31744
    %s83 = scalar_lea.vmem [#allocation0], 40
    %84 = vst.msk [vmem:[%s83] sm:$0x1] %vm82, %v81
    %vm85 = vcmask 1048384
    %s86 = scalar_lea.vmem [#allocation0], 32
    %87 = vst.msk [vmem:[%s86] sm:$0x1] %vm85, %v81
    %s88 = scalar_lea.vmem %s0, 8
    %v89 = vld [vmem:[%s88] sm:$0x1]
    %90 = vrot.lane.b32.xlu0 %v89, 96
    %v91 = vpop.permute.xlu0 %90
    %vm92 = vcmask 1015552
    %s93 = scalar_lea.vmem [#allocation0], 8
    %94 = vst.msk [vmem:[%s93] sm:$0x1] %vm92, %v91
    %s95 = scalar_lea.vmem %s0, 17
    %v96 = vld [vmem:[%s95] sm:$0x1]
    %97 = vrot.lane.b32.xlu0 %v96, 92
    %v98 = vpop.permute.xlu0 %97
    %vm99 = vcmask 982752
    %s100 = scalar_lea.vmem [#allocation0], 24
    %101 = vst.msk [vmem:[%s100] sm:$0x1] %vm99, %v98
    %s102 = scalar_lea.vmem %s0, 26
    %v103 = vld [vmem:[%s102] sm:$0x1]
    %104 = vrot.lane.b32.xlu0 %v103, 88
    %v105 = vpop.permute.xlu0 %104
    %vm106 = vcmask 949952
    %s107 = scalar_lea.vmem [#allocation0], 40
    %108 = vst.msk [vmem:[%s107] sm:$0x1] %vm106, %v105
    %s109 = scalar_lea.vmem %s0, 3
    %v110 = vld [vmem:[%s109] sm:$0x1]
    %111 = vrot.lane.b32.xlu0 %v110, 84
    %v112 = vpop.permute.xlu0 %111
    %vm113 = vcmask 917152
    %114 = vst.msk [vmem:[#allocation0] sm:$0x1] %vm113, %v112
    %s115 = scalar_lea.vmem %s0, 12
    %v116 = vld [vmem:[%s115] sm:$0x1]
    %117 = vrot.lane.b32.xlu0 %v116, 80
    %v118 = vpop.permute.xlu0 %117
    %vm119 = vcmask 884352
    %s120 = scalar_lea.vmem [#allocation0], 16
    %121 = vst.msk [vmem:[%s120] sm:$0x1] %vm119, %v118
    %s122 = scalar_lea.vmem %s0, 21
    %v123 = vld [vmem:[%s122] sm:$0x1]
    %124 = vrot.lane.b32.xlu0 %v123, 76
    %v125 = vpop.permute.xlu0 %124
    %vm126 = vcmask 851552
    %s127 = scalar_lea.vmem [#allocation0], 32
    %128 = vst.msk [vmem:[%s127] sm:$0x1] %vm126, %v125
    %s129 = scalar_lea.vmem %s0, 7
    %v130 = vld [vmem:[%s129] sm:$0x1]
    %131 = vrot.lane.b32.xlu0 %v130, 68
    %v132 = vpop.permute.xlu0 %131
    %vm133 = vcmask 785952
    %s134 = scalar_lea.vmem [#allocation0], 8
    %135 = vst.msk [vmem:[%s134] sm:$0x1] %vm133, %v132
    %s136 = scalar_lea.vmem %s0, 16
    %v137 = vld [vmem:[%s136] sm:$0x1]
    %138 = vrot.lane.b32.xlu0 %v137, 64
    %v139 = vpop.permute.xlu0 %138
    %vm140 = vcmask 753152
    %s141 = scalar_lea.vmem [#allocation0], 24
    %142 = vst.msk [vmem:[%s141] sm:$0x1] %vm140, %v139
    %s143 = scalar_lea.vmem %s0, 25
    %v144 = vld [vmem:[%s143] sm:$0x1]
    %145 = vrot.lane.b32.xlu0 %v144, 60
    %v146 = vpop.permute.xlu0 %145
    %vm147 = vcmask 720352
    %s148 = scalar_lea.vmem [#allocation0], 40
    %149 = vst.msk [vmem:[%s148] sm:$0x1] %vm147, %v146
    %s150 = scalar_lea.vmem %s0, 2
    %v151 = vld [vmem:[%s150] sm:$0x1]
    %152 = vrot.lane.b32.xlu0 %v151, 56
    %v153 = vpop.permute.xlu0 %152
    %vm154 = vcmask 687552
    %155 = vst.msk [vmem:[#allocation0] sm:$0x1] %vm154, %v153
    %s156 = scalar_lea.vmem %s0, 11
    %v157 = vld [vmem:[%s156] sm:$0x1]
    %158 = vrot.lane.b32.xlu0 %v157, 52
    %v159 = vpop.permute.xlu0 %158
    %vm160 = vcmask 654752
    %s161 = scalar_lea.vmem [#allocation0], 16
    %162 = vst.msk [vmem:[%s161] sm:$0x1] %vm160, %v159
    %s163 = scalar_lea.vmem %s0, 20
    %v164 = vld [vmem:[%s163] sm:$0x1]
    %165 = vrot.lane.b32.xlu0 %v164, 48
    %v166 = vpop.permute.xlu0 %165
    %vm167 = vcmask 621952
    %s168 = scalar_lea.vmem [#allocation0], 32
    %169 = vst.msk [vmem:[%s168] sm:$0x1] %vm167, %v166
    %s170 = scalar_lea.vmem %s0, 6
    %v171 = vld [vmem:[%s170] sm:$0x1]
    %172 = vrot.lane.b32.xlu0 %v171, 40
    %v173 = vpop.permute.xlu0 %172
    %vm174 = vcmask 556352
    %s175 = scalar_lea.vmem [#allocation0], 8
    %176 = vst.msk [vmem:[%s175] sm:$0x1] %vm174, %v173
    %s177 = scalar_lea.vmem %s0, 15
    %v178 = vld [vmem:[%s177] sm:$0x1]
    %179 = vrot.lane.b32.xlu0 %v178, 36
    %v180 = vpop.permute.xlu0 %179
    %vm181 = vcmask 523552
    %s182 = scalar_lea.vmem [#allocation0], 24
    %183 = vst.msk [vmem:[%s182] sm:$0x1] %vm181, %v180
    %s184 = scalar_lea.vmem %s0, 24
    %v185 = vld [vmem:[%s184] sm:$0x1]
    %186 = vrot.lane.b32.xlu0 %v185, 32
    %v187 = vpop.permute.xlu0 %186
    %vm188 = vcmask 490752
    %s189 = scalar_lea.vmem [#allocation0], 40
    %190 = vst.msk [vmem:[%s189] sm:$0x1] %vm188, %v187
    %s191 = scalar_lea.vmem %s0, 1
    %v192 = vld [vmem:[%s191] sm:$0x1]
    %193 = vrot.lane.b32.xlu0 %v192, 28
    %v194 = vpop.permute.xlu0 %193
    %vm195 = vcmask 457952
    %196 = vst.msk [vmem:[#allocation0] sm:$0x1] %vm195, %v194
    %s197 = scalar_lea.vmem %s0, 10
    %v198 = vld [vmem:[%s197] sm:$0x1]
    %199 = vrot.lane.b32.xlu0 %v198, 24
    %v200 = vpop.permute.xlu0 %199
    %vm201 = vcmask 425152
    %s202 = scalar_lea.vmem [#allocation0], 16
    %203 = vst.msk [vmem:[%s202] sm:$0x1] %vm201, %v200
    %s204 = scalar_lea.vmem %s0, 19
    %v205 = vld [vmem:[%s204] sm:$0x1]
    %206 = vrot.lane.b32.xlu0 %v205, 20
    %v207 = vpop.permute.xlu0 %206
    %vm208 = vcmask 392352
    %s209 = scalar_lea.vmem [#allocation0], 32
    %210 = vst.msk [vmem:[%s209] sm:$0x1] %vm208, %v207
    %s211 = scalar_lea.vmem %s0, 5
    %v212 = vld [vmem:[%s211] sm:$0x1]
    %213 = vrot.lane.b32.xlu0 %v212, 12
    %v214 = vpop.permute.xlu0 %213
    %vm215 = vcmask 326752
    %s216 = scalar_lea.vmem [#allocation0], 8
    %217 = vst.msk [vmem:[%s216] sm:$0x1] %vm215, %v214
    %s218 = scalar_lea.vmem %s0, 14
    %v219 = vld [vmem:[%s218] sm:$0x1]
    %220 = vrot.lane.b32.xlu0 %v219, 8
    %v221 = vpop.permute.xlu0 %220
    %vm222 = vcmask 293952
    %s223 = scalar_lea.vmem [#allocation0], 24
    %224 = vst.msk [vmem:[%s223] sm:$0x1] %vm222, %v221
    %s225 = scalar_lea.vmem %s0, 23
    %v226 = vld [vmem:[%s225] sm:$0x1]
    %227 = vrot.lane.b32.xlu0 %v226, 4
    %v228 = vpop.permute.xlu0 %227
    %vm229 = vcmask 261152
    %s230 = scalar_lea.vmem [#allocation0], 40
    %231 = vst.msk [vmem:[%s230] sm:$0x1] %vm229, %v228
    %s233 = sshll.u32 1, 1
    %s234 = ssub.s32 %s233, 1
    %v236 = vld [vmem:[#allocation0] sm:%s234]
    %s237 = sshll.u32 1, 1
    %s238 = ssub.s32 %s237, 1
    %239 = vst [vmem:[%s1] sm:%s238] %v236
    %s240 = scalar_lea.vmem [#allocation0], 8
    %v241 = vld [vmem:[%s240] sm:%s234]
    %s242 = sshll.u32 1, 1
    %s243 = ssub.s32 %s242, 1
    %s244 = scalar_lea.vmem %s1, 1
    %245 = vst [vmem:[%s244] sm:%s243] %v241
    %s246 = scalar_lea.vmem [#allocation0], 16
    %v247 = vld [vmem:[%s246] sm:%s234]
    %s248 = sshll.u32 1, 1
    %s249 = ssub.s32 %s248, 1
    %s250 = smul.addr 1, 2
    %s251 = scalar_lea.vmem %s1, %s250
    %252 = vst [vmem:[%s251] sm:%s249] %v247
    %s253 = scalar_lea.vmem [#allocation0], 24
    %v254 = vld [vmem:[%s253] sm:%s234]
    %s255 = sshll.u32 1, 1
    %s256 = ssub.s32 %s255, 1
    %s257 = smul.addr 1, 3
    %s258 = scalar_lea.vmem %s1, %s257
    %259 = vst [vmem:[%s258] sm:%s256] %v254
    %s260 = scalar_lea.vmem [#allocation0], 32
    %v261 = vld [vmem:[%s260] sm:%s234]
    %s262 = sshll.u32 1, 1
    %s263 = ssub.s32 %s262, 1
    %s264 = smul.addr 1, 4
    %s265 = scalar_lea.vmem %s1, %s264
    %266 = vst [vmem:[%s265] sm:%s263] %v261
    %s267 = scalar_lea.vmem [#allocation0], 40
    %v268 = vld [vmem:[%s267] sm:%s234]
    %s269 = sshll.u32 1, 1
    %s270 = ssub.s32 %s269, 1
    %s271 = smul.addr 1, 5
    %s272 = scalar_lea.vmem %s1, %s271
    %273 = vst [vmem:[%s272] sm:%s270] %v268
    %s274 = scalar_lea.vmem [#allocation0], 48
    %v275 = vld [vmem:[%s274] sm:%s234]
    %s276 = sshll.u32 1, 1
    %s277 = ssub.s32 %s276, 1
    %s278 = smul.addr 1, 6
    %s279 = scalar_lea.vmem %s1, %s278
    %280 = vst [vmem:[%s279] sm:%s277] %v275

// kernel: forward.8
$region0: #{forward.8}
  #allocation0 [shape = 'u32[]', space=smem, size = 0x4, offset = 0x4, fixed_abs, tag = 'smem constant byte address 0x4 - core index']
  #allocation1 [shape = 'u32[144,128]{1,0:T(1,128)}', space=vmem, size = 0x12000, scoped, tag = 'internal scratch']
  %s0 = inlined_call_operand.vmem [shape: bf16[18,200], index: 0, kind: input, shape index: {}]
  %s1 = inlined_call_operand.vmem [shape: bf16[18,200], index: 1, kind: input, shape index: {}]
  %s2 = inlined_call_operand.vmem [shape: bf16[18,200], index: 2, kind: input, shape index: {}]
  %s3 = inlined_call_operand.vmem [shape: bf16[18,200], index: 3, kind: input, shape index: {}]
  %s4 = inlined_call_operand.vmem [shape: bf16[200,10], index: 4, kind: input, shape index: {}]
  %s5 = inlined_call_operand.vmem [shape: f32[1,10], index: 5, kind: input, shape index: {}]
  %s6 = inlined_call_operand.vmem [shape: bf16[18,10], index: 6, kind: output, shape index: {}]
  %s7 = sld [smem:[#allocation0]]
  $region101: #{forward.8} parent=0
    _
  %s9 = ssub.s32 1, %s7
  %s10 = scalar_select 0, %s9, %s7
  $region1: #{forward.8} parent=0
    #allocation2 [shape = 'u8[8192]{0}', space=vmem, size = 0x2000, scoped, tag = 'output window, operand 0']
    loop: start=0, step=1, limit=4
    $region2: #{forward.8} parent=1 // loop_pre_header
      _
    $region3: #{forward.8} parent=1 // loop_header
      %s12 = sphi 0, %s16
      %p13 = scmp.ge.s32.totalorder %s12, 4
      %s22 = sphi 0, %s24
      %s25 = sphi 0, %s22
      %s26 = sphi 0, %s25
      %s42 = sphi 0, %s26
      %s48 = sphi 0, %s50
      %s51 = sphi 0, %s48
      %s52 = sphi 0, %s51
      %s68 = sphi 0, %s52
      %s74 = sphi 0, %s76
      %s77 = sphi 0, %s74
      %s78 = sphi 0, %s77
      %s94 = sphi 0, %s78
      %s100 = sphi 0, %s102
      %s103 = sphi 0, %s100
      %s104 = sphi 0, %s103
      %s120 = sphi 0, %s104
      %s124 = sphi 0, %s124
      %s126 = sphi 0, %s124
      %s127 = sphi 0, %s126
      %s141 = sphi 0, %s127
      %s145 = sphi 0, %s145
      %s147 = sphi 0, %s145
      %s148 = sphi 0, %s147
      %s162 = sphi 0, %s148
      %s168 = sphi 0, %s170
      %s171 = sphi 0, %s168
      %s172 = sphi 0, %s171
      %s188 = sphi 0, %s172
    $region4: #{forward.8} parent=1 // loop_header_branch
      %15 = sbr.rel (%p13) target = $region8
    $region5: #{forward.8} parent=1 // loop_body
      %s17 = ssub.s32 %s12, 1
      %s18 = ssub.s32 %s12, 2
      %s19 = sadd.s32 %s12, 1
      %s20 = ssub.s32 %s12, %s19
      %p21 = scmp.eq.s32.totalorder %s20, 0
      %s23 = sadd.s32 %s22, 1
      %s24 = scalar_select %p21, %s22, %s23
      %p27 = pneg %p21
      %p28 = scmp.eq.s32.totalorder %s12, 1
      %p29 = por %p27, %p28
      %p30 = scmp.ne.s32.totalorder %s22, %s25
      %p31 = scmp.eq.s32.totalorder %s12, 0
      %p32 = por %p30, %p31
      %p33 = scmp.ne.s32.totalorder %s22, %s25
      %p34 = scmp.eq.s32.totalorder %s17, 1
      %p35 = por %p33, %p34
      %p36 = scmp.ne.s32.totalorder %s25, %s26
      %p37 = scmp.eq.s32.totalorder %s17, 0
      %p38 = por %p36, %p37
      %p39 = scmp.ne.s32.totalorder %s25, %s26
      %p40 = scmp.eq.s32.totalorder %s18, 1
      %p41 = por %p39, %p40
      %p43 = scmp.ne.s32.totalorder %s26, %s42
      %p44 = scmp.eq.s32.totalorder %s18, 0
      %p45 = por %p43, %p44
      %s46 = ssub.s32 %s12, %s19
      %p47 = scmp.eq.s32.totalorder %s46, 0
      %s49 = sadd.s32 %s48, 1
      %s50 = scalar_select %p47, %s48, %s49
      %p53 = pneg %p47
      %p54 = scmp.eq.s32.totalorder %s12, 1
      %p55 = por %p53, %p54
      %p56 = scmp.ne.s32.totalorder %s48, %s51
      %p57 = scmp.eq.s32.totalorder %s12, 0
      %p58 = por %p56, %p57
      %p59 = scmp.ne.s32.totalorder %s48, %s51
      %p60 = scmp.eq.s32.totalorder %s17, 1
      %p61 = por %p59, %p60
      %p62 = scmp.ne.s32.totalorder %s51, %s52
      %p63 = scmp.eq.s32.totalorder %s17, 0
      %p64 = por %p62, %p63
      %p65 = scmp.ne.s32.totalorder %s51, %s52
      %p66 = scmp.eq.s32.totalorder %s18, 1
      %p67 = por %p65, %p66
      %p69 = scmp.ne.s32.totalorder %s52, %s68
      %p70 = scmp.eq.s32.totalorder %s18, 0
      %p71 = por %p69, %p70
      %s72 = ssub.s32 %s12, %s19
      %p73 = scmp.eq.s32.totalorder %s72, 0
      %s75 = sadd.s32 %s74, 1
      %s76 = scalar_select %p73, %s74, %s75
      %p79 = pneg %p73
      %p80 = scmp.eq.s32.totalorder %s12, 1
      %p81 = por %p79, %p80
      %p82 = scmp.ne.s32.totalorder %s74, %s77
      %p83 = scmp.eq.s32.totalorder %s12, 0
      %p84 = por %p82, %p83
      %p85 = scmp.ne.s32.totalorder %s74, %s77
      %p86 = scmp.eq.s32.totalorder %s17, 1
      %p87 = por %p85, %p86
      %p88 = scmp.ne.s32.totalorder %s77, %s78
      %p89 = scmp.eq.s32.totalorder %s17, 0
      %p90 = por %p88, %p89
      %p91 = scmp.ne.s32.totalorder %s77, %s78
      %p92 = scmp.eq.s32.totalorder %s18, 1
      %p93 = por %p91, %p92
      %p95 = scmp.ne.s32.totalorder %s78, %s94
      %p96 = scmp.eq.s32.totalorder %s18, 0
      %p97 = por %p95, %p96
      %s98 = ssub.s32 %s12, %s19
      %p99 = scmp.eq.s32.totalorder %s98, 0
      %s101 = sadd.s32 %s100, 1
      %s102 = scalar_select %p99, %s100, %s101
      %p105 = pneg %p99
      %p106 = scmp.eq.s32.totalorder %s12, 1
      %p107 = por %p105, %p106
      %p108 = scmp.ne.s32.totalorder %s100, %s103
      %p109 = scmp.eq.s32.totalorder %s12, 0
      %p110 = por %p108, %p109
      %p111 = scmp.ne.s32.totalorder %s100, %s103
      %p112 = scmp.eq.s32.totalorder %s17, 1
      %p113 = por %p111, %p112
      %p114 = scmp.ne.s32.totalorder %s103, %s104
      %p115 = scmp.eq.s32.totalorder %s17, 0
      %p116 = por %p114, %p115
      %p117 = scmp.ne.s32.totalorder %s103, %s104
      %p118 = scmp.eq.s32.totalorder %s18, 1
      %p119 = por %p117, %p118
      %p121 = scmp.ne.s32.totalorder %s104, %s120
      %p122 = scmp.eq.s32.totalorder %s18, 0
      %p123 = por %p121, %p122
      %s125 = sadd.s32 %s124, 1
      %p128 = scmp.eq.s32.totalorder %s12, 1
      %p129 = scmp.ne.s32.totalorder %s124, %s126
      %p130 = scmp.eq.s32.totalorder %s12, 0
      %p131 = por %p129, %p130
      %p132 = scmp.ne.s32.totalorder %s124, %s126
      %p133 = scmp.eq.s32.totalorder %s17, 1
      %p134 = por %p132, %p133
      %p135 = scmp.ne.s32.totalorder %s126, %s127
      %p136 = scmp.eq.s32.totalorder %s17, 0
      %p137 = por %p135, %p136
      %p138 = scmp.ne.s32.totalorder %s126, %s127
      %p139 = scmp.eq.s32.totalorder %s18, 1
      %p140 = por %p138, %p139
      %p142 = scmp.ne.s32.totalorder %s127, %s141
      %p143 = scmp.eq.s32.totalorder %s18, 0
      %p144 = por %p142, %p143
      %s146 = sadd.s32 %s145, 1
      %p149 = scmp.eq.s32.totalorder %s12, 1
      %p150 = scmp.ne.s32.totalorder %s145, %s147
      %p151 = scmp.eq.s32.totalorder %s12, 0
      %p152 = por %p150, %p151
      %p153 = scmp.ne.s32.totalorder %s145, %s147
      %p154 = scmp.eq.s32.totalorder %s17, 1
      %p155 = por %p153, %p154
      %p156 = scmp.ne.s32.totalorder %s147, %s148
      %p157 = scmp.eq.s32.totalorder %s17, 0
      %p158 = por %p156, %p157
      %p159 = scmp.ne.s32.totalorder %s147, %s148
      %p160 = scmp.eq.s32.totalorder %s18, 1
      %p161 = por %p159, %p160
      %p163 = scmp.ne.s32.totalorder %s148, %s162
      %p164 = scmp.eq.s32.totalorder %s18, 0
      %p165 = por %p163, %p164
      %s166 = ssub.s32 %s12, %s19
      %p167 = scmp.eq.s32.totalorder %s166, 0
      %s169 = sadd.s32 %s168, 1
      %s170 = scalar_select %p167, %s168, %s169
      %p173 = pneg %p167
      %p174 = scmp.eq.s32.totalorder %s12, 1
      %p175 = por %p173, %p174
      %p176 = scmp.ne.s32.totalorder %s168, %s171
      %p177 = scmp.eq.s32.totalorder %s12, 0
      %p178 = por %p176, %p177
      %p179 = scmp.ne.s32.totalorder %s168, %s171
      %p180 = scmp.eq.s32.totalorder %s17, 1
      %p181 = por %p179, %p180
      %p182 = scmp.ne.s32.totalorder %s171, %s172
      %p183 = scmp.eq.s32.totalorder %s17, 0
      %p184 = por %p182, %p183
      %p185 = scmp.ne.s32.totalorder %s171, %s172
      %p186 = scmp.eq.s32.totalorder %s18, 1
      %p187 = por %p185, %p186
      %p189 = scmp.ne.s32.totalorder %s172, %s188
      %p190 = scmp.eq.s32.totalorder %s18, 0
      %p191 = por %p189, %p190
      %p192 = scmp.le.s32.totalorder 1, %s12
      %p193 = scmp.lt.s32.totalorder %s12, 3
      %p194 = pnand %p192, %p193
      %p195 = pneg %p194
      // Predicated region
      $region9: #{forward.8} parent=5 // pred_check
        _
      $region10: #{forward.8} parent=5 // pred_check_branch
        %197 = sbr.rel (%p194) target = $region12
      $region11: #{forward.8} parent=5 // pred_region
        %s198 = ssub.s32 %s12, 1
        // Predicated region
        $region13: #{forward.8} parent=11 // pred_check
          %p199 = pneg %p137
        $region14: #{forward.8} parent=11 // pred_check_branch
          %201 = sbr.rel (%p199) target = $region16
        $region15: #{forward.8} parent=11 // pred_region
          _
        $region16: #{forward.8} parent=11 // pred_fallthru
          _
        // Predicated region
        $region17: #{forward.8} parent=11 // pred_check
          %p202 = pneg %p158
        $region18: #{forward.8} parent=11 // pred_check_branch
          %204 = sbr.rel (%p202) target = $region20
        $region19: #{forward.8} parent=11 // pred_region
          _
        $region20: #{forward.8} parent=11 // pred_fallthru
          _
      $region12: #{forward.8} parent=5 // pred_fallthru
        _
      %p205 = scmp.lt.s32.totalorder %s12, 2
      // Predicated region
      $region21: #{forward.8} parent=5 // pred_check
        %p206 = pneg %p205
      $region22: #{forward.8} parent=5 // pred_check_branch
        %208 = sbr.rel (%p206) target = $region24
      $region23: #{forward.8} parent=5 // pred_region
        // Predicated region
        $region25: #{forward.8} parent=23 // pred_check
          %p209 = pneg %p32
        $region26: #{forward.8} parent=23 // pred_check_branch
          %211 = sbr.rel (%p209) target = $region28
        $region27: #{forward.8} parent=23 // pred_region
          %s212 = smul.u32 2, %s12
          %s213 = ssub.s32 3, %s212
          %p214 = scmp.lt.s32.totalorder %s213, 2
          %s215 = scalar_select %p214, %s213, 2
          %s216 = smul.u32 64, %s215
          %s217 = smul.u32 %s216, 2
          %p218 = scmp.lt.s32.totalorder %s212, 2
          %s219 = scalar_select %p218, %s212, 2
          %s220 = smul.addr %s219, 2
          %s221 = smul.addr %s220, 4
          %s222 = scalar_lea.vmem %s0, %s221
          %s223 = smul.u32 2, %s12
          %s224 = ssub.s32 3, %s223
          %p225 = scmp.lt.s32.totalorder %s224, 2
          %s226 = scalar_select %p225, %s224, 2
          %s227 = smul.u32 64, %s226
          %s228 = smul.u32 %s227, 2
        $region28: #{forward.8} parent=23 // pred_fallthru
          _
        // Predicated region
        $region29: #{forward.8} parent=23 // pred_check
          %p229 = pneg %p58
        $region30: #{forward.8} parent=23 // pred_check_branch
          %231 = sbr.rel (%p229) target = $region32
        $region31: #{forward.8} parent=23 // pred_region
          %s232 = smul.u32 2, %s12
          %s233 = ssub.s32 3, %s232
          %p234 = scmp.lt.s32.totalorder %s233, 2
          %s235 = scalar_select %p234, %s233, 2
          %s236 = smul.u32 64, %s235
          %s237 = smul.u32 %s236, 2
          %p238 = scmp.lt.s32.totalorder %s232, 2
          %s239 = scalar_select %p238, %s232, 2
          %s240 = smul.addr %s239, 2
          %s241 = smul.addr %s240, 4
          %s242 = scalar_lea.vmem %s1, %s241
          %s243 = smul.u32 2, %s12
          %s244 = ssub.s32 3, %s243
          %p245 = scmp.lt.s32.totalorder %s244, 2
          %s246 = scalar_select %p245, %s244, 2
          %s247 = smul.u32 64, %s246
          %s248 = smul.u32 %s247, 2
        $region32: #{forward.8} parent=23 // pred_fallthru
          _
        // Predicated region
        $region33: #{forward.8} parent=23 // pred_check
          %p249 = pneg %p84
        $region34: #{forward.8} parent=23 // pred_check_branch
          %251 = sbr.rel (%p249) target = $region36
        $region35: #{forward.8} parent=23 // pred_region
          %s252 = smul.u32 2, %s12
          %s253 = ssub.s32 3, %s252
          %p254 = scmp.lt.s32.totalorder %s253, 2
          %s255 = scalar_select %p254, %s253, 2
          %s256 = smul.u32 64, %s255
          %s257 = smul.u32 %s256, 2
          %p258 = scmp.lt.s32.totalorder %s252, 2
          %s259 = scalar_select %p258, %s252, 2
          %s260 = smul.addr %s259, 2
          %s261 = smul.addr %s260, 4
          %s262 = scalar_lea.vmem %s2, %s261
          %s263 = smul.u32 2, %s12
          %s264 = ssub.s32 3, %s263
          %p265 = scmp.lt.s32.totalorder %s264, 2
          %s266 = scalar_select %p265, %s264, 2
          %s267 = smul.u32 64, %s266
          %s268 = smul.u32 %s267, 2
        $region36: #{forward.8} parent=23 // pred_fallthru
          _
        // Predicated region
        $region37: #{forward.8} parent=23 // pred_check
          %p269 = pneg %p110
        $region38: #{forward.8} parent=23 // pred_check_branch
          %271 = sbr.rel (%p269) target = $region40
        $region39: #{forward.8} parent=23 // pred_region
          %s272 = smul.u32 2, %s12
          %s273 = ssub.s32 3, %s272
          %p274 = scmp.lt.s32.totalorder %s273, 2
          %s275 = scalar_select %p274, %s273, 2
          %s276 = smul.u32 64, %s275
          %s277 = smul.u32 %s276, 2
          %p278 = scmp.lt.s32.totalorder %s272, 2
          %s279 = scalar_select %p278, %s272, 2
          %s280 = smul.addr %s279, 2
          %s281 = smul.addr %s280, 4
          %s282 = scalar_lea.vmem %s3, %s281
          %s283 = smul.u32 2, %s12
          %s284 = ssub.s32 3, %s283
          %p285 = scmp.lt.s32.totalorder %s284, 2
          %s286 = scalar_select %p285, %s284, 2
          %s287 = smul.u32 64, %s286
          %s288 = smul.u32 %s287, 2
        $region40: #{forward.8} parent=23 // pred_fallthru
          _
      $region24: #{forward.8} parent=5 // pred_fallthru
        _
      %p289 = scmp.le.s32.totalorder 1, %s12
      %p290 = scmp.lt.s32.totalorder %s12, 3
      %p291 = pnand %p289, %p290
      %p292 = pneg %p291
      // Predicated region
      $region41: #{forward.8} parent=5 // pred_check
        _
      $region42: #{forward.8} parent=5 // pred_check_branch
        %294 = sbr.rel (%p291) target = $region44
      $region43: #{forward.8} parent=5 // pred_region
        %s295 = ssub.s32 %s12, 1
        %s296 = smul.u32 2, %s17
        %s297 = ssub.s32 3, %s296
        %p298 = scmp.lt.s32.totalorder %s297, 2
        %s299 = scalar_select %p298, %s297, 2
        %s300 = smul.u32 64, %s299
        %s301 = smul.u32 %s300, 2
        %p302 = scmp.lt.s32.totalorder %s296, 2
        %s303 = scalar_select %p302, %s296, 2
        %s304 = smul.addr %s303, 2
        %s305 = smul.addr %s304, 4
        %s306 = scalar_lea.vmem %s0, %s305
        %p307 = pneg %p38
        %p308 = pneg %p35
        %s309 = smul.u32 2, %s17
        %s310 = ssub.s32 3, %s309
        %p311 = scmp.lt.s32.totalorder %s310, 2
        %s312 = scalar_select %p311, %s310, 2
        %s313 = smul.u32 64, %s312
        %s314 = smul.u32 %s313, 2
        %p315 = scmp.lt.s32.totalorder %s309, 2
        %s316 = scalar_select %p315, %s309, 2
        %s317 = smul.addr %s316, 2
        %s318 = smul.addr %s317, 4
        %s319 = scalar_lea.vmem %s1, %s318
        %p320 = pneg %p64
        %p321 = pneg %p61
        %s322 = smul.u32 2, %s17
        %s323 = ssub.s32 3, %s322
        %p324 = scmp.lt.s32.totalorder %s323, 2
        %s325 = scalar_select %p324, %s323, 2
        %s326 = smul.u32 64, %s325
        %s327 = smul.u32 %s326, 2
        %p328 = scmp.lt.s32.totalorder %s322, 2
        %s329 = scalar_select %p328, %s322, 2
        %s330 = smul.addr %s329, 2
        %s331 = smul.addr %s330, 4
        %s332 = scalar_lea.vmem %s2, %s331
        %p333 = pneg %p90
        %p334 = pneg %p87
        %s335 = smul.u32 2, %s17
        %s336 = ssub.s32 3, %s335
        %p337 = scmp.lt.s32.totalorder %s336, 2
        %s338 = scalar_select %p337, %s336, 2
        %s339 = smul.u32 64, %s338
        %s340 = smul.u32 %s339, 2
        %p341 = scmp.lt.s32.totalorder %s335, 2
        %s342 = scalar_select %p341, %s335, 2
        %s343 = smul.addr %s342, 2
        %s344 = smul.addr %s343, 4
        %s345 = scalar_lea.vmem %s3, %s344
        %p346 = pneg %p116
        %p347 = pneg %p113
        %p348 = pneg %p137
        %p349 = pneg %p134
        %p350 = pneg %p158
        %p351 = pneg %p155
        %p352 = pneg %p184
        %p353 = pneg %p181
        %s354 = sand.u32 %s171, 1
        %s355 = sand.u32 %s171, 1
        %s356 = smul.addr %s355, 8
        %s357 = scalar_lea.vmem [#allocation2], %s356
        %s358 = smul.u32 2, %s17
        %s359 = ssub.s32 3, %s358
        %p360 = scmp.lt.s32.totalorder %s359, 2
        %s361 = scalar_select %p360, %s359, 2
        %s362 = smul.u32 64, %s361
        %s363 = smul.u32 %s362, 2
        %p364 = scmp.lt.s32.totalorder %s358, 2
        %s365 = scalar_select %p364, %s358, 2
        %s366 = smul.addr %s365, 2
        %s367 = smul.addr %s366, 4
        %s368 = scalar_lea.vmem %s0, %s367
        %s369 = smul.u32 2, %s17
        %s370 = ssub.s32 3, %s369
        %p371 = scmp.lt.s32.totalorder %s370, 2
        %s372 = scalar_select %p371, %s370, 2
        %s373 = smul.u32 64, %s372
        %s374 = smul.u32 %s373, 2
        %s375 = smul.u32 2, %s17
        %s376 = ssub.s32 3, %s375
        %p377 = scmp.lt.s32.totalorder %s376, 2
        %s378 = scalar_select %p377, %s376, 2
        %s379 = smul.u32 64, %s378
        %s380 = smul.u32 %s379, 2
        %p381 = scmp.lt.s32.totalorder %s375, 2
        %s382 = scalar_select %p381, %s375, 2
        %s383 = smul.addr %s382, 2
        %s384 = smul.addr %s383, 4
        %s385 = scalar_lea.vmem %s1, %s384
        %s386 = smul.u32 2, %s17
        %s387 = ssub.s32 3, %s386
        %p388 = scmp.lt.s32.totalorder %s387, 2
        %s389 = scalar_select %p388, %s387, 2
        %s390 = smul.u32 64, %s389
        %s391 = smul.u32 %s390, 2
        %s392 = smul.u32 2, %s17
        %s393 = ssub.s32 3, %s392
        %p394 = scmp.lt.s32.totalorder %s393, 2
        %s395 = scalar_select %p394, %s393, 2
        %s396 = smul.u32 64, %s395
        %s397 = smul.u32 %s396, 2
        %p398 = scmp.lt.s32.totalorder %s392, 2
        %s399 = scalar_select %p398, %s392, 2
        %s400 = smul.addr %s399, 2
        %s401 = smul.addr %s400, 4
        %s402 = scalar_lea.vmem %s2, %s401
        %s403 = smul.u32 2, %s17
        %s404 = ssub.s32 3, %s403
        %p405 = scmp.lt.s32.totalorder %s404, 2
        %s406 = scalar_select %p405, %s404, 2
        %s407 = smul.u32 64, %s406
        %s408 = smul.u32 %s407, 2
        %s409 = smul.u32 2, %s17
        %s410 = ssub.s32 3, %s409
        %p411 = scmp.lt.s32.totalorder %s410, 2
        %s412 = scalar_select %p411, %s410, 2
        %s413 = smul.u32 64, %s412
        %s414 = smul.u32 %s413, 2
        %p415 = scmp.lt.s32.totalorder %s409, 2
        %s416 = scalar_select %p415, %s409, 2
        %s417 = smul.addr %s416, 2
        %s418 = smul.addr %s417, 4
        %s419 = scalar_lea.vmem %s3, %s418
        %s420 = smul.u32 2, %s17
        %s421 = ssub.s32 3, %s420
        %p422 = scmp.lt.s32.totalorder %s421, 2
        %s423 = scalar_select %p422, %s421, 2
        %s424 = smul.u32 64, %s423
        %s425 = smul.u32 %s424, 2
        %s426 = smul.u32 2, %s17
        %s427 = ssub.s32 3, %s426
        %p428 = scmp.lt.s32.totalorder %s427, 2
        %s429 = scalar_select %p428, %s427, 2
        %s430 = smul.u32 64, %s429
        %v432 = vld [vmem:[%s4] sm:$0xf]
        %v433 = vld [vmem:[%s4 + $0x4] sm:$0xf]
        %v434 = vld [vmem:[%s4 + $0x8] sm:$0xf]
        %v435 = vld [vmem:[%s4 + $0xc] sm:$0xf]
        %v436 = vld [vmem:[%s4 + $0x10] sm:$0xf]
        %v437 = vld [vmem:[%s4 + $0x14] sm:$0xf]
        %v438 = vld [vmem:[%s4 + $0x18] sm:$0xf]
        %v439 = vld [vmem:[%s4 + $0x1c] sm:$0xf]
        %v440 = vld [vmem:[%s4 + $0x20] sm:$0xf]
        %v441 = vld [vmem:[%s4 + $0x24] sm:$0xf]
        %v442 = vld [vmem:[%s4 + $0x28] sm:$0xf]
        %v443 = vld [vmem:[%s4 + $0x2c] sm:$0xf]
        %v444 = vld [vmem:[%s4 + $0x30] sm:$0xf]
        %v445 = vld [vmem:[%s4 + $0x34] sm:$0xf]
        %v446 = vld [vmem:[%s4 + $0x38] sm:$0xf]
        %v447 = vld [vmem:[%s4 + $0x3c] sm:$0xf]
        %v448 = vld [vmem:[%s4 + $0x40] sm:$0xf]
        %v449 = vld [vmem:[%s4 + $0x44] sm:$0xf]
        %v450 = vld [vmem:[%s4 + $0x48] sm:$0xf]
        %v451 = vld [vmem:[%s4 + $0x4c] sm:$0xf]
        %v452 = vld [vmem:[%s4 + $0x50] sm:$0xf]
        %v453 = vld [vmem:[%s4 + $0x54] sm:$0xf]
        %v454 = vld [vmem:[%s4 + $0x58] sm:$0xf]
        %v455 = vld [vmem:[%s4 + $0x5c] sm:$0xf]
        %v456 = vld [vmem:[%s4 + $0x60] sm:$0xf]
        %v457 = vld [vmem:[%s368] sm:$0xff]
        %v458 = vld [vmem:[%s368 + $0x8] sm:$0xff]
        %v461 = vunpack.c.l.b16 %v457
        %v462 = vunpack.c.h.b16 %v457
        %v463 = vunpack.c.l.b16 %v458
        %v464 = vunpack.c.h.b16 %v458
        %v465 = vpack.c.b16 %v463, %v461
        %v466 = vpack.c.b16 %v464, %v462
        %v493 = vunpack.c.l.b16 %v432
        %v494 = vunpack.c.l.b16 %v433
        %v495 = vunpack.c.l.b16 %v434
        %v496 = vunpack.c.l.b16 %v435
        %v497 = vunpack.c.l.b16 %v436
        %v498 = vunpack.c.l.b16 %v437
        %v499 = vunpack.c.l.b16 %v438
        %v500 = vunpack.c.l.b16 %v439
        %v501 = vunpack.c.l.b16 %v440
        %v502 = vunpack.c.l.b16 %v441
        %v503 = vunpack.c.l.b16 %v442
        %v504 = vunpack.c.l.b16 %v443
        %v505 = vunpack.c.l.b16 %v444
        %v506 = vunpack.c.l.b16 %v445
        %v507 = vunpack.c.l.b16 %v446
        %v508 = vunpack.c.l.b16 %v447
        %v509 = vunpack.c.l.b16 %v448
        %v510 = vunpack.c.l.b16 %v449
        %v511 = vunpack.c.l.b16 %v450
        %v512 = vunpack.c.l.b16 %v451
        %v513 = vunpack.c.l.b16 %v452
        %v514 = vunpack.c.l.b16 %v453
        %v515 = vunpack.c.l.b16 %v454
        %v516 = vunpack.c.l.b16 %v455
        %v517 = vunpack.c.l.b16 %v456
        %v518 = vpack.c.b16 %v494, %v493
        %v519 = vpack.c.b16 %v496, %v495
        %v520 = vpack.c.b16 %v498, %v497
        %v521 = vpack.c.b16 %v500, %v499
        %v522 = vpack.c.b16 %v502, %v501
        %v523 = vpack.c.b16 %v504, %v503
        %v524 = vpack.c.b16 %v506, %v505
        %v525 = vpack.c.b16 %v508, %v507
        %v526 = vpack.c.b16 %v510, %v509
        %v527 = vpack.c.b16 %v512, %v511
        %v528 = vpack.c.b16 %v514, %v513
        %v529 = vpack.c.b16 %v516, %v515
        %v530 = vpack.c.b16 %v517, %v517
        %vm543 = vcmask 588800
        %v545 = vsel %vm543, %v466, 0
        %vm547 = vcmask 1043456
        %v549 = vsel %vm547, %v530, 0
        %551 = vmatprep.subr.bf16.mxu0 0
        %552 = vmatpush1.bf16.msra.mxu0 %v525
        %553 = vmatprep.subr.bf16.mxu0 0
        %554 = vmatpush1.bf16.msra.mxu0 %v524
        %555 = vmatprep.subr.bf16.mxu0 0
        %556 = vmatpush1.bf16.msra.mxu0 %v523
        %557 = vmatprep.subr.bf16.mxu0 0
        %558 = vmatpush1.bf16.msra.mxu0 %v522
        %559 = vmatprep.subr.bf16.mxu0 0
        %560 = vmatpush1.bf16.msra.mxu0 %v521
        %561 = vmatprep.subr.bf16.mxu0 0
        %562 = vmatpush1.bf16.msra.mxu0 %v520
        %563 = vmatprep.subr.bf16.mxu0 0
        %564 = vmatpush1.bf16.msra.mxu0 %v519
        %565 = vmatprep.subr.bf16.mxu0 0
        %566 = vmatpush1.bf16.msra.mxu0 %v518
        %567 = vmatprep.subr.bf16.mxu0 0
        %568 = vmatpush2.bf16.msra.mxu0 0
        %569 = vmatprep.subr.bf16.mxu0 0
        %570 = vmatpush2.bf16.msra.mxu0 0
        %571 = vmatprep.subr.bf16.mxu0 0
        %572 = vmatpush2.bf16.msra.mxu0 0
        %573 = vmatprep.subr.bf16.mxu0 0
        %574 = vmatpush2.bf16.msra.mxu0 %v549
        %575 = vmatprep.subr.bf16.mxu0 0
        %576 = vmatpush2.bf16.msra.mxu0 %v529
        %577 = vmatprep.subr.bf16.mxu0 0
        %578 = vmatpush2.bf16.msra.mxu0 %v528
        %579 = vmatprep.subr.bf16.mxu0 0
        %580 = vmatpush2.bf16.msra.mxu0 %v527
        %581 = vmatprep.subr.bf16.mxu0 0
        %582 = vmatpush2.bf16.msra.mxu0 %v526
        %583 = vmatprep.mubr.bf16.mxu0 %v545
        %584 = vmatmul.mubr.bf16.gmra.mxu0 %v465
        %v585 = vpop.f32.mrf.mxu0
        %v586 = vadd.f32 0.0, %v585
        %v587 = vpop.f32.mrf.mxu0
        %v588 = vpop.f32.mrf.mxu0
        %v589 = vadd.f32 0.0, %v588
        %v590 = vpop.f32.mrf.mxu0
        %591 = vdwg.mxu0
        %v592 = vld [vmem:[%s385] sm:$0xff]
        %v593 = vld [vmem:[%s385 + $0x8] sm:$0xff]
        %v596 = vunpack.c.l.b16 %v592
        %v597 = vunpack.c.h.b16 %v592
        %v598 = vunpack.c.l.b16 %v593
        %v599 = vunpack.c.h.b16 %v593
        %v600 = vpack.c.b16 %v598, %v596
        %v601 = vpack.c.b16 %v599, %v597
        %v604 = vsel %vm543, %v601, 0
        %606 = vmatprep.subr.bf16.mxu0 0
        %607 = vmatpush1.bf16.msra.mxu0 %v525
        %608 = vmatprep.subr.bf16.mxu0 0
        %609 = vmatpush1.bf16.msra.mxu0 %v524
        %610 = vmatprep.subr.bf16.mxu0 0
        %611 = vmatpush1.bf16.msra.mxu0 %v523
        %612 = vmatprep.subr.bf16.mxu0 0
        %613 = vmatpush1.bf16.msra.mxu0 %v522
        %614 = vmatprep.subr.bf16.mxu0 0
        %615 = vmatpush1.bf16.msra.mxu0 %v521
        %616 = vmatprep.subr.bf16.mxu0 0
        %617 = vmatpush1.bf16.msra.mxu0 %v520
        %618 = vmatprep.subr.bf16.mxu0 0
        %619 = vmatpush1.bf16.msra.mxu0 %v519
        %620 = vmatprep.subr.bf16.mxu0 0
        %621 = vmatpush1.bf16.msra.mxu0 %v518
        %622 = vmatprep.subr.bf16.mxu0 0
        %623 = vmatpush2.bf16.msra.mxu0 0
        %624 = vmatprep.subr.bf16.mxu0 0
        %625 = vmatpush2.bf16.msra.mxu0 0
        %626 = vmatprep.subr.bf16.mxu0 0
        %627 = vmatpush2.bf16.msra.mxu0 0
        %628 = vmatprep.subr.bf16.mxu0 0
        %629 = vmatpush2.bf16.msra.mxu0 %v549
        %630 = vmatprep.subr.bf16.mxu0 0
        %631 = vmatpush2.bf16.msra.mxu0 %v529
        %632 = vmatprep.subr.bf16.mxu0 0
        %633 = vmatpush2.bf16.msra.mxu0 %v528
        %634 = vmatprep.subr.bf16.mxu0 0
        %635 = vmatpush2.bf16.msra.mxu0 %v527
        %636 = vmatprep.subr.bf16.mxu0 0
        %637 = vmatpush2.bf16.msra.mxu0 %v526
        %638 = vmatprep.mubr.bf16.mxu0 %v604
        %639 = vmatmul.mubr.bf16.gmra.mxu0 %v600
        %v640 = vpop.f32.mrf.mxu0
        %v641 = vadd.f32 0.0, %v640
        %v642 = vpop.f32.mrf.mxu0
        %v643 = vpop.f32.mrf.mxu0
        %v644 = vadd.f32 0.0, %v643
        %v645 = vpop.f32.mrf.mxu0
        %646 = vdwg.mxu0
        %v647 = vmax.f32 %v586, %v641
        %v648 = vmax.f32 %v589, %v644
        %v649 = vld [vmem:[%s402] sm:$0xff]
        %v650 = vld [vmem:[%s402 + $0x8] sm:$0xff]
        %v653 = vunpack.c.l.b16 %v649
        %v654 = vunpack.c.h.b16 %v649
        %v655 = vunpack.c.l.b16 %v650
        %v656 = vunpack.c.h.b16 %v650
        %v657 = vpack.c.b16 %v655, %v653
        %v658 = vpack.c.b16 %v656, %v654
        %v661 = vsel %vm543, %v658, 0
        %663 = vmatprep.subr.bf16.mxu0 0
        %664 = vmatpush1.bf16.msra.mxu0 %v525
        %665 = vmatprep.subr.bf16.mxu0 0
        %666 = vmatpush1.bf16.msra.mxu0 %v524
        %667 = vmatprep.subr.bf16.mxu0 0
        %668 = vmatpush1.bf16.msra.mxu0 %v523
        %669 = vmatprep.subr.bf16.mxu0 0
        %670 = vmatpush1.bf16.msra.mxu0 %v522
        %671 = vmatprep.subr.bf16.mxu0 0
        %672 = vmatpush1.bf16.msra.mxu0 %v521
        %673 = vmatprep.subr.bf16.mxu0 0
        %674 = vmatpush1.bf16.msra.mxu0 %v520
        %675 = vmatprep.subr.bf16.mxu0 0
        %676 = vmatpush1.bf16.msra.mxu0 %v519
        %677 = vmatprep.subr.bf16.mxu0 0
        %678 = vmatpush1.bf16.msra.mxu0 %v518
        %679 = vmatprep.subr.bf16.mxu0 0
        %680 = vmatpush2.bf16.msra.mxu0 0
        %681 = vmatprep.subr.bf16.mxu0 0
        %682 = vmatpush2.bf16.msra.mxu0 0
        %683 = vmatprep.subr.bf16.mxu0 0
        %684 = vmatpush2.bf16.msra.mxu0 0
        %685 = vmatprep.subr.bf16.mxu0 0
        %686 = vmatpush2.bf16.msra.mxu0 %v549
        %687 = vmatprep.subr.bf16.mxu0 0
        %688 = vmatpush2.bf16.msra.mxu0 %v529
        %689 = vmatprep.subr.bf16.mxu0 0
        %690 = vmatpush2.bf16.msra.mxu0 %v528
        %691 = vmatprep.subr.bf16.mxu0 0
        %692 = vmatpush2.bf16.msra.mxu0 %v527
        %693 = vmatprep.subr.bf16.mxu0 0
        %694 = vmatpush2.bf16.msra.mxu0 %v526
        %695 = vmatprep.mubr.bf16.mxu0 %v661
        %696 = vmatmul.mubr.bf16.gmra.mxu0 %v657
        %v697 = vpop.f32.mrf.mxu0
        %v698 = vadd.f32 0.0, %v697
        %v699 = vpop.f32.mrf.mxu0
        %v700 = vpop.f32.mrf.mxu0
        %v701 = vadd.f32 0.0, %v700
        %v702 = vpop.f32.mrf.mxu0
        %703 = vdwg.mxu0
        %v704 = vmax.f32 %v647, %v698
        %v705 = vmax.f32 %v648, %v701
        %v706 = vld [vmem:[%s419] sm:$0xff]
        %v707 = vld [vmem:[%s419 + $0x8] sm:$0xff]
        %v710 = vunpack.c.l.b16 %v706
        %v711 = vunpack.c.h.b16 %v706
        %v712 = vunpack.c.l.b16 %v707
        %v713 = vunpack.c.h.b16 %v707
        %v714 = vpack.c.b16 %v712, %v710
        %v715 = vpack.c.b16 %v713, %v711
        %v718 = vsel %vm543, %v715, 0
        %720 = vmatprep.subr.bf16.mxu0 0
        %721 = vmatpush1.bf16.msra.mxu0 %v525
        %722 = vmatprep.subr.bf16.mxu0 0
        %723 = vmatpush1.bf16.msra.mxu0 %v524
        %724 = vmatprep.subr.bf16.mxu0 0
        %725 = vmatpush1.bf16.msra.mxu0 %v523
        %726 = vmatprep.subr.bf16.mxu0 0
        %727 = vmatpush1.bf16.msra.mxu0 %v522
        %728 = vmatprep.subr.bf16.mxu0 0
        %729 = vmatpush1.bf16.msra.mxu0 %v521
        %730 = vmatprep.subr.bf16.mxu0 0
        %731 = vmatpush1.bf16.msra.mxu0 %v520
        %732 = vmatprep.subr.bf16.mxu0 0
        %733 = vmatpush1.bf16.msra.mxu0 %v519
        %734 = vmatprep.subr.bf16.mxu0 0
        %735 = vmatpush1.bf16.msra.mxu0 %v518
        %736 = vmatprep.subr.bf16.mxu0 0
        %737 = vmatpush2.bf16.msra.mxu0 0
        %738 = vmatprep.subr.bf16.mxu0 0
        %739 = vmatpush2.bf16.msra.mxu0 0
        %740 = vmatprep.subr.bf16.mxu0 0
        %741 = vmatpush2.bf16.msra.mxu0 0
        %742 = vmatprep.subr.bf16.mxu0 0
        %743 = vmatpush2.bf16.msra.mxu0 %v549
        %744 = vmatprep.subr.bf16.mxu0 0
        %745 = vmatpush2.bf16.msra.mxu0 %v529
        %746 = vmatprep.subr.bf16.mxu0 0
        %747 = vmatpush2.bf16.msra.mxu0 %v528
        %748 = vmatprep.subr.bf16.mxu0 0
        %749 = vmatpush2.bf16.msra.mxu0 %v527
        %750 = vmatprep.subr.bf16.mxu0 0
        %751 = vmatpush2.bf16.msra.mxu0 %v526
        %752 = vmatprep.mubr.bf16.mxu0 %v718
        %753 = vmatmul.mubr.bf16.gmra.mxu0 %v714
        %v754 = vpop.f32.mrf.mxu0
        %v755 = vadd.f32 0.0, %v754
        %v756 = vpop.f32.mrf.mxu0
        %v757 = vpop.f32.mrf.mxu0
        %v758 = vadd.f32 0.0, %v757
        %v759 = vpop.f32.mrf.mxu0
        %760 = vdwg.mxu0
        %v761 = vmax.f32 %v704, %v755
        %v762 = vmax.f32 %v705, %v758
        %v763 = vld [vmem:[%s5] sm:$0x1]
        %v765 = vlaneseq
        %v766 = vshrl.u32 %v765, 7
        %v767 = vsub.s32 0, %v766
        %v768 = vrot.slane %v763, %v767
        %v770 = vadd.f32 %v761, %v768
        %v771 = vadd.f32 %v762, %v768
        %v772 = vmax.f32 %v770, 0.0
        %v773 = vmax.f32 %v771, 0.0
        %v774 = vpack.c.bf16 %v773, %v772
        %v776 = vunpack.c.l.b16 %v774
        %v777 = vunpack.c.h.b16 %v774
        %v778 = vpack.c.b16 %v776, %v776
        %v779 = vpack.c.b16 %v777, %v777
        %vm782 = vcmask 76800
        %783 = vst.msk [vmem:[%s357] sm:$0xf] %vm782, %v778
        %784 = vst.msk [vmem:[%s357 + $0x4] sm:$0xf] %vm782, %v779
        %s785 = sand.u32 %s171, 1
        %s786 = sand.u32 %s171, 1
        %s787 = smul.addr %s786, 8
        %s788 = scalar_lea.vmem [#allocation2], %s787
        // Predicated region
        $region45: #{forward.8} parent=43 // pred_check
          %p789 = pneg %p181
        $region46: #{forward.8} parent=43 // pred_check_branch
          %791 = sbr.rel (%p789) target = $region48
        $region47: #{forward.8} parent=43 // pred_region
          %s792 = smul.u32 2, %s17
          %s793 = ssub.s32 3, %s792
          %p794 = scmp.lt.s32.totalorder %s793, 2
          %s795 = scalar_select %p794, %s793, 2
          %s796 = smul.u32 64, %s795
          %p797 = scmp.ne.s32.totalorder 0, %s796
          %s798 = smul.addr %s792, 4
          %s799 = scalar_lea.vmem %s6, %s798
          // Predicated region
          $region49: #{forward.8} parent=47 // pred_check
            %p800 = pneg %p797
          $region50: #{forward.8} parent=47 // pred_check_branch
            %802 = sbr.rel (%p800) target = $region52
          $region51: #{forward.8} parent=47 // pred_region
            // Predicated region
            $region53: #{forward.8} parent=51 // pred_check
              _
            $region54: #{forward.8} parent=51 // pred_check_branch
              %804 = sbr.rel target = $region56
            $region55: #{forward.8} parent=51 // pred_region
              // Predicated region
              $region75: #{forward.8} parent=55 // pred_check
                _
              $region76: #{forward.8} parent=55 // pred_check_branch
                %856 = sbr.rel (0) target = $region78
              $region77: #{forward.8} parent=55 // pred_region
                %s858 = ssub.s32 16, 1
                %s859 = sshrl.u32 %s795, 1
                // While loop
                $region79: #{forward.8} parent=77 // loop_pre_header
                  _
                $region80: #{forward.8} parent=77 // loop_header
                  %s861 = sphi 0, %s863
                  %p862 = scmp.ge.s32.totalorder %s861, %s859
                  %s866 = sphi 0, %s875
                  %s867 = sphi %s788, %s878
                  %s868 = sphi %s799, %s879
                $region81: #{forward.8} parent=77 // loop_header_branch
                  %865 = sbr.rel (%p862) target = $region85
                $region82: #{forward.8} parent=77 // loop_body
                  %v869 = vld [vmem:[%s867] sm:%s858]
                  %870 = vst [vmem:[%s868] sm:%s858] %v869
                  %v871 = vld [vmem:[%s867 + $0x4] sm:%s858]
                  %872 = vst [vmem:[%s868 + $0x4] sm:%s858] %v871
                  %s873 = sadd.s32 1, %s866
                  %p874 = scmp.ge.s32.totalorder %s873, %s859
                  %s875 = scalar_select %p874, 0, %s873
                  %s876 = smul.u32 %s875, 8
                  %s877 = smul.u32 %s875, 8
                  %s878 = scalar_lea.vmem %s788, %s876 [#allocation2]
                  %s879 = scalar_lea.vmem %s799, %s877
                $region83: #{forward.8} parent=77 // loop_footer
                  %s863 = sadd.s32 %s861, 1
                $region84: #{forward.8} parent=77 // loop_footer_branch
                  %860 = sbr.rel target = $region80
                $region85: #{forward.8} parent=77 // loop_exit
                  _
                %s880 = sshrl.u32 %s795, 1
                %s881 = sand.u32 %s795, 1
                %s882 = smul.u32 %s880, 2
                %s883 = smul.u32 4, %s882
                %s884 = scalar_lea.vmem %s788, %s883 [#allocation2]
                %s885 = smul.u32 4, %s882
                %s886 = scalar_lea.vmem %s799, %s885
                // While loop
                $region86: #{forward.8} parent=77 // loop_pre_header
                  _
                $region87: #{forward.8} parent=77 // loop_header
                  %s888 = sphi 0, %s890
                  %p889 = scmp.ge.s32.totalorder %s888, %s881
                  %s893 = sphi 0, %s900
                  %s894 = sphi %s884, %s903
                  %s895 = sphi %s886, %s904
                $region88: #{forward.8} parent=77 // loop_header_branch
                  %892 = sbr.rel (%p889) target = $region92
                $region89: #{forward.8} parent=77 // loop_body
                  %v896 = vld [vmem:[%s894] sm:%s858]
                  %897 = vst [vmem:[%s895] sm:%s858] %v896
                  %s898 = sadd.s32 1, %s893
                  %p899 = scmp.ge.s32.totalorder %s898, %s881
                  %s900 = scalar_select %p899, 0, %s898
                  %s901 = smul.u32 %s900, 4
                  %s902 = smul.u32 %s900, 4
                  %s903 = scalar_lea.vmem %s884, %s901 [#allocation2]
                  %s904 = scalar_lea.vmem %s886, %s902
                $region90: #{forward.8} parent=77 // loop_footer
                  %s890 = sadd.s32 %s888, 1
                $region91: #{forward.8} parent=77 // loop_footer_branch
                  %887 = sbr.rel target = $region87
                $region92: #{forward.8} parent=77 // loop_exit
                  _
              $region78: #{forward.8} parent=55 // pred_fallthru
                _
            $region56: #{forward.8} parent=51 // pred_fallthru
              _
            // Predicated region
            $region57: #{forward.8} parent=51 // pred_check
              _
            $region58: #{forward.8} parent=51 // pred_check_branch
              %806 = sbr.rel (0) target = $region60
            $region59: #{forward.8} parent=51 // pred_region
              %s808 = ssub.s32 16, 1
              %s809 = sshrl.u32 %s795, 1
              // While loop
              $region61: #{forward.8} parent=59 // loop_pre_header
                _
              $region62: #{forward.8} parent=59 // loop_header
                %s811 = sphi 0, %s813
                %p812 = scmp.ge.s32.totalorder %s811, %s809
                %s816 = sphi 0, %s825
                %s817 = sphi %s788, %s828
                %s818 = sphi %s799, %s829
              $region63: #{forward.8} parent=59 // loop_header_branch
                %815 = sbr.rel (%p812) target = $region67
              $region64: #{forward.8} parent=59 // loop_body
                %v819 = vld [vmem:[%s817] sm:%s808]
                %820 = vst [vmem:[%s818] sm:%s808] %v819
                %v821 = vld [vmem:[%s817 + $0x4] sm:%s808]
                %822 = vst [vmem:[%s818 + $0x4] sm:%s808] %v821
                %s823 = sadd.s32 1, %s816
                %p824 = scmp.ge.s32.totalorder %s823, %s809
                %s825 = scalar_select %p824, 0, %s823
                %s826 = smul.u32 %s825, 8
                %s827 = smul.u32 %s825, 8
                %s828 = scalar_lea.vmem %s788, %s826 [#allocation2]
                %s829 = scalar_lea.vmem %s799, %s827
              $region65: #{forward.8} parent=59 // loop_footer
                %s813 = sadd.s32 %s811, 1
              $region66: #{forward.8} parent=59 // loop_footer_branch
                %810 = sbr.rel target = $region62
              $region67: #{forward.8} parent=59 // loop_exit
                _
              %s830 = sshrl.u32 %s795, 1
              %s831 = sand.u32 %s795, 1
              %s832 = smul.u32 %s830, 2
              %s833 = smul.u32 4, %s832
              %s834 = scalar_lea.vmem %s788, %s833 [#allocation2]
              %s835 = smul.u32 4, %s832
              %s836 = scalar_lea.vmem %s799, %s835
              // While loop
              $region68: #{forward.8} parent=59 // loop_pre_header
                _
              $region69: #{forward.8} parent=59 // loop_header
                %s838 = sphi 0, %s840
                %p839 = scmp.ge.s32.totalorder %s838, %s831
                %s843 = sphi 0, %s850
                %s844 = sphi %s834, %s853
                %s845 = sphi %s836, %s854
              $region70: #{forward.8} parent=59 // loop_header_branch
                %842 = sbr.rel (%p839) target = $region74
              $region71: #{forward.8} parent=59 // loop_body
                %v846 = vld [vmem:[%s844] sm:%s808]
                %847 = vst [vmem:[%s845] sm:%s808] %v846
                %s848 = sadd.s32 1, %s843
                %p849 = scmp.ge.s32.totalorder %s848, %s831
                %s850 = scalar_select %p849, 0, %s848
                %s851 = smul.u32 %s850, 4
                %s852 = smul.u32 %s850, 4
                %s853 = scalar_lea.vmem %s834, %s851 [#allocation2]
                %s854 = scalar_lea.vmem %s836, %s852
              $region72: #{forward.8} parent=59 // loop_footer
                %s840 = sadd.s32 %s838, 1
              $region73: #{forward.8} parent=59 // loop_footer_branch
                %837 = sbr.rel target = $region69
              $region74: #{forward.8} parent=59 // loop_exit
                _
            $region60: #{forward.8} parent=51 // pred_fallthru
              _
          $region52: #{forward.8} parent=47 // pred_fallthru
            _
          %905 = vnop
        $region48: #{forward.8} parent=43 // pred_fallthru
          _
      $region44: #{forward.8} parent=5 // pred_fallthru
        _
      %p906 = scmp.le.s32.totalorder 2, %s12
      // Predicated region
      $region93: #{forward.8} parent=5 // pred_check
        %p907 = pneg %p906
      $region94: #{forward.8} parent=5 // pred_check_branch
        %909 = sbr.rel (%p907) target = $region96
      $region95: #{forward.8} parent=5 // pred_region
        %s910 = ssub.s32 %s12, 2
        // Predicated region
        $region97: #{forward.8} parent=95 // pred_check
          %p911 = pneg %p187
        $region98: #{forward.8} parent=95 // pred_check_branch
          %913 = sbr.rel (%p911) target = $region100
        $region99: #{forward.8} parent=95 // pred_region
          %s914 = sand.u32 %s172, 1
          %s915 = sand.u32 %s172, 1
          %s916 = smul.addr %s915, 8
          %s917 = scalar_lea.vmem [#allocation2], %s916
        $region100: #{forward.8} parent=95 // pred_fallthru
          _
      $region96: #{forward.8} parent=5 // pred_fallthru
        _
    $region6: #{forward.8} parent=1 // loop_footer
      %s16 = sadd.s32 1, %s12
    $region7: #{forward.8} parent=1 // loop_footer_branch
      %11 = sbr.rel target = $region3
    $region8: #{forward.8} parent=1 // loop_exit
      _

// kernel: forward.9
$region0: #{forward.9}
  #allocation0 [shape = 'u32[]', space=smem, size = 0x4, offset = 0x4, fixed_abs, tag = 'smem constant byte address 0x4 - core index']
  #allocation1 [shape = 'u32[144,128]{1,0:T(1,128)}', space=vmem, size = 0x12000, scoped, tag = 'internal scratch']
  %s0 = inlined_call_operand.vmem [shape: bf16[2,90], index: 0, kind: input, shape index: {}]
  %s1 = inlined_call_operand.vmem [shape: bf16[90,32], index: 1, kind: input, shape index: {}]
  %s2 = inlined_call_operand.vmem [shape: f32[1,32], index: 2, kind: input, shape index: {}]
  %s3 = inlined_call_operand.vmem [shape: bf16[32,6], index: 3, kind: input, shape index: {}]
  %s4 = inlined_call_operand.vmem [shape: f32[1,6], index: 4, kind: input, shape index: {}]
  %s5 = inlined_call_operand.vmem [shape: f32[1,784], index: 5, kind: input, shape index: {}]
  %s6 = inlined_call_operand.vmem [shape: f32[1,784], index: 6, kind: input, shape index: {}]
  %s7 = inlined_call_operand.vmem [shape: f32[2,784], index: 7, kind: output, shape index: {0}]
  %s8 = inlined_call_operand.vmem [shape: f32[2,784], index: 8, kind: output, shape index: {1}]
  %9 = xla_tuple %s7, %s8
  %s10 = sld [smem:[#allocation0]]
  $region46: #{forward.9} parent=0
    _
  %s12 = ssub.s32 1, %s10
  %s13 = scalar_select 0, %s12, %s10
  // Predicated region
  $region2: #{forward.9} parent=0 // pred_check
    _
  $region3: #{forward.9} parent=0 // pred_check_branch
    %15 = sbr.rel (0) target = $region5
  $region4: #{forward.9} parent=0 // pred_region
    _
  $region5: #{forward.9} parent=0 // pred_fallthru
    _
  // Predicated region
  $region6: #{forward.9} parent=0 // pred_check
    _
  $region7: #{forward.9} parent=0 // pred_check_branch
    %17 = sbr.rel (0) target = $region9
  $region8: #{forward.9} parent=0 // pred_region
    _
  $region9: #{forward.9} parent=0 // pred_fallthru
    _
  // Predicated region
  $region10: #{forward.9} parent=0 // pred_check
    _
  $region11: #{forward.9} parent=0 // pred_check_branch
    %19 = sbr.rel (0) target = $region13
  $region12: #{forward.9} parent=0 // pred_region
    _
  $region13: #{forward.9} parent=0 // pred_fallthru
    _
  // Predicated region
  $region14: #{forward.9} parent=0 // pred_check
    _
  $region15: #{forward.9} parent=0 // pred_check_branch
    %21 = sbr.rel (0) target = $region17
  $region16: #{forward.9} parent=0 // pred_region
    _
  $region17: #{forward.9} parent=0 // pred_fallthru
    _
  // Predicated region
  $region18: #{forward.9} parent=0 // pred_check
    _
  $region19: #{forward.9} parent=0 // pred_check_branch
    %23 = sbr.rel (0) target = $region21
  $region20: #{forward.9} parent=0 // pred_region
    _
  $region21: #{forward.9} parent=0 // pred_fallthru
    _
  // Predicated region
  $region22: #{forward.9} parent=0 // pred_check
    _
  $region23: #{forward.9} parent=0 // pred_check_branch
    %25 = sbr.rel (0) target = $region25
  $region24: #{forward.9} parent=0 // pred_region
    _
  $region25: #{forward.9} parent=0 // pred_fallthru
    _
  // Predicated region
  $region26: #{forward.9} parent=0 // pred_check
    _
  $region27: #{forward.9} parent=0 // pred_check_branch
    %27 = sbr.rel (0) target = $region29
  $region28: #{forward.9} parent=0 // pred_region
    _
  $region29: #{forward.9} parent=0 // pred_fallthru
    _
  %v29 = vld [vmem:[%s0] sm:$0x1]
  %v30 = vld [vmem:[%s1] sm:$0xf]
  %v31 = vld [vmem:[%s1 + $0x4] sm:$0xf]
  %v32 = vld [vmem:[%s1 + $0x8] sm:$0xf]
  %v33 = vld [vmem:[%s1 + $0xc] sm:$0xf]
  %v34 = vld [vmem:[%s1 + $0x10] sm:$0xf]
  %v35 = vld [vmem:[%s1 + $0x14] sm:$0xf]
  %v36 = vld [vmem:[%s1 + $0x18] sm:$0xf]
  %v37 = vld [vmem:[%s1 + $0x1c] sm:$0xf]
  %v38 = vld [vmem:[%s1 + $0x20] sm:$0xf]
  %v39 = vld [vmem:[%s1 + $0x24] sm:$0xf]
  %v40 = vld [vmem:[%s1 + $0x28] sm:$0xf]
  %v41 = vld [vmem:[%s1 + $0x2c] sm:$0x1]
  %v42 = vld [vmem:[%s2] sm:$0x1]
  %v44 = vlaneseq
  %v45 = vshrl.u32 %v44, 7
  %v46 = vsub.s32 0, %v45
  %v47 = vrot.slane %v42, %v46
  %v61 = vunpack.c.l.b16 %v30
  %v62 = vunpack.c.l.b16 %v31
  %v63 = vunpack.c.l.b16 %v32
  %v64 = vunpack.c.l.b16 %v33
  %v65 = vunpack.c.l.b16 %v34
  %v66 = vunpack.c.l.b16 %v35
  %v67 = vunpack.c.l.b16 %v36
  %v68 = vunpack.c.l.b16 %v37
  %v69 = vunpack.c.l.b16 %v38
  %v70 = vunpack.c.l.b16 %v39
  %v71 = vunpack.c.l.b16 %v40
  %v72 = vunpack.c.l.b16 %v41
  %v73 = vpack.c.b16 %v62, %v61
  %v74 = vpack.c.b16 %v64, %v63
  %v75 = vpack.c.b16 %v66, %v65
  %v76 = vpack.c.b16 %v68, %v67
  %v77 = vpack.c.b16 %v70, %v69
  %v78 = vpack.c.b16 %v72, %v71
  %vm84 = vcmask 736256
  %v86 = vsel %vm84, %v29, 0
  %vm88 = vcmask 1044480
  %v90 = vsel %vm88, %v78, 0
  %92 = vmatprep.subr.bf16.mxu0 0
  %93 = vmatpush1.bf16.msra.mxu0 0
  %94 = vmatprep.subr.bf16.mxu0 0
  %95 = vmatpush1.bf16.msra.mxu0 0
  %96 = vmatprep.subr.bf16.mxu0 0
  %97 = vmatpush1.bf16.msra.mxu0 %v90
  %98 = vmatprep.subr.bf16.mxu0 0
  %99 = vmatpush1.bf16.msra.mxu0 %v77
  %100 = vmatprep.subr.bf16.mxu0 0
  %101 = vmatpush1.bf16.msra.mxu0 %v76
  %102 = vmatprep.subr.bf16.mxu0 0
  %103 = vmatpush1.bf16.msra.mxu0 %v75
  %104 = vmatprep.subr.bf16.mxu0 0
  %105 = vmatpush1.bf16.msra.mxu0 %v74
  %106 = vmatprep.subr.bf16.mxu0 0
  %107 = vmatpush1.bf16.msra.mxu0 %v73
  %108 = vmatprep.subr.bf16.mxu0 0
  %109 = vmatpush2.bf16.msra.mxu0 0
  %110 = vmatprep.subr.bf16.mxu0 0
  %111 = vmatpush2.bf16.msra.mxu0 0
  %112 = vmatprep.subr.bf16.mxu0 0
  %113 = vmatpush2.bf16.msra.mxu0 0
  %114 = vmatprep.subr.bf16.mxu0 0
  %115 = vmatpush2.bf16.msra.mxu0 0
  %116 = vmatprep.subr.bf16.mxu0 0
  %117 = vmatpush2.bf16.msra.mxu0 0
  %118 = vmatprep.subr.bf16.mxu0 0
  %119 = vmatpush2.bf16.msra.mxu0 0
  %120 = vmatprep.subr.bf16.mxu0 0
  %121 = vmatpush2.bf16.msra.mxu0 0
  %122 = vmatprep.subr.bf16.mxu0 0
  %123 = vmatpush2.bf16.msra.mxu0 0
  %124 = vmatprep.mubr.bf16.mxu0 0
  %125 = vmatmul.mubr.bf16.gmra.mxu0 %v86
  %v126 = vpop.f32.mrf.mxu0
  %v127 = vadd.f32 %v47, %v126
  %v128 = vpop.f32.mrf.mxu0
  %v129 = vpop.f32.mrf.mxu0
  %v130 = vpop.f32.mrf.mxu0
  %131 = vdwg.mxu0
  %v132 = vmax.f32 %v127, 0.0
  %v133 = vpack.c.bf16 %v132, %v132
  %v134 = vld [vmem:[%s3] sm:$0xf]
  %v135 = vld [vmem:[%s3 + $0x4] sm:$0xf]
  %v136 = vld [vmem:[%s3 + $0x8] sm:$0xf]
  %v137 = vld [vmem:[%s3 + $0xc] sm:$0xf]
  %v138 = vld [vmem:[%s4] sm:$0x1]
  %v140 = vlaneseq
  %v141 = vshrl.u32 %v140, 7
  %v142 = vsub.s32 0, %v141
  %v143 = vrot.slane %v138, %v142
  %v149 = vunpack.c.l.b16 %v134
  %v150 = vunpack.c.l.b16 %v135
  %v151 = vunpack.c.l.b16 %v136
  %v152 = vunpack.c.l.b16 %v137
  %v153 = vpack.c.b16 %v150, %v149
  %v154 = vpack.c.b16 %v152, %v151
  %vm157 = vcmask 261120
  %v159 = vsel %vm157, %v133, 0
  %161 = vmatprep.subr.bf16.mxu0 0
  %162 = vmatpush1.bf16.msra.mxu0 0
  %163 = vmatprep.subr.bf16.mxu0 0
  %164 = vmatpush1.bf16.msra.mxu0 0
  %165 = vmatprep.subr.bf16.mxu0 0
  %166 = vmatpush1.bf16.msra.mxu0 0
  %167 = vmatprep.subr.bf16.mxu0 0
  %168 = vmatpush1.bf16.msra.mxu0 0
  %169 = vmatprep.subr.bf16.mxu0 0
  %170 = vmatpush1.bf16.msra.mxu0 0
  %171 = vmatprep.subr.bf16.mxu0 0
  %172 = vmatpush1.bf16.msra.mxu0 0
  %173 = vmatprep.subr.bf16.mxu0 0
  %174 = vmatpush1.bf16.msra.mxu0 %v154
  %175 = vmatprep.subr.bf16.mxu0 0
  %176 = vmatpush1.bf16.msra.mxu0 %v153
  %177 = vmatprep.subr.bf16.mxu0 0
  %178 = vmatpush2.bf16.msra.mxu0 0
  %179 = vmatprep.subr.bf16.mxu0 0
  %180 = vmatpush2.bf16.msra.mxu0 0
  %181 = vmatprep.subr.bf16.mxu0 0
  %182 = vmatpush2.bf16.msra.mxu0 0
  %183 = vmatprep.subr.bf16.mxu0 0
  %184 = vmatpush2.bf16.msra.mxu0 0
  %185 = vmatprep.subr.bf16.mxu0 0
  %186 = vmatpush2.bf16.msra.mxu0 0
  %187 = vmatprep.subr.bf16.mxu0 0
  %188 = vmatpush2.bf16.msra.mxu0 0
  %189 = vmatprep.subr.bf16.mxu0 0
  %190 = vmatpush2.bf16.msra.mxu0 0
  %191 = vmatprep.subr.bf16.mxu0 0
  %192 = vmatpush2.bf16.msra.mxu0 0
  %193 = vmatprep.mubr.bf16.mxu0 0
  %194 = vmatmul.mubr.bf16.gmra.mxu0 %v159
  %v195 = vpop.f32.mrf.mxu0
  %v196 = vadd.f32 %v143, %v195
  %v197 = vpop.f32.mrf.mxu0
  %v198 = vpop.f32.mrf.mxu0
  %v199 = vpop.f32.mrf.mxu0
  %200 = vdwg.mxu0
  %v201 = vld [vmem:[%s5] sm:$0x7f]
  %v202 = vld [vmem:[%s6] sm:$0x7f]
  %204 = vset.pattern.permute.xlu0 0
  %205 = vperm.xlu0 %204, %v196
  %v206 = vpop.permute.xlu0 %205
  %v209 = vlaneseq
  %v210 = vshrl.u32 %v209, 7
  %v211 = vsub.s32 0, %v210
  %v212 = vrot.slane %v201, %v211
  %v213 = vlaneseq
  %v214 = vshrl.u32 %v213, 7
  %v215 = vsub.s32 1, %v214
  %v216 = vrot.slane %v201, %v215
  %v217 = vlaneseq
  %v218 = vshrl.u32 %v217, 7
  %v219 = vsub.s32 2, %v218
  %v220 = vrot.slane %v201, %v219
  %v221 = vlaneseq
  %v222 = vshrl.u32 %v221, 7
  %v223 = vsub.s32 3, %v222
  %v224 = vrot.slane %v201, %v223
  %v225 = vlaneseq
  %v226 = vshrl.u32 %v225, 7
  %v227 = vsub.s32 4, %v226
  %v228 = vrot.slane %v201, %v227
  %v229 = vlaneseq
  %v230 = vshrl.u32 %v229, 7
  %v231 = vsub.s32 5, %v230
  %v232 = vrot.slane %v201, %v231
  %v233 = vlaneseq
  %v234 = vshrl.u32 %v233, 7
  %v235 = vsub.s32 6, %v234
  %v236 = vrot.slane %v201, %v235
  %v244 = vmul.f32 %v206, %v212
  %v245 = vmul.f32 %v206, %v216
  %v246 = vmul.f32 %v206, %v220
  %v247 = vmul.f32 %v206, %v224
  %v248 = vmul.f32 %v206, %v228
  %v249 = vmul.f32 %v206, %v232
  %v250 = vmul.f32 %v206, %v236
  %251 = vset.pattern.permute.xlu0 1
  %252 = vperm.xlu0 %251, %v196
  %v253 = vpop.permute.xlu0 %252
  %v256 = vlaneseq
  %v257 = vshrl.u32 %v256, 7
  %v258 = vsub.s32 0, %v257
  %v259 = vrot.slane %v202, %v258
  %v260 = vlaneseq
  %v261 = vshrl.u32 %v260, 7
  %v262 = vsub.s32 1, %v261
  %v263 = vrot.slane %v202, %v262
  %v264 = vlaneseq
  %v265 = vshrl.u32 %v264, 7
  %v266 = vsub.s32 2, %v265
  %v267 = vrot.slane %v202, %v266
  %v268 = vlaneseq
  %v269 = vshrl.u32 %v268, 7
  %v270 = vsub.s32 3, %v269
  %v271 = vrot.slane %v202, %v270
  %v272 = vlaneseq
  %v273 = vshrl.u32 %v272, 7
  %v274 = vsub.s32 4, %v273
  %v275 = vrot.slane %v202, %v274
  %v276 = vlaneseq
  %v277 = vshrl.u32 %v276, 7
  %v278 = vsub.s32 5, %v277
  %v279 = vrot.slane %v202, %v278
  %v280 = vlaneseq
  %v281 = vshrl.u32 %v280, 7
  %v282 = vsub.s32 6, %v281
  %v283 = vrot.slane %v202, %v282
  %v291 = vmul.f32 %v253, %v259
  %v292 = vmul.f32 %v253, %v263
  %v293 = vmul.f32 %v253, %v267
  %v294 = vmul.f32 %v253, %v271
  %v295 = vmul.f32 %v253, %v275
  %v296 = vmul.f32 %v253, %v279
  %v297 = vmul.f32 %v253, %v283
  %v298 = vadd.f32 %v244, %v291
  %v299 = vadd.f32 %v245, %v292
  %v300 = vadd.f32 %v246, %v293
  %v301 = vadd.f32 %v247, %v294
  %v302 = vadd.f32 %v248, %v295
  %v303 = vadd.f32 %v249, %v296
  %v304 = vadd.f32 %v250, %v297
  %305 = vset.pattern.permute.xlu0 2
  %306 = vperm.xlu0 %305, %v196
  %v307 = vpop.permute.xlu0 %306
  %v309 = vadd.f32 %v298, %v307
  %v310 = vadd.f32 %v299, %v307
  %v311 = vadd.f32 %v300, %v307
  %v312 = vadd.f32 %v301, %v307
  %v313 = vadd.f32 %v302, %v307
  %v314 = vadd.f32 %v303, %v307
  %v315 = vadd.f32 %v304, %v307
  %316 = vset.pattern.permute.xlu0 3
  %317 = vperm.xlu0 %316, %v196
  %v318 = vpop.permute.xlu0 %317
  %v320 = vmul.f32 %v318, %v212
  %v321 = vmul.f32 %v318, %v216
  %v322 = vmul.f32 %v318, %v220
  %v323 = vmul.f32 %v318, %v224
  %v324 = vmul.f32 %v318, %v228
  %v325 = vmul.f32 %v318, %v232
  %v326 = vmul.f32 %v318, %v236
  %327 = vset.pattern.permute.xlu0 4
  %328 = vperm.xlu0 %327, %v196
  %v329 = vpop.permute.xlu0 %328
  %v331 = vmul.f32 %v329, %v259
  %v332 = vmul.f32 %v329, %v263
  %v333 = vmul.f32 %v329, %v267
  %v334 = vmul.f32 %v329, %v271
  %v335 = vmul.f32 %v329, %v275
  %v336 = vmul.f32 %v329, %v279
  %v337 = vmul.f32 %v329, %v283
  %v338 = vadd.f32 %v320, %v331
  %v339 = vadd.f32 %v321, %v332
  %v340 = vadd.f32 %v322, %v333
  %v341 = vadd.f32 %v323, %v334
  %v342 = vadd.f32 %v324, %v335
  %v343 = vadd.f32 %v325, %v336
  %v344 = vadd.f32 %v326, %v337
  %345 = vset.pattern.permute.xlu0 5
  %346 = vperm.xlu0 %345, %v196
  %v347 = vpop.permute.xlu0 %346
  %v349 = vadd.f32 %v338, %v347
  %v350 = vadd.f32 %v339, %v347
  %v351 = vadd.f32 %v340, %v347
  %v352 = vadd.f32 %v341, %v347
  %v353 = vadd.f32 %v342, %v347
  %v354 = vadd.f32 %v343, %v347
  %v355 = vadd.f32 %v344, %v347
  %v356 = vadd.f32 %v309, 1.0
  %v357 = vadd.f32 %v310, 1.0
  %v358 = vadd.f32 %v311, 1.0
  %v359 = vadd.f32 %v312, 1.0
  %v360 = vadd.f32 %v313, 1.0
  %v361 = vadd.f32 %v314, 1.0
  %v362 = vadd.f32 %v315, 1.0
  %v363 = vmul.f32 %v356, 14.0
  %v364 = vmul.f32 %v357, 14.0
  %v365 = vmul.f32 %v358, 14.0
  %v366 = vmul.f32 %v359, 14.0
  %v367 = vmul.f32 %v360, 14.0
  %v368 = vmul.f32 %v361, 14.0
  %v369 = vmul.f32 %v362, 14.0
  %v370 = vsub.f32 %v363, 0.5
  %v371 = vsub.f32 %v364, 0.5
  %v372 = vsub.f32 %v365, 0.5
  %v373 = vsub.f32 %v366, 0.5
  %v374 = vsub.f32 %v367, 0.5
  %v375 = vsub.f32 %v368, 0.5
  %v376 = vsub.f32 %v369, 0.5
  %v384 = vcombine.low %v370, %v371
  %v385 = vcombine.low %v372, %v373
  %v387 = vunpack.c.l.s4 1983009808
  %v388 = vunpack.c.0.s8 %v387
  %v389 = vlaneseq
  %v390 = vshrl.u32 %v389, 7
  %v391 = vsub.s32 %v388, %v390
  %v392 = vrot.slane %v384, %v391
  %v394 = vunpack.c.l.s4 1983009808
  %v395 = vunpack.c.0.s8 %v394
  %v396 = vlaneseq
  %v397 = vshrl.u32 %v396, 7
  %v398 = vsub.s32 %v395, %v397
  %v399 = vrot.slane %v385, %v398
  %v400 = vcombine.low %v392, %v399
  %v401 = vcombine.low %v374, %v375
  %v403 = vunpack.c.l.s4 1983009808
  %v404 = vunpack.c.0.s8 %v403
  %v405 = vlaneseq
  %v406 = vshrl.u32 %v405, 7
  %v407 = vsub.s32 %v404, %v406
  %v408 = vrot.slane %v401, %v407
  %v410 = vunpack.c.l.s4 1983009808
  %v411 = vunpack.c.0.s8 %v410
  %v412 = vlaneseq
  %v413 = vshrl.u32 %v412, 7
  %v414 = vsub.s32 %v411, %v413
  %v415 = vrot.slane %v376, %v414
  %v416 = vcombine.low %v408, %v415
  %419 = vst [vmem:[%s7] sm:$0xff] %v400
  %vm420 = vcmask 1041408
  %vm421 = vcmask 1043458
  %vm422 = vmor %vm421, %vm420
  %vm423 = vcmask 128004
  %vm424 = vmor %vm423, %vm422
  %425 = vst.msk [vmem:[%s7 + $0x8] sm:$0x3f] %vm424, %v416
  %v426 = vadd.f32 %v349, 1.0
  %v427 = vadd.f32 %v350, 1.0
  %v428 = vadd.f32 %v351, 1.0
  %v429 = vadd.f32 %v352, 1.0
  %v430 = vadd.f32 %v353, 1.0
  %v431 = vadd.f32 %v354, 1.0
  %v432 = vadd.f32 %v355, 1.0
  %v433 = vmul.f32 %v426, 14.0
  %v434 = vmul.f32 %v427, 14.0
  %v435 = vmul.f32 %v428, 14.0
  %v436 = vmul.f32 %v429, 14.0
  %v437 = vmul.f32 %v430, 14.0
  %v438 = vmul.f32 %v431, 14.0
  %v439 = vmul.f32 %v432, 14.0
  %v440 = vsub.f32 %v433, 0.5
  %v441 = vsub.f32 %v434, 0.5
  %v442 = vsub.f32 %v435, 0.5
  %v443 = vsub.f32 %v436, 0.5
  %v444 = vsub.f32 %v437, 0.5
  %v445 = vsub.f32 %v438, 0.5
  %v446 = vsub.f32 %v439, 0.5
  %v454 = vcombine.low %v440, %v441
  %v455 = vcombine.low %v442, %v443
  %v457 = vunpack.c.l.s4 1983009808
  %v458 = vunpack.c.0.s8 %v457
  %v459 = vlaneseq
  %v460 = vshrl.u32 %v459, 7
  %v461 = vsub.s32 %v458, %v460
  %v462 = vrot.slane %v454, %v461
  %v464 = vunpack.c.l.s4 1983009808
  %v465 = vunpack.c.0.s8 %v464
  %v466 = vlaneseq
  %v467 = vshrl.u32 %v466, 7
  %v468 = vsub.s32 %v465, %v467
  %v469 = vrot.slane %v455, %v468
  %v470 = vcombine.low %v462, %v469
  %v471 = vcombine.low %v444, %v445
  %v473 = vunpack.c.l.s4 1983009808
  %v474 = vunpack.c.0.s8 %v473
  %v475 = vlaneseq
  %v476 = vshrl.u32 %v475, 7
  %v477 = vsub.s32 %v474, %v476
  %v478 = vrot.slane %v471, %v477
  %v480 = vunpack.c.l.s4 1983009808
  %v481 = vunpack.c.0.s8 %v480
  %v482 = vlaneseq
  %v483 = vshrl.u32 %v482, 7
  %v484 = vsub.s32 %v481, %v483
  %v485 = vrot.slane %v446, %v484
  %v486 = vcombine.low %v478, %v485
  %489 = vst [vmem:[%s8] sm:$0xff] %v470
  %490 = vst.msk [vmem:[%s8 + $0x8] sm:$0x3f] %vm424, %v486
  // Predicated region
  $region30: #{forward.9} parent=0 // pred_check
    _
  $region31: #{forward.9} parent=0 // pred_check_branch
    %492 = sbr.rel (0) target = $region33
  $region32: #{forward.9} parent=0 // pred_region
    _
  $region33: #{forward.9} parent=0 // pred_fallthru
    _
  // Predicated region
  $region34: #{forward.9} parent=0 // pred_check
    _
  $region35: #{forward.9} parent=0 // pred_check_branch
    %494 = sbr.rel (0) target = $region37
  $region36: #{forward.9} parent=0 // pred_region
    _
  $region37: #{forward.9} parent=0 // pred_fallthru
    _
  // Predicated region
  $region38: #{forward.9} parent=0 // pred_check
    _
  $region39: #{forward.9} parent=0 // pred_check_branch
    %496 = sbr.rel (0) target = $region41
  $region40: #{forward.9} parent=0 // pred_region
    _
  $region41: #{forward.9} parent=0 // pred_fallthru
    _
  // Predicated region
  $region42: #{forward.9} parent=0 // pred_check
    _
  $region43: #{forward.9} parent=0 // pred_check_branch
    %498 = sbr.rel (0) target = $region45
  $region44: #{forward.9} parent=0 // pred_region
    _
  $region45: #{forward.9} parent=0 // pred_fallthru
    _

// kernel: forward.10
$region0: #{forward.10}
  #allocation0 [shape = 'u32[]', space=smem, size = 0x4, offset = 0x4, fixed_abs, tag = 'smem constant byte address 0x4 - core index']
  #allocation1 [shape = 'u32[144,128]{1,0:T(1,128)}', space=vmem, size = 0x12000, scoped, tag = 'internal scratch']
  %s0 = inlined_call_operand.vmem [shape: bf16[2,784], index: 0, kind: input, shape index: {}]
  %s1 = inlined_call_operand.vmem [shape: bf16[2,784], index: 1, kind: input, shape index: {}]
  %s2 = inlined_call_operand.vmem [shape: bf16[2,784], index: 2, kind: input, shape index: {}]
  %s3 = inlined_call_operand.vmem [shape: bf16[2,784], index: 3, kind: input, shape index: {}]
  %s4 = inlined_call_operand.vmem [shape: f32[2,784], index: 4, kind: input, shape index: {}]
  %s5 = inlined_call_operand.vmem [shape: f32[2,784], index: 5, kind: input, shape index: {}]
  %s6 = inlined_call_operand.vmem [shape: bf16[2,784], index: 6, kind: output, shape index: {}]
  %s7 = sld [smem:[#allocation0]]
  $region34: #{forward.10} parent=0
    _
  %s9 = ssub.s32 1, %s7
  %s10 = scalar_select 0, %s9, %s7
  // Predicated region
  $region2: #{forward.10} parent=0 // pred_check
    _
  $region3: #{forward.10} parent=0 // pred_check_branch
    %12 = sbr.rel (0) target = $region5
  $region4: #{forward.10} parent=0 // pred_region
    _
  $region5: #{forward.10} parent=0 // pred_fallthru
    _
  // Predicated region
  $region6: #{forward.10} parent=0 // pred_check
    _
  $region7: #{forward.10} parent=0 // pred_check_branch
    %14 = sbr.rel (0) target = $region9
  $region8: #{forward.10} parent=0 // pred_region
    _
  $region9: #{forward.10} parent=0 // pred_fallthru
    _
  // Predicated region
  $region10: #{forward.10} parent=0 // pred_check
    _
  $region11: #{forward.10} parent=0 // pred_check_branch
    %16 = sbr.rel (0) target = $region13
  $region12: #{forward.10} parent=0 // pred_region
    _
  $region13: #{forward.10} parent=0 // pred_fallthru
    _
  // Predicated region
  $region14: #{forward.10} parent=0 // pred_check
    _
  $region15: #{forward.10} parent=0 // pred_check_branch
    %18 = sbr.rel (0) target = $region17
  $region16: #{forward.10} parent=0 // pred_region
    _
  $region17: #{forward.10} parent=0 // pred_fallthru
    _
  // Predicated region
  $region18: #{forward.10} parent=0 // pred_check
    _
  $region19: #{forward.10} parent=0 // pred_check_branch
    %20 = sbr.rel (0) target = $region21
  $region20: #{forward.10} parent=0 // pred_region
    _
  $region21: #{forward.10} parent=0 // pred_fallthru
    _
  // Predicated region
  $region22: #{forward.10} parent=0 // pred_check
    _
  $region23: #{forward.10} parent=0 // pred_check_branch
    %22 = sbr.rel (0) target = $region25
  $region24: #{forward.10} parent=0 // pred_region
    _
  $region25: #{forward.10} parent=0 // pred_fallthru
    _
  %v23 = vld [vmem:[%s4] sm:$0xff]
  %v24 = vld [vmem:[%s4 + $0x8] sm:$0x3f]
  %v25 = vld [vmem:[%s5] sm:$0xff]
  %v26 = vld [vmem:[%s5 + $0x8] sm:$0x3f]
  %v27 = vfloor.f32 %v23
  %v28 = vfloor.f32 %v24
  %v29 = vfloor.f32 %v25
  %v30 = vfloor.f32 %v26
  %v31 = vsub.f32 %v23, %v27
  %v32 = vsub.f32 %v24, %v28
  %v33 = vsub.f32 %v25, %v29
  %v34 = vsub.f32 %v26, %v30
  %v35 = vsub.f32 1.0, %v31
  %v36 = vsub.f32 1.0, %v32
  %v37 = vsub.f32 1.0, %v33
  %v38 = vsub.f32 1.0, %v34
  %vm39 = vcmp.ge.f32.partialorder %v27, 0.0
  %vm40 = vcmp.ge.f32.partialorder %v28, 0.0
  %vm41 = vcmp.le.f32.partialorder %v27, 27.0
  %vm42 = vcmp.le.f32.partialorder %v28, 27.0
  %vm43 = vmand %vm39, %vm41
  %vm44 = vmand %vm40, %vm42
  %v45 = vsel %vm43, %v35, 0.0
  %v46 = vsel %vm44, %v36, 0.0
  %vm47 = vcmp.ge.f32.partialorder %v27, -1.0
  %vm48 = vcmp.ge.f32.partialorder %v28, -1.0
  %vm49 = vcmp.le.f32.partialorder %v27, 26.0
  %vm50 = vcmp.le.f32.partialorder %v28, 26.0
  %vm51 = vmand %vm47, %vm49
  %vm52 = vmand %vm48, %vm50
  %v53 = vsel %vm51, %v31, 0.0
  %v54 = vsel %vm52, %v32, 0.0
  %vm55 = vcmp.ge.f32.partialorder %v29, 0.0
  %vm56 = vcmp.ge.f32.partialorder %v30, 0.0
  %vm57 = vcmp.le.f32.partialorder %v29, 27.0
  %vm58 = vcmp.le.f32.partialorder %v30, 27.0
  %vm59 = vmand %vm55, %vm57
  %vm60 = vmand %vm56, %vm58
  %v61 = vsel %vm59, %v37, 0.0
  %v62 = vsel %vm60, %v38, 0.0
  %vm63 = vcmp.ge.f32.partialorder %v29, -1.0
  %vm64 = vcmp.ge.f32.partialorder %v30, -1.0
  %vm65 = vcmp.le.f32.partialorder %v29, 26.0
  %vm66 = vcmp.le.f32.partialorder %v30, 26.0
  %vm67 = vmand %vm63, %vm65
  %vm68 = vmand %vm64, %vm66
  %v69 = vsel %vm67, %v33, 0.0
  %v70 = vsel %vm68, %v34, 0.0
  %v71 = vld [vmem:[%s0] sm:$0x7f]
  %v72 = vunpack.c.l.bf16 %v71
  %v73 = vunpack.c.h.bf16 %v71
  %v74 = vmul.f32 %v45, %v61
  %v75 = vmul.f32 %v46, %v62
  %v76 = vmul.f32 %v72, %v74
  %v77 = vmul.f32 %v73, %v75
  %v78 = vld [vmem:[%s1] sm:$0x7f]
  %v79 = vunpack.c.l.bf16 %v78
  %v80 = vunpack.c.h.bf16 %v78
  %v81 = vmul.f32 %v53, %v61
  %v82 = vmul.f32 %v54, %v62
  %v83 = vmul.f32 %v79, %v81
  %v84 = vmul.f32 %v80, %v82
  %v85 = vadd.f32 %v76, %v83
  %v86 = vadd.f32 %v77, %v84
  %v87 = vld [vmem:[%s2] sm:$0x7f]
  %v88 = vunpack.c.l.bf16 %v87
  %v89 = vunpack.c.h.bf16 %v87
  %v90 = vmul.f32 %v45, %v69
  %v91 = vmul.f32 %v46, %v70
  %v92 = vmul.f32 %v88, %v90
  %v93 = vmul.f32 %v89, %v91
  %v94 = vadd.f32 %v85, %v92
  %v95 = vadd.f32 %v86, %v93
  %v96 = vld [vmem:[%s3] sm:$0x7f]
  %v97 = vunpack.c.l.bf16 %v96
  %v98 = vunpack.c.h.bf16 %v96
  %v99 = vmul.f32 %v53, %v69
  %v100 = vmul.f32 %v54, %v70
  %v101 = vmul.f32 %v97, %v99
  %v102 = vmul.f32 %v98, %v100
  %v103 = vadd.f32 %v94, %v101
  %v104 = vadd.f32 %v95, %v102
  %v107 = vcombine.high %v103, %v103
  %v109 = vunpack.c.l.s4 1983009808
  %v110 = vunpack.c.0.s8 %v109
  %v111 = vlaneseq
  %v112 = vshrl.u32 %v111, 7
  %v113 = vsub.s32 %v110, %v112
  %v114 = vrot.slane %v103, %v113
  %v116 = vunpack.c.l.s4 1983009808
  %v117 = vunpack.c.0.s8 %v116
  %v118 = vlaneseq
  %v119 = vshrl.u32 %v118, 7
  %v120 = vsub.s32 %v117, %v119
  %v121 = vrot.slane %v107, %v120
  %v122 = vcombine.high %v114, %v114
  %v123 = vcombine.high %v121, %v121
  %v124 = vcombine.high %v104, %v104
  %v126 = vunpack.c.l.s4 1983009808
  %v127 = vunpack.c.0.s8 %v126
  %v128 = vlaneseq
  %v129 = vshrl.u32 %v128, 7
  %v130 = vsub.s32 %v127, %v129
  %v131 = vrot.slane %v104, %v130
  %v133 = vunpack.c.l.s4 1983009808
  %v134 = vunpack.c.0.s8 %v133
  %v135 = vlaneseq
  %v136 = vshrl.u32 %v135, 7
  %v137 = vsub.s32 %v134, %v136
  %v138 = vrot.slane %v124, %v137
  %v139 = vcombine.high %v131, %v131
  %v147 = vpack.c.bf16 %v114, %v114
  %v148 = vpack.c.bf16 %v122, %v122
  %v149 = vpack.c.bf16 %v121, %v121
  %v150 = vpack.c.bf16 %v123, %v123
  %v151 = vpack.c.bf16 %v131, %v131
  %v152 = vpack.c.bf16 %v139, %v139
  %v153 = vpack.c.bf16 %v138, %v138
  %v161 = vcombine.low %v147, %v148
  %v162 = vcombine.low %v149, %v150
  %v163 = vcombine.low %v151, %v152
  %v165 = vunpack.c.l.s4 1966171168
  %v166 = vunpack.c.0.s8 %v165
  %v167 = vlaneseq
  %v168 = vshrl.u32 %v167, 7
  %v169 = vsub.s32 %v166, %v168
  %v170 = vrot.slane %v161, %v169
  %v172 = vunpack.c.l.s4 1966171168
  %v173 = vunpack.c.0.s8 %v172
  %v174 = vlaneseq
  %v175 = vshrl.u32 %v174, 7
  %v176 = vsub.s32 %v173, %v175
  %v177 = vrot.slane %v162, %v176
  %v179 = vunpack.c.l.s4 1966171168
  %v180 = vunpack.c.0.s8 %v179
  %v181 = vlaneseq
  %v182 = vshrl.u32 %v181, 7
  %v183 = vsub.s32 %v180, %v182
  %v184 = vrot.slane %v163, %v183
  %v186 = vunpack.c.l.s4 1966171168
  %v187 = vunpack.c.0.s8 %v186
  %v188 = vlaneseq
  %v189 = vshrl.u32 %v188, 7
  %v190 = vsub.s32 %v187, %v189
  %v191 = vrot.slane %v153, %v190
  %v192 = vcombine.low %v170, %v177
  %v193 = vcombine.low %v184, %v191
  %v195 = vunpack.c.l.s4 1966171168
  %v196 = vunpack.c.0.s8 %v195
  %v197 = vlaneseq
  %v198 = vshrl.u32 %v197, 7
  %v199 = vsub.s32 %v196, %v198
  %v200 = vrot.slane %v192, %v199
  %v202 = vunpack.c.l.s4 1966171168
  %v203 = vunpack.c.0.s8 %v202
  %v204 = vlaneseq
  %v205 = vshrl.u32 %v204, 7
  %v206 = vsub.s32 %v203, %v205
  %v207 = vrot.slane %v193, %v206
  %v208 = vcombine.low %v200, %v207
  %vm210 = vcmask 1040384
  %vm211 = vcmask 1041409
  %vm212 = vmor %vm211, %vm210
  %vm213 = vcmask 1042434
  %vm214 = vmor %vm213, %vm212
  %vm215 = vcmask 1043459
  %vm216 = vmor %vm215, %vm214
  %vm217 = vcmask 1044484
  %vm218 = vmor %vm217, %vm216
  %vm219 = vcmask 1045509
  %vm220 = vmor %vm219, %vm218
  %vm221 = vcmask 129030
  %vm222 = vmor %vm221, %vm220
  %223 = vst.msk [vmem:[%s6] sm:$0x7f] %vm222, %v208
  // Predicated region
  $region26: #{forward.10} parent=0 // pred_check
    _
  $region27: #{forward.10} parent=0 // pred_check_branch
    %225 = sbr.rel (0) target = $region29
  $region28: #{forward.10} parent=0 // pred_region
    _
  $region29: #{forward.10} parent=0 // pred_fallthru
    _
  // Predicated region
  $region30: #{forward.10} parent=0 // pred_check
    _
  $region31: #{forward.10} parent=0 // pred_check_branch
    %227 = sbr.rel (0) target = $region33
  $region32: #{forward.10} parent=0 // pred_region
    _
  $region33: #{forward.10} parent=0 // pred_fallthru
    _

// kernel: forward.11
$region0: #{forward.11}
  #allocation0 [shape = 'u32[]', space=smem, size = 0x4, offset = 0x4, fixed_abs, tag = 'smem constant byte address 0x4 - core index']
  #allocation1 [shape = 'u32[144,128]{1,0:T(1,128)}', space=vmem, size = 0x12000, scoped, tag = 'internal scratch']
  %s0 = inlined_call_operand.vmem [shape: bf16[288,25], index: 0, kind: input, shape index: {}]
  %s1 = inlined_call_operand.vmem [shape: bf16[288,25], index: 1, kind: input, shape index: {}]
  %s2 = inlined_call_operand.vmem [shape: bf16[288,25], index: 2, kind: input, shape index: {}]
  %s3 = inlined_call_operand.vmem [shape: bf16[288,25], index: 3, kind: input, shape index: {}]
  %s4 = inlined_call_operand.vmem [shape: bf16[25,10], index: 4, kind: input, shape index: {}]
  %s5 = inlined_call_operand.vmem [shape: f32[1,10], index: 5, kind: input, shape index: {}]
  %s6 = inlined_call_operand.vmem [shape: bf16[288,10], index: 6, kind: output, shape index: {}]
  %s7 = sld [smem:[#allocation0]]
  $region57: #{forward.11} parent=0
    _
  %s9 = ssub.s32 1, %s7
  %s10 = scalar_select 0, %s9, %s7
  loop: start=0, step=1, limit=4
  $region2: #{forward.11} parent=0 // loop_pre_header
    _
  $region3: #{forward.11} parent=0 // loop_header
    %s12 = sphi 0, %s16
    %p13 = scmp.ge.s32.totalorder %s12, 4
    %s22 = sphi 0, %s24
    %s25 = sphi 0, %s22
    %s26 = sphi 0, %s25
    %s42 = sphi 0, %s26
    %s48 = sphi 0, %s50
    %s51 = sphi 0, %s48
    %s52 = sphi 0, %s51
    %s68 = sphi 0, %s52
    %s74 = sphi 0, %s76
    %s77 = sphi 0, %s74
    %s78 = sphi 0, %s77
    %s94 = sphi 0, %s78
    %s100 = sphi 0, %s102
    %s103 = sphi 0, %s100
    %s104 = sphi 0, %s103
    %s120 = sphi 0, %s104
    %s124 = sphi 0, %s124
    %s126 = sphi 0, %s124
    %s127 = sphi 0, %s126
    %s141 = sphi 0, %s127
    %s145 = sphi 0, %s145
    %s147 = sphi 0, %s145
    %s148 = sphi 0, %s147
    %s162 = sphi 0, %s148
    %s168 = sphi 0, %s170
    %s171 = sphi 0, %s168
    %s172 = sphi 0, %s171
    %s188 = sphi 0, %s172
  $region4: #{forward.11} parent=0 // loop_header_branch
    %15 = sbr.rel (%p13) target = $region8
  $region5: #{forward.11} parent=0 // loop_body
    %s17 = ssub.s32 %s12, 1
    %s18 = ssub.s32 %s12, 2
    %s19 = sadd.s32 %s12, 1
    %s20 = ssub.s32 %s12, %s19
    %p21 = scmp.eq.s32.totalorder %s20, 0
    %s23 = sadd.s32 %s22, 1
    %s24 = scalar_select %p21, %s22, %s23
    %p27 = pneg %p21
    %p28 = scmp.eq.s32.totalorder %s12, 1
    %p29 = por %p27, %p28
    %p30 = scmp.ne.s32.totalorder %s22, %s25
    %p31 = scmp.eq.s32.totalorder %s12, 0
    %p32 = por %p30, %p31
    %p33 = scmp.ne.s32.totalorder %s22, %s25
    %p34 = scmp.eq.s32.totalorder %s17, 1
    %p35 = por %p33, %p34
    %p36 = scmp.ne.s32.totalorder %s25, %s26
    %p37 = scmp.eq.s32.totalorder %s17, 0
    %p38 = por %p36, %p37
    %p39 = scmp.ne.s32.totalorder %s25, %s26
    %p40 = scmp.eq.s32.totalorder %s18, 1
    %p41 = por %p39, %p40
    %p43 = scmp.ne.s32.totalorder %s26, %s42
    %p44 = scmp.eq.s32.totalorder %s18, 0
    %p45 = por %p43, %p44
    %s46 = ssub.s32 %s12, %s19
    %p47 = scmp.eq.s32.totalorder %s46, 0
    %s49 = sadd.s32 %s48, 1
    %s50 = scalar_select %p47, %s48, %s49
    %p53 = pneg %p47
    %p54 = scmp.eq.s32.totalorder %s12, 1
    %p55 = por %p53, %p54
    %p56 = scmp.ne.s32.totalorder %s48, %s51
    %p57 = scmp.eq.s32.totalorder %s12, 0
    %p58 = por %p56, %p57
    %p59 = scmp.ne.s32.totalorder %s48, %s51
    %p60 = scmp.eq.s32.totalorder %s17, 1
    %p61 = por %p59, %p60
    %p62 = scmp.ne.s32.totalorder %s51, %s52
    %p63 = scmp.eq.s32.totalorder %s17, 0
    %p64 = por %p62, %p63
    %p65 = scmp.ne.s32.totalorder %s51, %s52
    %p66 = scmp.eq.s32.totalorder %s18, 1
    %p67 = por %p65, %p66
    %p69 = scmp.ne.s32.totalorder %s52, %s68
    %p70 = scmp.eq.s32.totalorder %s18, 0
    %p71 = por %p69, %p70
    %s72 = ssub.s32 %s12, %s19
    %p73 = scmp.eq.s32.totalorder %s72, 0
    %s75 = sadd.s32 %s74, 1
    %s76 = scalar_select %p73, %s74, %s75
    %p79 = pneg %p73
    %p80 = scmp.eq.s32.totalorder %s12, 1
    %p81 = por %p79, %p80
    %p82 = scmp.ne.s32.totalorder %s74, %s77
    %p83 = scmp.eq.s32.totalorder %s12, 0
    %p84 = por %p82, %p83
    %p85 = scmp.ne.s32.totalorder %s74, %s77
    %p86 = scmp.eq.s32.totalorder %s17, 1
    %p87 = por %p85, %p86
    %p88 = scmp.ne.s32.totalorder %s77, %s78
    %p89 = scmp.eq.s32.totalorder %s17, 0
    %p90 = por %p88, %p89
    %p91 = scmp.ne.s32.totalorder %s77, %s78
    %p92 = scmp.eq.s32.totalorder %s18, 1
    %p93 = por %p91, %p92
    %p95 = scmp.ne.s32.totalorder %s78, %s94
    %p96 = scmp.eq.s32.totalorder %s18, 0
    %p97 = por %p95, %p96
    %s98 = ssub.s32 %s12, %s19
    %p99 = scmp.eq.s32.totalorder %s98, 0
    %s101 = sadd.s32 %s100, 1
    %s102 = scalar_select %p99, %s100, %s101
    %p105 = pneg %p99
    %p106 = scmp.eq.s32.totalorder %s12, 1
    %p107 = por %p105, %p106
    %p108 = scmp.ne.s32.totalorder %s100, %s103
    %p109 = scmp.eq.s32.totalorder %s12, 0
    %p110 = por %p108, %p109
    %p111 = scmp.ne.s32.totalorder %s100, %s103
    %p112 = scmp.eq.s32.totalorder %s17, 1
    %p113 = por %p111, %p112
    %p114 = scmp.ne.s32.totalorder %s103, %s104
    %p115 = scmp.eq.s32.totalorder %s17, 0
    %p116 = por %p114, %p115
    %p117 = scmp.ne.s32.totalorder %s103, %s104
    %p118 = scmp.eq.s32.totalorder %s18, 1
    %p119 = por %p117, %p118
    %p121 = scmp.ne.s32.totalorder %s104, %s120
    %p122 = scmp.eq.s32.totalorder %s18, 0
    %p123 = por %p121, %p122
    %s125 = sadd.s32 %s124, 1
    %p128 = scmp.eq.s32.totalorder %s12, 1
    %p129 = scmp.ne.s32.totalorder %s124, %s126
    %p130 = scmp.eq.s32.totalorder %s12, 0
    %p131 = por %p129, %p130
    %p132 = scmp.ne.s32.totalorder %s124, %s126
    %p133 = scmp.eq.s32.totalorder %s17, 1
    %p134 = por %p132, %p133
    %p135 = scmp.ne.s32.totalorder %s126, %s127
    %p136 = scmp.eq.s32.totalorder %s17, 0
    %p137 = por %p135, %p136
    %p138 = scmp.ne.s32.totalorder %s126, %s127
    %p139 = scmp.eq.s32.totalorder %s18, 1
    %p140 = por %p138, %p139
    %p142 = scmp.ne.s32.totalorder %s127, %s141
    %p143 = scmp.eq.s32.totalorder %s18, 0
    %p144 = por %p142, %p143
    %s146 = sadd.s32 %s145, 1
    %p149 = scmp.eq.s32.totalorder %s12, 1
    %p150 = scmp.ne.s32.totalorder %s145, %s147
    %p151 = scmp.eq.s32.totalorder %s12, 0
    %p152 = por %p150, %p151
    %p153 = scmp.ne.s32.totalorder %s145, %s147
    %p154 = scmp.eq.s32.totalorder %s17, 1
    %p155 = por %p153, %p154
    %p156 = scmp.ne.s32.totalorder %s147, %s148
    %p157 = scmp.eq.s32.totalorder %s17, 0
    %p158 = por %p156, %p157
    %p159 = scmp.ne.s32.totalorder %s147, %s148
    %p160 = scmp.eq.s32.totalorder %s18, 1
    %p161 = por %p159, %p160
    %p163 = scmp.ne.s32.totalorder %s148, %s162
    %p164 = scmp.eq.s32.totalorder %s18, 0
    %p165 = por %p163, %p164
    %s166 = ssub.s32 %s12, %s19
    %p167 = scmp.eq.s32.totalorder %s166, 0
    %s169 = sadd.s32 %s168, 1
    %s170 = scalar_select %p167, %s168, %s169
    %p173 = pneg %p167
    %p174 = scmp.eq.s32.totalorder %s12, 1
    %p175 = por %p173, %p174
    %p176 = scmp.ne.s32.totalorder %s168, %s171
    %p177 = scmp.eq.s32.totalorder %s12, 0
    %p178 = por %p176, %p177
    %p179 = scmp.ne.s32.totalorder %s168, %s171
    %p180 = scmp.eq.s32.totalorder %s17, 1
    %p181 = por %p179, %p180
    %p182 = scmp.ne.s32.totalorder %s171, %s172
    %p183 = scmp.eq.s32.totalorder %s17, 0
    %p184 = por %p182, %p183
    %p185 = scmp.ne.s32.totalorder %s171, %s172
    %p186 = scmp.eq.s32.totalorder %s18, 1
    %p187 = por %p185, %p186
    %p189 = scmp.ne.s32.totalorder %s172, %s188
    %p190 = scmp.eq.s32.totalorder %s18, 0
    %p191 = por %p189, %p190
    %p192 = scmp.le.s32.totalorder 1, %s12
    %p193 = scmp.lt.s32.totalorder %s12, 3
    %p194 = pnand %p192, %p193
    %p195 = pneg %p194
    // Predicated region
    $region9: #{forward.11} parent=5 // pred_check
      _
    $region10: #{forward.11} parent=5 // pred_check_branch
      %197 = sbr.rel (%p194) target = $region12
    $region11: #{forward.11} parent=5 // pred_region
      %s198 = ssub.s32 %s12, 1
      // Predicated region
      $region13: #{forward.11} parent=11 // pred_check
        %p199 = pneg %p137
      $region14: #{forward.11} parent=11 // pred_check_branch
        %201 = sbr.rel (%p199) target = $region16
      $region15: #{forward.11} parent=11 // pred_region
        _
      $region16: #{forward.11} parent=11 // pred_fallthru
        _
      // Predicated region
      $region17: #{forward.11} parent=11 // pred_check
        %p202 = pneg %p158
      $region18: #{forward.11} parent=11 // pred_check_branch
        %204 = sbr.rel (%p202) target = $region20
      $region19: #{forward.11} parent=11 // pred_region
        _
      $region20: #{forward.11} parent=11 // pred_fallthru
        _
    $region12: #{forward.11} parent=5 // pred_fallthru
      _
    %p205 = scmp.lt.s32.totalorder %s12, 2
    // Predicated region
    $region21: #{forward.11} parent=5 // pred_check
      %p206 = pneg %p205
    $region22: #{forward.11} parent=5 // pred_check_branch
      %208 = sbr.rel (%p206) target = $region24
    $region23: #{forward.11} parent=5 // pred_region
      // Predicated region
      $region25: #{forward.11} parent=23 // pred_check
        %p209 = pneg %p32
      $region26: #{forward.11} parent=23 // pred_check_branch
        %211 = sbr.rel (%p209) target = $region28
      $region27: #{forward.11} parent=23 // pred_region
        %s212 = smul.u32 18, %s12
        %p213 = scmp.lt.s32.totalorder %s212, 35
        %s214 = scalar_select %p213, %s212, 35
        %s215 = smul.addr %s214, 4
        %s216 = scalar_lea.vmem %s0, %s215
        %s217 = smul.u32 18, %s12
      $region28: #{forward.11} parent=23 // pred_fallthru
        _
      // Predicated region
      $region29: #{forward.11} parent=23 // pred_check
        %p218 = pneg %p58
      $region30: #{forward.11} parent=23 // pred_check_branch
        %220 = sbr.rel (%p218) target = $region32
      $region31: #{forward.11} parent=23 // pred_region
        %s221 = smul.u32 18, %s12
        %p222 = scmp.lt.s32.totalorder %s221, 35
        %s223 = scalar_select %p222, %s221, 35
        %s224 = smul.addr %s223, 4
        %s225 = scalar_lea.vmem %s1, %s224
        %s226 = smul.u32 18, %s12
      $region32: #{forward.11} parent=23 // pred_fallthru
        _
      // Predicated region
      $region33: #{forward.11} parent=23 // pred_check
        %p227 = pneg %p84
      $region34: #{forward.11} parent=23 // pred_check_branch
        %229 = sbr.rel (%p227) target = $region36
      $region35: #{forward.11} parent=23 // pred_region
        %s230 = smul.u32 18, %s12
        %p231 = scmp.lt.s32.totalorder %s230, 35
        %s232 = scalar_select %p231, %s230, 35
        %s233 = smul.addr %s232, 4
        %s234 = scalar_lea.vmem %s2, %s233
        %s235 = smul.u32 18, %s12
      $region36: #{forward.11} parent=23 // pred_fallthru
        _
      // Predicated region
      $region37: #{forward.11} parent=23 // pred_check
        %p236 = pneg %p110
      $region38: #{forward.11} parent=23 // pred_check_branch
        %238 = sbr.rel (%p236) target = $region40
      $region39: #{forward.11} parent=23 // pred_region
        %s239 = smul.u32 18, %s12
        %p240 = scmp.lt.s32.totalorder %s239, 35
        %s241 = scalar_select %p240, %s239, 35
        %s242 = smul.addr %s241, 4
        %s243 = scalar_lea.vmem %s3, %s242
        %s244 = smul.u32 18, %s12
      $region40: #{forward.11} parent=23 // pred_fallthru
        _
    $region24: #{forward.11} parent=5 // pred_fallthru
      _
    %p245 = scmp.le.s32.totalorder 1, %s12
    %p246 = scmp.lt.s32.totalorder %s12, 3
    %p247 = pnand %p245, %p246
    %p248 = pneg %p247
    // Predicated region
    $region41: #{forward.11} parent=5 // pred_check
      _
    $region42: #{forward.11} parent=5 // pred_check_branch
      %250 = sbr.rel (%p247) target = $region44
    $region43: #{forward.11} parent=5 // pred_region
      %s251 = ssub.s32 %s12, 1
      %s252 = smul.u32 18, %s17
      %p253 = scmp.lt.s32.totalorder %s252, 35
      %s254 = scalar_select %p253, %s252, 35
      %s255 = smul.addr %s254, 4
      %s256 = scalar_lea.vmem %s0, %s255
      %p257 = pneg %p38
      %p258 = pneg %p35
      %s259 = smul.u32 18, %s17
      %p260 = scmp.lt.s32.totalorder %s259, 35
      %s261 = scalar_select %p260, %s259, 35
      %s262 = smul.addr %s261, 4
      %s263 = scalar_lea.vmem %s1, %s262
      %p264 = pneg %p64
      %p265 = pneg %p61
      %s266 = smul.u32 18, %s17
      %p267 = scmp.lt.s32.totalorder %s266, 35
      %s268 = scalar_select %p267, %s266, 35
      %s269 = smul.addr %s268, 4
      %s270 = scalar_lea.vmem %s2, %s269
      %p271 = pneg %p90
      %p272 = pneg %p87
      %s273 = smul.u32 18, %s17
      %p274 = scmp.lt.s32.totalorder %s273, 35
      %s275 = scalar_select %p274, %s273, 35
      %s276 = smul.addr %s275, 4
      %s277 = scalar_lea.vmem %s3, %s276
      %p278 = pneg %p116
      %p279 = pneg %p113
      %p280 = pneg %p137
      %p281 = pneg %p134
      %p282 = pneg %p158
      %p283 = pneg %p155
      %p284 = pneg %p184
      %p285 = pneg %p181
      %s286 = smul.u32 18, %s17
      %p287 = scmp.lt.s32.totalorder %s286, 35
      %s288 = scalar_select %p287, %s286, 35
      %s289 = smul.addr %s288, 4
      %s290 = scalar_lea.vmem %s6, %s289
      %s291 = smul.u32 18, %s17
      %p292 = scmp.lt.s32.totalorder %s291, 35
      %s293 = scalar_select %p292, %s291, 35
      %s294 = smul.addr %s293, 4
      %s295 = scalar_lea.vmem %s0, %s294
      %s296 = smul.u32 18, %s17
      %s297 = smul.u32 18, %s17
      %p298 = scmp.lt.s32.totalorder %s297, 35
      %s299 = scalar_select %p298, %s297, 35
      %s300 = smul.addr %s299, 4
      %s301 = scalar_lea.vmem %s1, %s300
      %s302 = smul.u32 18, %s17
      %s303 = smul.u32 18, %s17
      %p304 = scmp.lt.s32.totalorder %s303, 35
      %s305 = scalar_select %p304, %s303, 35
      %s306 = smul.addr %s305, 4
      %s307 = scalar_lea.vmem %s2, %s306
      %s308 = smul.u32 18, %s17
      %s309 = smul.u32 18, %s17
      %p310 = scmp.lt.s32.totalorder %s309, 35
      %s311 = scalar_select %p310, %s309, 35
      %s312 = smul.addr %s311, 4
      %s313 = scalar_lea.vmem %s3, %s312
      %s314 = smul.u32 18, %s17
      %s315 = smul.u32 18, %s17
      %p316 = scmp.lt.s32.totalorder %s315, 35
      %s317 = scalar_select %p316, %s315, 35
      %s318 = smul.addr %s317, 4
      %s319 = scalar_lea.vmem %s6, %s318
      %s320 = smul.u32 18, %s17
      %v322 = vld [vmem:[%s4] sm:$0xf]
      %v323 = vld [vmem:[%s4 + $0x4] sm:$0xf]
      %v324 = vld [vmem:[%s4 + $0x8] sm:$0xf]
      %v325 = vld [vmem:[%s4 + $0xc] sm:$0x1]
      %v326 = vld [vmem:[%s295] sm:$0xf]
      %v327 = vld [vmem:[%s295 + $0x4] sm:$0xf]
      %v328 = vld [vmem:[%s295 + $0x8] sm:$0xf]
      %v329 = vld [vmem:[%s295 + $0xc] sm:$0xf]
      %v330 = vld [vmem:[%s295 + $0x10] sm:$0xf]
      %v331 = vld [vmem:[%s295 + $0x14] sm:$0xf]
      %v332 = vld [vmem:[%s295 + $0x18] sm:$0xf]
      %v333 = vld [vmem:[%s295 + $0x1c] sm:$0xf]
      %v334 = vld [vmem:[%s295 + $0x20] sm:$0xf]
      %v335 = vld [vmem:[%s295 + $0x24] sm:$0xf]
      %v336 = vld [vmem:[%s295 + $0x28] sm:$0xf]
      %v337 = vld [vmem:[%s295 + $0x2c] sm:$0xf]
      %v338 = vld [vmem:[%s295 + $0x30] sm:$0xf]
      %v339 = vld [vmem:[%s295 + $0x34] sm:$0xf]
      %v340 = vld [vmem:[%s295 + $0x38] sm:$0xf]
      %v341 = vld [vmem:[%s295 + $0x3c] sm:$0xf]
      %v342 = vld [vmem:[%s295 + $0x40] sm:$0xf]
      %v343 = vld [vmem:[%s295 + $0x44] sm:$0xf]
      %v362 = vunpack.c.l.b16 %v326
      %v363 = vunpack.c.l.b16 %v327
      %v364 = vunpack.c.l.b16 %v328
      %v365 = vunpack.c.l.b16 %v329
      %v366 = vunpack.c.l.b16 %v330
      %v367 = vunpack.c.l.b16 %v331
      %v368 = vunpack.c.l.b16 %v332
      %v369 = vunpack.c.l.b16 %v333
      %v370 = vunpack.c.l.b16 %v334
      %v371 = vunpack.c.l.b16 %v335
      %v372 = vunpack.c.l.b16 %v336
      %v373 = vunpack.c.l.b16 %v337
      %v374 = vunpack.c.l.b16 %v338
      %v375 = vunpack.c.l.b16 %v339
      %v376 = vunpack.c.l.b16 %v340
      %v377 = vunpack.c.l.b16 %v341
      %v378 = vunpack.c.l.b16 %v342
      %v379 = vunpack.c.l.b16 %v343
      %v380 = vpack.c.b16 %v363, %v362
      %v381 = vpack.c.b16 %v365, %v364
      %v382 = vpack.c.b16 %v367, %v366
      %v383 = vpack.c.b16 %v369, %v368
      %v384 = vpack.c.b16 %v371, %v370
      %v385 = vpack.c.b16 %v373, %v372
      %v386 = vpack.c.b16 %v375, %v374
      %v387 = vpack.c.b16 %v377, %v376
      %v388 = vpack.c.b16 %v379, %v378
      %v393 = vunpack.c.l.b16 %v322
      %v394 = vunpack.c.l.b16 %v323
      %v395 = vunpack.c.l.b16 %v324
      %v396 = vunpack.c.l.b16 %v325
      %v397 = vpack.c.b16 %v394, %v393
      %v398 = vpack.c.b16 %v396, %v395
      %vm400 = vcmask 203776
      %v402 = vsel %vm400, %v380, 0
      %v405 = vsel %vm400, %v381, 0
      %v408 = vsel %vm400, %v382, 0
      %v411 = vsel %vm400, %v383, 0
      %v414 = vsel %vm400, %v384, 0
      %v417 = vsel %vm400, %v385, 0
      %v420 = vsel %vm400, %v386, 0
      %v423 = vsel %vm400, %v387, 0
      %v426 = vsel %vm400, %v388, 0
      %vm428 = vcmask 1043456
      %vm429 = vcmask 1044480
      %v430 = vsel %vm428, 4294967295, 65535
      %v431 = vsel %vm429, %v430, 0
      %v433 = vand.u32 %v398, %v431
      %435 = vmatprep.subr.bf16.mxu0 0
      %436 = vmatpush1.bf16.msra.mxu0 0
      %437 = vmatprep.subr.bf16.mxu0 0
      %438 = vmatpush1.bf16.msra.mxu0 0
      %439 = vmatprep.subr.bf16.mxu0 0
      %440 = vmatpush1.bf16.msra.mxu0 0
      %441 = vmatprep.subr.bf16.mxu0 0
      %442 = vmatpush1.bf16.msra.mxu0 0
      %443 = vmatprep.subr.bf16.mxu0 0
      %444 = vmatpush1.bf16.msra.mxu0 0
      %445 = vmatprep.subr.bf16.mxu0 0
      %446 = vmatpush1.bf16.msra.mxu0 0
      %447 = vmatprep.subr.bf16.mxu0 0
      %448 = vmatpush1.bf16.msra.mxu0 %v433
      %449 = vmatprep.subr.bf16.mxu0 0
      %450 = vmatpush1.bf16.msra.mxu0 %v397
      %451 = vmatprep.subr.bf16.mxu0 0
      %452 = vmatpush2.bf16.msra.mxu0 0
      %453 = vmatprep.subr.bf16.mxu0 0
      %454 = vmatpush2.bf16.msra.mxu0 0
      %455 = vmatprep.subr.bf16.mxu0 0
      %456 = vmatpush2.bf16.msra.mxu0 0
      %457 = vmatprep.subr.bf16.mxu0 0
      %458 = vmatpush2.bf16.msra.mxu0 0
      %459 = vmatprep.subr.bf16.mxu0 0
      %460 = vmatpush2.bf16.msra.mxu0 0
      %461 = vmatprep.subr.bf16.mxu0 0
      %462 = vmatpush2.bf16.msra.mxu0 0
      %463 = vmatprep.subr.bf16.mxu0 0
      %464 = vmatpush2.bf16.msra.mxu0 0
      %465 = vmatprep.subr.bf16.mxu0 0
      %466 = vmatpush2.bf16.msra.mxu0 0
      %467 = vmatprep.mubr.bf16.mxu0 0
      %468 = vmatmul.mubr.bf16.gmra.mxu0 %v402
      %v469 = vpop.f32.mrf.mxu0
      %v470 = vadd.f32 0.0, %v469
      %v471 = vpop.f32.mrf.mxu0
      %v472 = vpop.f32.mrf.mxu0
      %v473 = vadd.f32 0.0, %v472
      %v474 = vpop.f32.mrf.mxu0
      %475 = vmatprep.mubr.bf16.mxu0 0
      %476 = vmatmul.mubr.bf16.gmra.mxu0 %v405
      %v477 = vpop.f32.mrf.mxu0
      %v478 = vadd.f32 0.0, %v477
      %v479 = vpop.f32.mrf.mxu0
      %v480 = vpop.f32.mrf.mxu0
      %v481 = vadd.f32 0.0, %v480
      %v482 = vpop.f32.mrf.mxu0
      %483 = vmatprep.mubr.bf16.mxu0 0
      %484 = vmatmul.mubr.bf16.gmra.mxu0 %v408
      %v485 = vpop.f32.mrf.mxu0
      %v486 = vadd.f32 0.0, %v485
      %v487 = vpop.f32.mrf.mxu0
      %v488 = vpop.f32.mrf.mxu0
      %v489 = vadd.f32 0.0, %v488
      %v490 = vpop.f32.mrf.mxu0
      %491 = vmatprep.mubr.bf16.mxu0 0
      %492 = vmatmul.mubr.bf16.gmra.mxu0 %v411
      %v493 = vpop.f32.mrf.mxu0
      %v494 = vadd.f32 0.0, %v493
      %v495 = vpop.f32.mrf.mxu0
      %v496 = vpop.f32.mrf.mxu0
      %v497 = vadd.f32 0.0, %v496
      %v498 = vpop.f32.mrf.mxu0
      %499 = vmatprep.mubr.bf16.mxu0 0
      %500 = vmatmul.mubr.bf16.gmra.mxu0 %v414
      %v501 = vpop.f32.mrf.mxu0
      %v502 = vadd.f32 0.0, %v501
      %v503 = vpop.f32.mrf.mxu0
      %v504 = vpop.f32.mrf.mxu0
      %v505 = vadd.f32 0.0, %v504
      %v506 = vpop.f32.mrf.mxu0
      %507 = vmatprep.mubr.bf16.mxu0 0
      %508 = vmatmul.mubr.bf16.gmra.mxu0 %v417
      %v509 = vpop.f32.mrf.mxu0
      %v510 = vadd.f32 0.0, %v509
      %v511 = vpop.f32.mrf.mxu0
      %v512 = vpop.f32.mrf.mxu0
      %v513 = vadd.f32 0.0, %v512
      %v514 = vpop.f32.mrf.mxu0
      %515 = vmatprep.mubr.bf16.mxu0 0
      %516 = vmatmul.mubr.bf16.gmra.mxu0 %v420
      %v517 = vpop.f32.mrf.mxu0
      %v518 = vadd.f32 0.0, %v517
      %v519 = vpop.f32.mrf.mxu0
      %v520 = vpop.f32.mrf.mxu0
      %v521 = vadd.f32 0.0, %v520
      %v522 = vpop.f32.mrf.mxu0
      %523 = vmatprep.mubr.bf16.mxu0 0
      %524 = vmatmul.mubr.bf16.gmra.mxu0 %v423
      %v525 = vpop.f32.mrf.mxu0
      %v526 = vadd.f32 0.0, %v525
      %v527 = vpop.f32.mrf.mxu0
      %v528 = vpop.f32.mrf.mxu0
      %v529 = vadd.f32 0.0, %v528
      %v530 = vpop.f32.mrf.mxu0
      %531 = vmatprep.mubr.bf16.mxu0 0
      %532 = vmatmul.mubr.bf16.gmra.mxu0 %v426
      %v533 = vpop.f32.mrf.mxu0
      %v534 = vadd.f32 0.0, %v533
      %v535 = vpop.f32.mrf.mxu0
      %v536 = vpop.f32.mrf.mxu0
      %v537 = vadd.f32 0.0, %v536
      %v538 = vpop.f32.mrf.mxu0
      %539 = vdwg.mxu0
      %v540 = vld [vmem:[%s301] sm:$0xf]
      %v541 = vld [vmem:[%s301 + $0x4] sm:$0xf]
      %v542 = vld [vmem:[%s301 + $0x8] sm:$0xf]
      %v543 = vld [vmem:[%s301 + $0xc] sm:$0xf]
      %v544 = vld [vmem:[%s301 + $0x10] sm:$0xf]
      %v545 = vld [vmem:[%s301 + $0x14] sm:$0xf]
      %v546 = vld [vmem:[%s301 + $0x18] sm:$0xf]
      %v547 = vld [vmem:[%s301 + $0x1c] sm:$0xf]
      %v548 = vld [vmem:[%s301 + $0x20] sm:$0xf]
      %v549 = vld [vmem:[%s301 + $0x24] sm:$0xf]
      %v550 = vld [vmem:[%s301 + $0x28] sm:$0xf]
      %v551 = vld [vmem:[%s301 + $0x2c] sm:$0xf]
      %v552 = vld [vmem:[%s301 + $0x30] sm:$0xf]
      %v553 = vld [vmem:[%s301 + $0x34] sm:$0xf]
      %v554 = vld [vmem:[%s301 + $0x38] sm:$0xf]
      %v555 = vld [vmem:[%s301 + $0x3c] sm:$0xf]
      %v556 = vld [vmem:[%s301 + $0x40] sm:$0xf]
      %v557 = vld [vmem:[%s301 + $0x44] sm:$0xf]
      %v576 = vunpack.c.l.b16 %v540
      %v577 = vunpack.c.l.b16 %v541
      %v578 = vunpack.c.l.b16 %v542
      %v579 = vunpack.c.l.b16 %v543
      %v580 = vunpack.c.l.b16 %v544
      %v581 = vunpack.c.l.b16 %v545
      %v582 = vunpack.c.l.b16 %v546
      %v583 = vunpack.c.l.b16 %v547
      %v584 = vunpack.c.l.b16 %v548
      %v585 = vunpack.c.l.b16 %v549
      %v586 = vunpack.c.l.b16 %v550
      %v587 = vunpack.c.l.b16 %v551
      %v588 = vunpack.c.l.b16 %v552
      %v589 = vunpack.c.l.b16 %v553
      %v590 = vunpack.c.l.b16 %v554
      %v591 = vunpack.c.l.b16 %v555
      %v592 = vunpack.c.l.b16 %v556
      %v593 = vunpack.c.l.b16 %v557
      %v594 = vpack.c.b16 %v577, %v576
      %v595 = vpack.c.b16 %v579, %v578
      %v596 = vpack.c.b16 %v581, %v580
      %v597 = vpack.c.b16 %v583, %v582
      %v598 = vpack.c.b16 %v585, %v584
      %v599 = vpack.c.b16 %v587, %v586
      %v600 = vpack.c.b16 %v589, %v588
      %v601 = vpack.c.b16 %v591, %v590
      %v602 = vpack.c.b16 %v593, %v592
      %v604 = vsel %vm400, %v594, 0
      %v607 = vsel %vm400, %v595, 0
      %v610 = vsel %vm400, %v596, 0
      %v613 = vsel %vm400, %v597, 0
      %v616 = vsel %vm400, %v598, 0
      %v619 = vsel %vm400, %v599, 0
      %v622 = vsel %vm400, %v600, 0
      %v625 = vsel %vm400, %v601, 0
      %v628 = vsel %vm400, %v602, 0
      %630 = vmatprep.subr.bf16.mxu0 0
      %631 = vmatpush1.bf16.msra.mxu0 0
      %632 = vmatprep.subr.bf16.mxu0 0
      %633 = vmatpush1.bf16.msra.mxu0 0
      %634 = vmatprep.subr.bf16.mxu0 0
      %635 = vmatpush1.bf16.msra.mxu0 0
      %636 = vmatprep.subr.bf16.mxu0 0
      %637 = vmatpush1.bf16.msra.mxu0 0
      %638 = vmatprep.subr.bf16.mxu0 0
      %639 = vmatpush1.bf16.msra.mxu0 0
      %640 = vmatprep.subr.bf16.mxu0 0
      %641 = vmatpush1.bf16.msra.mxu0 0
      %642 = vmatprep.subr.bf16.mxu0 0
      %643 = vmatpush1.bf16.msra.mxu0 %v433
      %644 = vmatprep.subr.bf16.mxu0 0
      %645 = vmatpush1.bf16.msra.mxu0 %v397
      %646 = vmatprep.subr.bf16.mxu0 0
      %647 = vmatpush2.bf16.msra.mxu0 0
      %648 = vmatprep.subr.bf16.mxu0 0
      %649 = vmatpush2.bf16.msra.mxu0 0
      %650 = vmatprep.subr.bf16.mxu0 0
      %651 = vmatpush2.bf16.msra.mxu0 0
      %652 = vmatprep.subr.bf16.mxu0 0
      %653 = vmatpush2.bf16.msra.mxu0 0
      %654 = vmatprep.subr.bf16.mxu0 0
      %655 = vmatpush2.bf16.msra.mxu0 0
      %656 = vmatprep.subr.bf16.mxu0 0
      %657 = vmatpush2.bf16.msra.mxu0 0
      %658 = vmatprep.subr.bf16.mxu0 0
      %659 = vmatpush2.bf16.msra.mxu0 0
      %660 = vmatprep.subr.bf16.mxu0 0
      %661 = vmatpush2.bf16.msra.mxu0 0
      %662 = vmatprep.mubr.bf16.mxu0 0
      %663 = vmatmul.mubr.bf16.gmra.mxu0 %v604
      %v664 = vpop.f32.mrf.mxu0
      %v665 = vadd.f32 0.0, %v664
      %v666 = vpop.f32.mrf.mxu0
      %v667 = vpop.f32.mrf.mxu0
      %v668 = vadd.f32 0.0, %v667
      %v669 = vpop.f32.mrf.mxu0
      %670 = vmatprep.mubr.bf16.mxu0 0
      %671 = vmatmul.mubr.bf16.gmra.mxu0 %v607
      %v672 = vpop.f32.mrf.mxu0
      %v673 = vadd.f32 0.0, %v672
      %v674 = vpop.f32.mrf.mxu0
      %v675 = vpop.f32.mrf.mxu0
      %v676 = vadd.f32 0.0, %v675
      %v677 = vpop.f32.mrf.mxu0
      %678 = vmatprep.mubr.bf16.mxu0 0
      %679 = vmatmul.mubr.bf16.gmra.mxu0 %v610
      %v680 = vpop.f32.mrf.mxu0
      %v681 = vadd.f32 0.0, %v680
      %v682 = vpop.f32.mrf.mxu0
      %v683 = vpop.f32.mrf.mxu0
      %v684 = vadd.f32 0.0, %v683
      %v685 = vpop.f32.mrf.mxu0
      %686 = vmatprep.mubr.bf16.mxu0 0
      %687 = vmatmul.mubr.bf16.gmra.mxu0 %v613
      %v688 = vpop.f32.mrf.mxu0
      %v689 = vadd.f32 0.0, %v688
      %v690 = vpop.f32.mrf.mxu0
      %v691 = vpop.f32.mrf.mxu0
      %v692 = vadd.f32 0.0, %v691
      %v693 = vpop.f32.mrf.mxu0
      %694 = vmatprep.mubr.bf16.mxu0 0
      %695 = vmatmul.mubr.bf16.gmra.mxu0 %v616
      %v696 = vpop.f32.mrf.mxu0
      %v697 = vadd.f32 0.0, %v696
      %v698 = vpop.f32.mrf.mxu0
      %v699 = vpop.f32.mrf.mxu0
      %v700 = vadd.f32 0.0, %v699
      %v701 = vpop.f32.mrf.mxu0
      %702 = vmatprep.mubr.bf16.mxu0 0
      %703 = vmatmul.mubr.bf16.gmra.mxu0 %v619
      %v704 = vpop.f32.mrf.mxu0
      %v705 = vadd.f32 0.0, %v704
      %v706 = vpop.f32.mrf.mxu0
      %v707 = vpop.f32.mrf.mxu0
      %v708 = vadd.f32 0.0, %v707
      %v709 = vpop.f32.mrf.mxu0
      %710 = vmatprep.mubr.bf16.mxu0 0
      %711 = vmatmul.mubr.bf16.gmra.mxu0 %v622
      %v712 = vpop.f32.mrf.mxu0
      %v713 = vadd.f32 0.0, %v712
      %v714 = vpop.f32.mrf.mxu0
      %v715 = vpop.f32.mrf.mxu0
      %v716 = vadd.f32 0.0, %v715
      %v717 = vpop.f32.mrf.mxu0
      %718 = vmatprep.mubr.bf16.mxu0 0
      %719 = vmatmul.mubr.bf16.gmra.mxu0 %v625
      %v720 = vpop.f32.mrf.mxu0
      %v721 = vadd.f32 0.0, %v720
      %v722 = vpop.f32.mrf.mxu0
      %v723 = vpop.f32.mrf.mxu0
      %v724 = vadd.f32 0.0, %v723
      %v725 = vpop.f32.mrf.mxu0
      %726 = vmatprep.mubr.bf16.mxu0 0
      %727 = vmatmul.mubr.bf16.gmra.mxu0 %v628
      %v728 = vpop.f32.mrf.mxu0
      %v729 = vadd.f32 0.0, %v728
      %v730 = vpop.f32.mrf.mxu0
      %v731 = vpop.f32.mrf.mxu0
      %v732 = vadd.f32 0.0, %v731
      %v733 = vpop.f32.mrf.mxu0
      %734 = vdwg.mxu0
      %v735 = vmax.f32 %v470, %v665
      %v736 = vmax.f32 %v473, %v668
      %v737 = vmax.f32 %v478, %v673
      %v738 = vmax.f32 %v481, %v676
      %v739 = vmax.f32 %v486, %v681
      %v740 = vmax.f32 %v489, %v684
      %v741 = vmax.f32 %v494, %v689
      %v742 = vmax.f32 %v497, %v692
      %v743 = vmax.f32 %v502, %v697
      %v744 = vmax.f32 %v505, %v700
      %v745 = vmax.f32 %v510, %v705
      %v746 = vmax.f32 %v513, %v708
      %v747 = vmax.f32 %v518, %v713
      %v748 = vmax.f32 %v521, %v716
      %v749 = vmax.f32 %v526, %v721
      %v750 = vmax.f32 %v529, %v724
      %v751 = vmax.f32 %v534, %v729
      %v752 = vmax.f32 %v537, %v732
      %v753 = vld [vmem:[%s307] sm:$0xf]
      %v754 = vld [vmem:[%s307 + $0x4] sm:$0xf]
      %v755 = vld [vmem:[%s307 + $0x8] sm:$0xf]
      %v756 = vld [vmem:[%s307 + $0xc] sm:$0xf]
      %v757 = vld [vmem:[%s307 + $0x10] sm:$0xf]
      %v758 = vld [vmem:[%s307 + $0x14] sm:$0xf]
      %v759 = vld [vmem:[%s307 + $0x18] sm:$0xf]
      %v760 = vld [vmem:[%s307 + $0x1c] sm:$0xf]
      %v761 = vld [vmem:[%s307 + $0x20] sm:$0xf]
      %v762 = vld [vmem:[%s307 + $0x24] sm:$0xf]
      %v763 = vld [vmem:[%s307 + $0x28] sm:$0xf]
      %v764 = vld [vmem:[%s307 + $0x2c] sm:$0xf]
      %v765 = vld [vmem:[%s307 + $0x30] sm:$0xf]
      %v766 = vld [vmem:[%s307 + $0x34] sm:$0xf]
      %v767 = vld [vmem:[%s307 + $0x38] sm:$0xf]
      %v768 = vld [vmem:[%s307 + $0x3c] sm:$0xf]
      %v769 = vld [vmem:[%s307 + $0x40] sm:$0xf]
      %v770 = vld [vmem:[%s307 + $0x44] sm:$0xf]
      %v789 = vunpack.c.l.b16 %v753
      %v790 = vunpack.c.l.b16 %v754
      %v791 = vunpack.c.l.b16 %v755
      %v792 = vunpack.c.l.b16 %v756
      %v793 = vunpack.c.l.b16 %v757
      %v794 = vunpack.c.l.b16 %v758
      %v795 = vunpack.c.l.b16 %v759
      %v796 = vunpack.c.l.b16 %v760
      %v797 = vunpack.c.l.b16 %v761
      %v798 = vunpack.c.l.b16 %v762
      %v799 = vunpack.c.l.b16 %v763
      %v800 = vunpack.c.l.b16 %v764
      %v801 = vunpack.c.l.b16 %v765
      %v802 = vunpack.c.l.b16 %v766
      %v803 = vunpack.c.l.b16 %v767
      %v804 = vunpack.c.l.b16 %v768
      %v805 = vunpack.c.l.b16 %v769
      %v806 = vunpack.c.l.b16 %v770
      %v807 = vpack.c.b16 %v790, %v789
      %v808 = vpack.c.b16 %v792, %v791
      %v809 = vpack.c.b16 %v794, %v793
      %v810 = vpack.c.b16 %v796, %v795
      %v811 = vpack.c.b16 %v798, %v797
      %v812 = vpack.c.b16 %v800, %v799
      %v813 = vpack.c.b16 %v802, %v801
      %v814 = vpack.c.b16 %v804, %v803
      %v815 = vpack.c.b16 %v806, %v805
      %v817 = vsel %vm400, %v807, 0
      %v820 = vsel %vm400, %v808, 0
      %v823 = vsel %vm400, %v809, 0
      %v826 = vsel %vm400, %v810, 0
      %v829 = vsel %vm400, %v811, 0
      %v832 = vsel %vm400, %v812, 0
      %v835 = vsel %vm400, %v813, 0
      %v838 = vsel %vm400, %v814, 0
      %v841 = vsel %vm400, %v815, 0
      %843 = vmatprep.subr.bf16.mxu0 0
      %844 = vmatpush1.bf16.msra.mxu0 0
      %845 = vmatprep.subr.bf16.mxu0 0
      %846 = vmatpush1.bf16.msra.mxu0 0
      %847 = vmatprep.subr.bf16.mxu0 0
      %848 = vmatpush1.bf16.msra.mxu0 0
      %849 = vmatprep.subr.bf16.mxu0 0
      %850 = vmatpush1.bf16.msra.mxu0 0
      %851 = vmatprep.subr.bf16.mxu0 0
      %852 = vmatpush1.bf16.msra.mxu0 0
      %853 = vmatprep.subr.bf16.mxu0 0
      %854 = vmatpush1.bf16.msra.mxu0 0
      %855 = vmatprep.subr.bf16.mxu0 0
      %856 = vmatpush1.bf16.msra.mxu0 %v433
      %857 = vmatprep.subr.bf16.mxu0 0
      %858 = vmatpush1.bf16.msra.mxu0 %v397
      %859 = vmatprep.subr.bf16.mxu0 0
      %860 = vmatpush2.bf16.msra.mxu0 0
      %861 = vmatprep.subr.bf16.mxu0 0
      %862 = vmatpush2.bf16.msra.mxu0 0
      %863 = vmatprep.subr.bf16.mxu0 0
      %864 = vmatpush2.bf16.msra.mxu0 0
      %865 = vmatprep.subr.bf16.mxu0 0
      %866 = vmatpush2.bf16.msra.mxu0 0
      %867 = vmatprep.subr.bf16.mxu0 0
      %868 = vmatpush2.bf16.msra.mxu0 0
      %869 = vmatprep.subr.bf16.mxu0 0
      %870 = vmatpush2.bf16.msra.mxu0 0
      %871 = vmatprep.subr.bf16.mxu0 0
      %872 = vmatpush2.bf16.msra.mxu0 0
      %873 = vmatprep.subr.bf16.mxu0 0
      %874 = vmatpush2.bf16.msra.mxu0 0
      %875 = vmatprep.mubr.bf16.mxu0 0
      %876 = vmatmul.mubr.bf16.gmra.mxu0 %v817
      %v877 = vpop.f32.mrf.mxu0
      %v878 = vadd.f32 0.0, %v877
      %v879 = vpop.f32.mrf.mxu0
      %v880 = vpop.f32.mrf.mxu0
      %v881 = vadd.f32 0.0, %v880
      %v882 = vpop.f32.mrf.mxu0
      %883 = vmatprep.mubr.bf16.mxu0 0
      %884 = vmatmul.mubr.bf16.gmra.mxu0 %v820
      %v885 = vpop.f32.mrf.mxu0
      %v886 = vadd.f32 0.0, %v885
      %v887 = vpop.f32.mrf.mxu0
      %v888 = vpop.f32.mrf.mxu0
      %v889 = vadd.f32 0.0, %v888
      %v890 = vpop.f32.mrf.mxu0
      %891 = vmatprep.mubr.bf16.mxu0 0
      %892 = vmatmul.mubr.bf16.gmra.mxu0 %v823
      %v893 = vpop.f32.mrf.mxu0
      %v894 = vadd.f32 0.0, %v893
      %v895 = vpop.f32.mrf.mxu0
      %v896 = vpop.f32.mrf.mxu0
      %v897 = vadd.f32 0.0, %v896
      %v898 = vpop.f32.mrf.mxu0
      %899 = vmatprep.mubr.bf16.mxu0 0
      %900 = vmatmul.mubr.bf16.gmra.mxu0 %v826
      %v901 = vpop.f32.mrf.mxu0
      %v902 = vadd.f32 0.0, %v901
      %v903 = vpop.f32.mrf.mxu0
      %v904 = vpop.f32.mrf.mxu0
      %v905 = vadd.f32 0.0, %v904
      %v906 = vpop.f32.mrf.mxu0
      %907 = vmatprep.mubr.bf16.mxu0 0
      %908 = vmatmul.mubr.bf16.gmra.mxu0 %v829
      %v909 = vpop.f32.mrf.mxu0
      %v910 = vadd.f32 0.0, %v909
      %v911 = vpop.f32.mrf.mxu0
      %v912 = vpop.f32.mrf.mxu0
      %v913 = vadd.f32 0.0, %v912
      %v914 = vpop.f32.mrf.mxu0
      %915 = vmatprep.mubr.bf16.mxu0 0
      %916 = vmatmul.mubr.bf16.gmra.mxu0 %v832
      %v917 = vpop.f32.mrf.mxu0
      %v918 = vadd.f32 0.0, %v917
      %v919 = vpop.f32.mrf.mxu0
      %v920 = vpop.f32.mrf.mxu0
      %v921 = vadd.f32 0.0, %v920
      %v922 = vpop.f32.mrf.mxu0
      %923 = vmatprep.mubr.bf16.mxu0 0
      %924 = vmatmul.mubr.bf16.gmra.mxu0 %v835
      %v925 = vpop.f32.mrf.mxu0
      %v926 = vadd.f32 0.0, %v925
      %v927 = vpop.f32.mrf.mxu0
      %v928 = vpop.f32.mrf.mxu0
      %v929 = vadd.f32 0.0, %v928
      %v930 = vpop.f32.mrf.mxu0
      %931 = vmatprep.mubr.bf16.mxu0 0
      %932 = vmatmul.mubr.bf16.gmra.mxu0 %v838
      %v933 = vpop.f32.mrf.mxu0
      %v934 = vadd.f32 0.0, %v933
      %v935 = vpop.f32.mrf.mxu0
      %v936 = vpop.f32.mrf.mxu0
      %v937 = vadd.f32 0.0, %v936
      %v938 = vpop.f32.mrf.mxu0
      %939 = vmatprep.mubr.bf16.mxu0 0
      %940 = vmatmul.mubr.bf16.gmra.mxu0 %v841
      %v941 = vpop.f32.mrf.mxu0
      %v942 = vadd.f32 0.0, %v941
      %v943 = vpop.f32.mrf.mxu0
      %v944 = vpop.f32.mrf.mxu0
      %v945 = vadd.f32 0.0, %v944
      %v946 = vpop.f32.mrf.mxu0
      %947 = vdwg.mxu0
      %v948 = vmax.f32 %v735, %v878
      %v949 = vmax.f32 %v736, %v881
      %v950 = vmax.f32 %v737, %v886
      %v951 = vmax.f32 %v738, %v889
      %v952 = vmax.f32 %v739, %v894
      %v953 = vmax.f32 %v740, %v897
      %v954 = vmax.f32 %v741, %v902
      %v955 = vmax.f32 %v742, %v905
      %v956 = vmax.f32 %v743, %v910
      %v957 = vmax.f32 %v744, %v913
      %v958 = vmax.f32 %v745, %v918
      %v959 = vmax.f32 %v746, %v921
      %v960 = vmax.f32 %v747, %v926
      %v961 = vmax.f32 %v748, %v929
      %v962 = vmax.f32 %v749, %v934
      %v963 = vmax.f32 %v750, %v937
      %v964 = vmax.f32 %v751, %v942
      %v965 = vmax.f32 %v752, %v945
      %v966 = vld [vmem:[%s313] sm:$0xf]
      %v967 = vld [vmem:[%s313 + $0x4] sm:$0xf]
      %v968 = vld [vmem:[%s313 + $0x8] sm:$0xf]
      %v969 = vld [vmem:[%s313 + $0xc] sm:$0xf]
      %v970 = vld [vmem:[%s313 + $0x10] sm:$0xf]
      %v971 = vld [vmem:[%s313 + $0x14] sm:$0xf]
      %v972 = vld [vmem:[%s313 + $0x18] sm:$0xf]
      %v973 = vld [vmem:[%s313 + $0x1c] sm:$0xf]
      %v974 = vld [vmem:[%s313 + $0x20] sm:$0xf]
      %v975 = vld [vmem:[%s313 + $0x24] sm:$0xf]
      %v976 = vld [vmem:[%s313 + $0x28] sm:$0xf]
      %v977 = vld [vmem:[%s313 + $0x2c] sm:$0xf]
      %v978 = vld [vmem:[%s313 + $0x30] sm:$0xf]
      %v979 = vld [vmem:[%s313 + $0x34] sm:$0xf]
      %v980 = vld [vmem:[%s313 + $0x38] sm:$0xf]
      %v981 = vld [vmem:[%s313 + $0x3c] sm:$0xf]
      %v982 = vld [vmem:[%s313 + $0x40] sm:$0xf]
      %v983 = vld [vmem:[%s313 + $0x44] sm:$0xf]
      %v1002 = vunpack.c.l.b16 %v966
      %v1003 = vunpack.c.l.b16 %v967
      %v1004 = vunpack.c.l.b16 %v968
      %v1005 = vunpack.c.l.b16 %v969
      %v1006 = vunpack.c.l.b16 %v970
      %v1007 = vunpack.c.l.b16 %v971
      %v1008 = vunpack.c.l.b16 %v972
      %v1009 = vunpack.c.l.b16 %v973
      %v1010 = vunpack.c.l.b16 %v974
      %v1011 = vunpack.c.l.b16 %v975
      %v1012 = vunpack.c.l.b16 %v976
      %v1013 = vunpack.c.l.b16 %v977
      %v1014 = vunpack.c.l.b16 %v978
      %v1015 = vunpack.c.l.b16 %v979
      %v1016 = vunpack.c.l.b16 %v980
      %v1017 = vunpack.c.l.b16 %v981
      %v1018 = vunpack.c.l.b16 %v982
      %v1019 = vunpack.c.l.b16 %v983
      %v1020 = vpack.c.b16 %v1003, %v1002
      %v1021 = vpack.c.b16 %v1005, %v1004
      %v1022 = vpack.c.b16 %v1007, %v1006
      %v1023 = vpack.c.b16 %v1009, %v1008
      %v1024 = vpack.c.b16 %v1011, %v1010
      %v1025 = vpack.c.b16 %v1013, %v1012
      %v1026 = vpack.c.b16 %v1015, %v1014
      %v1027 = vpack.c.b16 %v1017, %v1016
      %v1028 = vpack.c.b16 %v1019, %v1018
      %v1030 = vsel %vm400, %v1020, 0
      %v1033 = vsel %vm400, %v1021, 0
      %v1036 = vsel %vm400, %v1022, 0
      %v1039 = vsel %vm400, %v1023, 0
      %v1042 = vsel %vm400, %v1024, 0
      %v1045 = vsel %vm400, %v1025, 0
      %v1048 = vsel %vm400, %v1026, 0
      %v1051 = vsel %vm400, %v1027, 0
      %v1054 = vsel %vm400, %v1028, 0
      %1056 = vmatprep.subr.bf16.mxu0 0
      %1057 = vmatpush1.bf16.msra.mxu0 0
      %1058 = vmatprep.subr.bf16.mxu0 0
      %1059 = vmatpush1.bf16.msra.mxu0 0
      %1060 = vmatprep.subr.bf16.mxu0 0
      %1061 = vmatpush1.bf16.msra.mxu0 0
      %1062 = vmatprep.subr.bf16.mxu0 0
      %1063 = vmatpush1.bf16.msra.mxu0 0
      %1064 = vmatprep.subr.bf16.mxu0 0
      %1065 = vmatpush1.bf16.msra.mxu0 0
      %1066 = vmatprep.subr.bf16.mxu0 0
      %1067 = vmatpush1.bf16.msra.mxu0 0
      %1068 = vmatprep.subr.bf16.mxu0 0
      %1069 = vmatpush1.bf16.msra.mxu0 %v433
      %1070 = vmatprep.subr.bf16.mxu0 0
      %1071 = vmatpush1.bf16.msra.mxu0 %v397
      %1072 = vmatprep.subr.bf16.mxu0 0
      %1073 = vmatpush2.bf16.msra.mxu0 0
      %1074 = vmatprep.subr.bf16.mxu0 0
      %1075 = vmatpush2.bf16.msra.mxu0 0
      %1076 = vmatprep.subr.bf16.mxu0 0
      %1077 = vmatpush2.bf16.msra.mxu0 0
      %1078 = vmatprep.subr.bf16.mxu0 0
      %1079 = vmatpush2.bf16.msra.mxu0 0
      %1080 = vmatprep.subr.bf16.mxu0 0
      %1081 = vmatpush2.bf16.msra.mxu0 0
      %1082 = vmatprep.subr.bf16.mxu0 0
      %1083 = vmatpush2.bf16.msra.mxu0 0
      %1084 = vmatprep.subr.bf16.mxu0 0
      %1085 = vmatpush2.bf16.msra.mxu0 0
      %1086 = vmatprep.subr.bf16.mxu0 0
      %1087 = vmatpush2.bf16.msra.mxu0 0
      %1088 = vmatprep.mubr.bf16.mxu0 0
      %1089 = vmatmul.mubr.bf16.gmra.mxu0 %v1030
      %v1090 = vpop.f32.mrf.mxu0
      %v1091 = vadd.f32 0.0, %v1090
      %v1092 = vpop.f32.mrf.mxu0
      %v1093 = vpop.f32.mrf.mxu0
      %v1094 = vadd.f32 0.0, %v1093
      %v1095 = vpop.f32.mrf.mxu0
      %1096 = vmatprep.mubr.bf16.mxu0 0
      %1097 = vmatmul.mubr.bf16.gmra.mxu0 %v1033
      %v1098 = vpop.f32.mrf.mxu0
      %v1099 = vadd.f32 0.0, %v1098
      %v1100 = vpop.f32.mrf.mxu0
      %v1101 = vpop.f32.mrf.mxu0
      %v1102 = vadd.f32 0.0, %v1101
      %v1103 = vpop.f32.mrf.mxu0
      %1104 = vmatprep.mubr.bf16.mxu0 0
      %1105 = vmatmul.mubr.bf16.gmra.mxu0 %v1036
      %v1106 = vpop.f32.mrf.mxu0
      %v1107 = vadd.f32 0.0, %v1106
      %v1108 = vpop.f32.mrf.mxu0
      %v1109 = vpop.f32.mrf.mxu0
      %v1110 = vadd.f32 0.0, %v1109
      %v1111 = vpop.f32.mrf.mxu0
      %1112 = vmatprep.mubr.bf16.mxu0 0
      %1113 = vmatmul.mubr.bf16.gmra.mxu0 %v1039
      %v1114 = vpop.f32.mrf.mxu0
      %v1115 = vadd.f32 0.0, %v1114
      %v1116 = vpop.f32.mrf.mxu0
      %v1117 = vpop.f32.mrf.mxu0
      %v1118 = vadd.f32 0.0, %v1117
      %v1119 = vpop.f32.mrf.mxu0
      %1120 = vmatprep.mubr.bf16.mxu0 0
      %1121 = vmatmul.mubr.bf16.gmra.mxu0 %v1042
      %v1122 = vpop.f32.mrf.mxu0
      %v1123 = vadd.f32 0.0, %v1122
      %v1124 = vpop.f32.mrf.mxu0
      %v1125 = vpop.f32.mrf.mxu0
      %v1126 = vadd.f32 0.0, %v1125
      %v1127 = vpop.f32.mrf.mxu0
      %1128 = vmatprep.mubr.bf16.mxu0 0
      %1129 = vmatmul.mubr.bf16.gmra.mxu0 %v1045
      %v1130 = vpop.f32.mrf.mxu0
      %v1131 = vadd.f32 0.0, %v1130
      %v1132 = vpop.f32.mrf.mxu0
      %v1133 = vpop.f32.mrf.mxu0
      %v1134 = vadd.f32 0.0, %v1133
      %v1135 = vpop.f32.mrf.mxu0
      %1136 = vmatprep.mubr.bf16.mxu0 0
      %1137 = vmatmul.mubr.bf16.gmra.mxu0 %v1048
      %v1138 = vpop.f32.mrf.mxu0
      %v1139 = vadd.f32 0.0, %v1138
      %v1140 = vpop.f32.mrf.mxu0
      %v1141 = vpop.f32.mrf.mxu0
      %v1142 = vadd.f32 0.0, %v1141
      %v1143 = vpop.f32.mrf.mxu0
      %1144 = vmatprep.mubr.bf16.mxu0 0
      %1145 = vmatmul.mubr.bf16.gmra.mxu0 %v1051
      %v1146 = vpop.f32.mrf.mxu0
      %v1147 = vadd.f32 0.0, %v1146
      %v1148 = vpop.f32.mrf.mxu0
      %v1149 = vpop.f32.mrf.mxu0
      %v1150 = vadd.f32 0.0, %v1149
      %v1151 = vpop.f32.mrf.mxu0
      %1152 = vmatprep.mubr.bf16.mxu0 0
      %1153 = vmatmul.mubr.bf16.gmra.mxu0 %v1054
      %v1154 = vpop.f32.mrf.mxu0
      %v1155 = vadd.f32 0.0, %v1154
      %v1156 = vpop.f32.mrf.mxu0
      %v1157 = vpop.f32.mrf.mxu0
      %v1158 = vadd.f32 0.0, %v1157
      %v1159 = vpop.f32.mrf.mxu0
      %1160 = vdwg.mxu0
      %v1161 = vmax.f32 %v948, %v1091
      %v1162 = vmax.f32 %v949, %v1094
      %v1163 = vmax.f32 %v950, %v1099
      %v1164 = vmax.f32 %v951, %v1102
      %v1165 = vmax.f32 %v952, %v1107
      %v1166 = vmax.f32 %v953, %v1110
      %v1167 = vmax.f32 %v954, %v1115
      %v1168 = vmax.f32 %v955, %v1118
      %v1169 = vmax.f32 %v956, %v1123
      %v1170 = vmax.f32 %v957, %v1126
      %v1171 = vmax.f32 %v958, %v1131
      %v1172 = vmax.f32 %v959, %v1134
      %v1173 = vmax.f32 %v960, %v1139
      %v1174 = vmax.f32 %v961, %v1142
      %v1175 = vmax.f32 %v962, %v1147
      %v1176 = vmax.f32 %v963, %v1150
      %v1177 = vmax.f32 %v964, %v1155
      %v1178 = vmax.f32 %v965, %v1158
      %v1179 = vld [vmem:[%s5] sm:$0x1]
      %v1181 = vlaneseq
      %v1182 = vshrl.u32 %v1181, 7
      %v1183 = vsub.s32 0, %v1182
      %v1184 = vrot.slane %v1179, %v1183
      %v1186 = vadd.f32 %v1161, %v1184
      %v1187 = vadd.f32 %v1162, %v1184
      %v1188 = vadd.f32 %v1163, %v1184
      %v1189 = vadd.f32 %v1164, %v1184
      %v1190 = vadd.f32 %v1165, %v1184
      %v1191 = vadd.f32 %v1166, %v1184
      %v1192 = vadd.f32 %v1167, %v1184
      %v1193 = vadd.f32 %v1168, %v1184
      %v1194 = vadd.f32 %v1169, %v1184
      %v1195 = vadd.f32 %v1170, %v1184
      %v1196 = vadd.f32 %v1171, %v1184
      %v1197 = vadd.f32 %v1172, %v1184
      %v1198 = vadd.f32 %v1173, %v1184
      %v1199 = vadd.f32 %v1174, %v1184
      %v1200 = vadd.f32 %v1175, %v1184
      %v1201 = vadd.f32 %v1176, %v1184
      %v1202 = vadd.f32 %v1177, %v1184
      %v1203 = vadd.f32 %v1178, %v1184
      %v1204 = vmax.f32 %v1186, 0.0
      %v1205 = vmax.f32 %v1187, 0.0
      %v1206 = vmax.f32 %v1188, 0.0
      %v1207 = vmax.f32 %v1189, 0.0
      %v1208 = vmax.f32 %v1190, 0.0
      %v1209 = vmax.f32 %v1191, 0.0
      %v1210 = vmax.f32 %v1192, 0.0
      %v1211 = vmax.f32 %v1193, 0.0
      %v1212 = vmax.f32 %v1194, 0.0
      %v1213 = vmax.f32 %v1195, 0.0
      %v1214 = vmax.f32 %v1196, 0.0
      %v1215 = vmax.f32 %v1197, 0.0
      %v1216 = vmax.f32 %v1198, 0.0
      %v1217 = vmax.f32 %v1199, 0.0
      %v1218 = vmax.f32 %v1200, 0.0
      %v1219 = vmax.f32 %v1201, 0.0
      %v1220 = vmax.f32 %v1202, 0.0
      %v1221 = vmax.f32 %v1203, 0.0
      %v1222 = vpack.c.bf16 %v1205, %v1204
      %v1223 = vpack.c.bf16 %v1207, %v1206
      %v1224 = vpack.c.bf16 %v1209, %v1208
      %v1225 = vpack.c.bf16 %v1211, %v1210
      %v1226 = vpack.c.bf16 %v1213, %v1212
      %v1227 = vpack.c.bf16 %v1215, %v1214
      %v1228 = vpack.c.bf16 %v1217, %v1216
      %v1229 = vpack.c.bf16 %v1219, %v1218
      %v1230 = vpack.c.bf16 %v1221, %v1220
      %v1240 = vunpack.c.l.b16 %v1222
      %v1241 = vunpack.c.h.b16 %v1222
      %v1242 = vunpack.c.l.b16 %v1223
      %v1243 = vunpack.c.h.b16 %v1223
      %v1244 = vunpack.c.l.b16 %v1224
      %v1245 = vunpack.c.h.b16 %v1224
      %v1246 = vunpack.c.l.b16 %v1225
      %v1247 = vunpack.c.h.b16 %v1225
      %v1248 = vunpack.c.l.b16 %v1226
      %v1249 = vunpack.c.h.b16 %v1226
      %v1250 = vunpack.c.l.b16 %v1227
      %v1251 = vunpack.c.h.b16 %v1227
      %v1252 = vunpack.c.l.b16 %v1228
      %v1253 = vunpack.c.h.b16 %v1228
      %v1254 = vunpack.c.l.b16 %v1229
      %v1255 = vunpack.c.h.b16 %v1229
      %v1256 = vunpack.c.l.b16 %v1230
      %v1257 = vunpack.c.h.b16 %v1230
      %v1258 = vpack.c.b16 %v1240, %v1240
      %v1259 = vpack.c.b16 %v1241, %v1241
      %v1260 = vpack.c.b16 %v1242, %v1242
      %v1261 = vpack.c.b16 %v1243, %v1243
      %v1262 = vpack.c.b16 %v1244, %v1244
      %v1263 = vpack.c.b16 %v1245, %v1245
      %v1264 = vpack.c.b16 %v1246, %v1246
      %v1265 = vpack.c.b16 %v1247, %v1247
      %v1266 = vpack.c.b16 %v1248, %v1248
      %v1267 = vpack.c.b16 %v1249, %v1249
      %v1268 = vpack.c.b16 %v1250, %v1250
      %v1269 = vpack.c.b16 %v1251, %v1251
      %v1270 = vpack.c.b16 %v1252, %v1252
      %v1271 = vpack.c.b16 %v1253, %v1253
      %v1272 = vpack.c.b16 %v1254, %v1254
      %v1273 = vpack.c.b16 %v1255, %v1255
      %v1274 = vpack.c.b16 %v1256, %v1256
      %v1275 = vpack.c.b16 %v1257, %v1257
      %vm1294 = vcmask 76800
      %1295 = vst.msk [vmem:[%s319] sm:$0xf] %vm1294, %v1258
      %1296 = vst.msk [vmem:[%s319 + $0x4] sm:$0xf] %vm1294, %v1259
      %1297 = vst.msk [vmem:[%s319 + $0x8] sm:$0xf] %vm1294, %v1260
      %1298 = vst.msk [vmem:[%s319 + $0xc] sm:$0xf] %vm1294, %v1261
      %1299 = vst.msk [vmem:[%s319 + $0x10] sm:$0xf] %vm1294, %v1262
      %1300 = vst.msk [vmem:[%s319 + $0x14] sm:$0xf] %vm1294, %v1263
      %1301 = vst.msk [vmem:[%s319 + $0x18] sm:$0xf] %vm1294, %v1264
      %1302 = vst.msk [vmem:[%s319 + $0x1c] sm:$0xf] %vm1294, %v1265
      %1303 = vst.msk [vmem:[%s319 + $0x20] sm:$0xf] %vm1294, %v1266
      %1304 = vst.msk [vmem:[%s319 + $0x24] sm:$0xf] %vm1294, %v1267
      %1305 = vst.msk [vmem:[%s319 + $0x28] sm:$0xf] %vm1294, %v1268
      %1306 = vst.msk [vmem:[%s319 + $0x2c] sm:$0xf] %vm1294, %v1269
      %1307 = vst.msk [vmem:[%s319 + $0x30] sm:$0xf] %vm1294, %v1270
      %1308 = vst.msk [vmem:[%s319 + $0x34] sm:$0xf] %vm1294, %v1271
      %1309 = vst.msk [vmem:[%s319 + $0x38] sm:$0xf] %vm1294, %v1272
      %1310 = vst.msk [vmem:[%s319 + $0x3c] sm:$0xf] %vm1294, %v1273
      %1311 = vst.msk [vmem:[%s319 + $0x40] sm:$0xf] %vm1294, %v1274
      %1312 = vst.msk [vmem:[%s319 + $0x44] sm:$0xf] %vm1294, %v1275
      %s1313 = smul.u32 18, %s17
      %p1314 = scmp.lt.s32.totalorder %s1313, 35
      %s1315 = scalar_select %p1314, %s1313, 35
      %s1316 = smul.addr %s1315, 4
      %s1317 = scalar_lea.vmem %s6, %s1316
      // Predicated region
      $region45: #{forward.11} parent=43 // pred_check
        %p1318 = pneg %p181
      $region46: #{forward.11} parent=43 // pred_check_branch
        %1320 = sbr.rel (%p1318) target = $region48
      $region47: #{forward.11} parent=43 // pred_region
        %s1321 = smul.u32 18, %s17
      $region48: #{forward.11} parent=43 // pred_fallthru
        _
    $region44: #{forward.11} parent=5 // pred_fallthru
      _
    %p1322 = scmp.le.s32.totalorder 2, %s12
    // Predicated region
    $region49: #{forward.11} parent=5 // pred_check
      %p1323 = pneg %p1322
    $region50: #{forward.11} parent=5 // pred_check_branch
      %1325 = sbr.rel (%p1323) target = $region52
    $region51: #{forward.11} parent=5 // pred_region
      %s1326 = ssub.s32 %s12, 2
      // Predicated region
      $region53: #{forward.11} parent=51 // pred_check
        %p1327 = pneg %p187
      $region54: #{forward.11} parent=51 // pred_check_branch
        %1329 = sbr.rel (%p1327) target = $region56
      $region55: #{forward.11} parent=51 // pred_region
        %s1330 = smul.u32 18, %s18
        %p1331 = scmp.lt.s32.totalorder %s1330, 35
        %s1332 = scalar_select %p1331, %s1330, 35
        %s1333 = smul.addr %s1332, 4
        %s1334 = scalar_lea.vmem %s6, %s1333
      $region56: #{forward.11} parent=51 // pred_fallthru
        _
    $region52: #{forward.11} parent=5 // pred_fallthru
      _
  $region6: #{forward.11} parent=0 // loop_footer
    %s16 = sadd.s32 1, %s12
  $region7: #{forward.11} parent=0 // loop_footer_branch
    %11 = sbr.rel target = $region3
  $region8: #{forward.11} parent=0 // loop_exit
    _

// kernel: forward.12
$region0: #{forward.12}
  #allocation0 [shape = 'u32[]', space=smem, size = 0x4, offset = 0x4, fixed_abs, tag = 'smem constant byte address 0x4 - core index']
  #allocation1 [shape = 'u32[144,128]{1,0:T(1,128)}', space=vmem, size = 0x12000, scoped, tag = 'internal scratch']
  %s0 = inlined_call_operand.vmem [shape: bf16[32,250], index: 0, kind: input, shape index: {}]
  %s1 = inlined_call_operand.vmem [shape: bf16[32,250], index: 1, kind: input, shape index: {}]
  %s2 = inlined_call_operand.vmem [shape: bf16[32,250], index: 2, kind: input, shape index: {}]
  %s3 = inlined_call_operand.vmem [shape: bf16[32,250], index: 3, kind: input, shape index: {}]
  %s4 = inlined_call_operand.vmem [shape: bf16[250,20], index: 4, kind: input, shape index: {}]
  %s5 = inlined_call_operand.vmem [shape: f32[1,20], index: 5, kind: input, shape index: {}]
  %s6 = inlined_call_operand.vmem [shape: bf16[32,20], index: 6, kind: output, shape index: {}]
  %s7 = sld [smem:[#allocation0]]
  $region57: #{forward.12} parent=0
    _
  %s9 = ssub.s32 1, %s7
  %s10 = scalar_select 0, %s9, %s7
  loop: start=0, step=1, limit=4
  $region2: #{forward.12} parent=0 // loop_pre_header
    _
  $region3: #{forward.12} parent=0 // loop_header
    %s12 = sphi 0, %s16
    %p13 = scmp.ge.s32.totalorder %s12, 4
    %s22 = sphi 0, %s24
    %s25 = sphi 0, %s22
    %s26 = sphi 0, %s25
    %s42 = sphi 0, %s26
    %s48 = sphi 0, %s50
    %s51 = sphi 0, %s48
    %s52 = sphi 0, %s51
    %s68 = sphi 0, %s52
    %s74 = sphi 0, %s76
    %s77 = sphi 0, %s74
    %s78 = sphi 0, %s77
    %s94 = sphi 0, %s78
    %s100 = sphi 0, %s102
    %s103 = sphi 0, %s100
    %s104 = sphi 0, %s103
    %s120 = sphi 0, %s104
    %s124 = sphi 0, %s124
    %s126 = sphi 0, %s124
    %s127 = sphi 0, %s126
    %s141 = sphi 0, %s127
    %s145 = sphi 0, %s145
    %s147 = sphi 0, %s145
    %s148 = sphi 0, %s147
    %s162 = sphi 0, %s148
    %s168 = sphi 0, %s170
    %s171 = sphi 0, %s168
    %s172 = sphi 0, %s171
    %s188 = sphi 0, %s172
  $region4: #{forward.12} parent=0 // loop_header_branch
    %15 = sbr.rel (%p13) target = $region8
  $region5: #{forward.12} parent=0 // loop_body
    %s17 = ssub.s32 %s12, 1
    %s18 = ssub.s32 %s12, 2
    %s19 = sadd.s32 %s12, 1
    %s20 = ssub.s32 %s12, %s19
    %p21 = scmp.eq.s32.totalorder %s20, 0
    %s23 = sadd.s32 %s22, 1
    %s24 = scalar_select %p21, %s22, %s23
    %p27 = pneg %p21
    %p28 = scmp.eq.s32.totalorder %s12, 1
    %p29 = por %p27, %p28
    %p30 = scmp.ne.s32.totalorder %s22, %s25
    %p31 = scmp.eq.s32.totalorder %s12, 0
    %p32 = por %p30, %p31
    %p33 = scmp.ne.s32.totalorder %s22, %s25
    %p34 = scmp.eq.s32.totalorder %s17, 1
    %p35 = por %p33, %p34
    %p36 = scmp.ne.s32.totalorder %s25, %s26
    %p37 = scmp.eq.s32.totalorder %s17, 0
    %p38 = por %p36, %p37
    %p39 = scmp.ne.s32.totalorder %s25, %s26
    %p40 = scmp.eq.s32.totalorder %s18, 1
    %p41 = por %p39, %p40
    %p43 = scmp.ne.s32.totalorder %s26, %s42
    %p44 = scmp.eq.s32.totalorder %s18, 0
    %p45 = por %p43, %p44
    %s46 = ssub.s32 %s12, %s19
    %p47 = scmp.eq.s32.totalorder %s46, 0
    %s49 = sadd.s32 %s48, 1
    %s50 = scalar_select %p47, %s48, %s49
    %p53 = pneg %p47
    %p54 = scmp.eq.s32.totalorder %s12, 1
    %p55 = por %p53, %p54
    %p56 = scmp.ne.s32.totalorder %s48, %s51
    %p57 = scmp.eq.s32.totalorder %s12, 0
    %p58 = por %p56, %p57
    %p59 = scmp.ne.s32.totalorder %s48, %s51
    %p60 = scmp.eq.s32.totalorder %s17, 1
    %p61 = por %p59, %p60
    %p62 = scmp.ne.s32.totalorder %s51, %s52
    %p63 = scmp.eq.s32.totalorder %s17, 0
    %p64 = por %p62, %p63
    %p65 = scmp.ne.s32.totalorder %s51, %s52
    %p66 = scmp.eq.s32.totalorder %s18, 1
    %p67 = por %p65, %p66
    %p69 = scmp.ne.s32.totalorder %s52, %s68
    %p70 = scmp.eq.s32.totalorder %s18, 0
    %p71 = por %p69, %p70
    %s72 = ssub.s32 %s12, %s19
    %p73 = scmp.eq.s32.totalorder %s72, 0
    %s75 = sadd.s32 %s74, 1
    %s76 = scalar_select %p73, %s74, %s75
    %p79 = pneg %p73
    %p80 = scmp.eq.s32.totalorder %s12, 1
    %p81 = por %p79, %p80
    %p82 = scmp.ne.s32.totalorder %s74, %s77
    %p83 = scmp.eq.s32.totalorder %s12, 0
    %p84 = por %p82, %p83
    %p85 = scmp.ne.s32.totalorder %s74, %s77
    %p86 = scmp.eq.s32.totalorder %s17, 1
    %p87 = por %p85, %p86
    %p88 = scmp.ne.s32.totalorder %s77, %s78
    %p89 = scmp.eq.s32.totalorder %s17, 0
    %p90 = por %p88, %p89
    %p91 = scmp.ne.s32.totalorder %s77, %s78
    %p92 = scmp.eq.s32.totalorder %s18, 1
    %p93 = por %p91, %p92
    %p95 = scmp.ne.s32.totalorder %s78, %s94
    %p96 = scmp.eq.s32.totalorder %s18, 0
    %p97 = por %p95, %p96
    %s98 = ssub.s32 %s12, %s19
    %p99 = scmp.eq.s32.totalorder %s98, 0
    %s101 = sadd.s32 %s100, 1
    %s102 = scalar_select %p99, %s100, %s101
    %p105 = pneg %p99
    %p106 = scmp.eq.s32.totalorder %s12, 1
    %p107 = por %p105, %p106
    %p108 = scmp.ne.s32.totalorder %s100, %s103
    %p109 = scmp.eq.s32.totalorder %s12, 0
    %p110 = por %p108, %p109
    %p111 = scmp.ne.s32.totalorder %s100, %s103
    %p112 = scmp.eq.s32.totalorder %s17, 1
    %p113 = por %p111, %p112
    %p114 = scmp.ne.s32.totalorder %s103, %s104
    %p115 = scmp.eq.s32.totalorder %s17, 0
    %p116 = por %p114, %p115
    %p117 = scmp.ne.s32.totalorder %s103, %s104
    %p118 = scmp.eq.s32.totalorder %s18, 1
    %p119 = por %p117, %p118
    %p121 = scmp.ne.s32.totalorder %s104, %s120
    %p122 = scmp.eq.s32.totalorder %s18, 0
    %p123 = por %p121, %p122
    %s125 = sadd.s32 %s124, 1
    %p128 = scmp.eq.s32.totalorder %s12, 1
    %p129 = scmp.ne.s32.totalorder %s124, %s126
    %p130 = scmp.eq.s32.totalorder %s12, 0
    %p131 = por %p129, %p130
    %p132 = scmp.ne.s32.totalorder %s124, %s126
    %p133 = scmp.eq.s32.totalorder %s17, 1
    %p134 = por %p132, %p133
    %p135 = scmp.ne.s32.totalorder %s126, %s127
    %p136 = scmp.eq.s32.totalorder %s17, 0
    %p137 = por %p135, %p136
    %p138 = scmp.ne.s32.totalorder %s126, %s127
    %p139 = scmp.eq.s32.totalorder %s18, 1
    %p140 = por %p138, %p139
    %p142 = scmp.ne.s32.totalorder %s127, %s141
    %p143 = scmp.eq.s32.totalorder %s18, 0
    %p144 = por %p142, %p143
    %s146 = sadd.s32 %s145, 1
    %p149 = scmp.eq.s32.totalorder %s12, 1
    %p150 = scmp.ne.s32.totalorder %s145, %s147
    %p151 = scmp.eq.s32.totalorder %s12, 0
    %p152 = por %p150, %p151
    %p153 = scmp.ne.s32.totalorder %s145, %s147
    %p154 = scmp.eq.s32.totalorder %s17, 1
    %p155 = por %p153, %p154
    %p156 = scmp.ne.s32.totalorder %s147, %s148
    %p157 = scmp.eq.s32.totalorder %s17, 0
    %p158 = por %p156, %p157
    %p159 = scmp.ne.s32.totalorder %s147, %s148
    %p160 = scmp.eq.s32.totalorder %s18, 1
    %p161 = por %p159, %p160
    %p163 = scmp.ne.s32.totalorder %s148, %s162
    %p164 = scmp.eq.s32.totalorder %s18, 0
    %p165 = por %p163, %p164
    %s166 = ssub.s32 %s12, %s19
    %p167 = scmp.eq.s32.totalorder %s166, 0
    %s169 = sadd.s32 %s168, 1
    %s170 = scalar_select %p167, %s168, %s169
    %p173 = pneg %p167
    %p174 = scmp.eq.s32.totalorder %s12, 1
    %p175 = por %p173, %p174
    %p176 = scmp.ne.s32.totalorder %s168, %s171
    %p177 = scmp.eq.s32.totalorder %s12, 0
    %p178 = por %p176, %p177
    %p179 = scmp.ne.s32.totalorder %s168, %s171
    %p180 = scmp.eq.s32.totalorder %s17, 1
    %p181 = por %p179, %p180
    %p182 = scmp.ne.s32.totalorder %s171, %s172
    %p183 = scmp.eq.s32.totalorder %s17, 0
    %p184 = por %p182, %p183
    %p185 = scmp.ne.s32.totalorder %s171, %s172
    %p186 = scmp.eq.s32.totalorder %s18, 1
    %p187 = por %p185, %p186
    %p189 = scmp.ne.s32.totalorder %s172, %s188
    %p190 = scmp.eq.s32.totalorder %s18, 0
    %p191 = por %p189, %p190
    %p192 = scmp.le.s32.totalorder 1, %s12
    %p193 = scmp.lt.s32.totalorder %s12, 3
    %p194 = pnand %p192, %p193
    %p195 = pneg %p194
    // Predicated region
    $region9: #{forward.12} parent=5 // pred_check
      _
    $region10: #{forward.12} parent=5 // pred_check_branch
      %197 = sbr.rel (%p194) target = $region12
    $region11: #{forward.12} parent=5 // pred_region
      %s198 = ssub.s32 %s12, 1
      // Predicated region
      $region13: #{forward.12} parent=11 // pred_check
        %p199 = pneg %p137
      $region14: #{forward.12} parent=11 // pred_check_branch
        %201 = sbr.rel (%p199) target = $region16
      $region15: #{forward.12} parent=11 // pred_region
        _
      $region16: #{forward.12} parent=11 // pred_fallthru
        _
      // Predicated region
      $region17: #{forward.12} parent=11 // pred_check
        %p202 = pneg %p158
      $region18: #{forward.12} parent=11 // pred_check_branch
        %204 = sbr.rel (%p202) target = $region20
      $region19: #{forward.12} parent=11 // pred_region
        _
      $region20: #{forward.12} parent=11 // pred_fallthru
        _
    $region12: #{forward.12} parent=5 // pred_fallthru
      _
    %p205 = scmp.lt.s32.totalorder %s12, 2
    // Predicated region
    $region21: #{forward.12} parent=5 // pred_check
      %p206 = pneg %p205
    $region22: #{forward.12} parent=5 // pred_check_branch
      %208 = sbr.rel (%p206) target = $region24
    $region23: #{forward.12} parent=5 // pred_region
      // Predicated region
      $region25: #{forward.12} parent=23 // pred_check
        %p209 = pneg %p32
      $region26: #{forward.12} parent=23 // pred_check_branch
        %211 = sbr.rel (%p209) target = $region28
      $region27: #{forward.12} parent=23 // pred_region
        %s212 = smul.u32 2, %s12
        %p213 = scmp.lt.s32.totalorder %s212, 3
        %s214 = scalar_select %p213, %s212, 3
        %s215 = smul.addr %s214, 2
        %s216 = smul.addr %s215, 4
        %s217 = scalar_lea.vmem %s0, %s216
        %s218 = smul.u32 2, %s12
      $region28: #{forward.12} parent=23 // pred_fallthru
        _
      // Predicated region
      $region29: #{forward.12} parent=23 // pred_check
        %p219 = pneg %p58
      $region30: #{forward.12} parent=23 // pred_check_branch
        %221 = sbr.rel (%p219) target = $region32
      $region31: #{forward.12} parent=23 // pred_region
        %s222 = smul.u32 2, %s12
        %p223 = scmp.lt.s32.totalorder %s222, 3
        %s224 = scalar_select %p223, %s222, 3
        %s225 = smul.addr %s224, 2
        %s226 = smul.addr %s225, 4
        %s227 = scalar_lea.vmem %s1, %s226
        %s228 = smul.u32 2, %s12
      $region32: #{forward.12} parent=23 // pred_fallthru
        _
      // Predicated region
      $region33: #{forward.12} parent=23 // pred_check
        %p229 = pneg %p84
      $region34: #{forward.12} parent=23 // pred_check_branch
        %231 = sbr.rel (%p229) target = $region36
      $region35: #{forward.12} parent=23 // pred_region
        %s232 = smul.u32 2, %s12
        %p233 = scmp.lt.s32.totalorder %s232, 3
        %s234 = scalar_select %p233, %s232, 3
        %s235 = smul.addr %s234, 2
        %s236 = smul.addr %s235, 4
        %s237 = scalar_lea.vmem %s2, %s236
        %s238 = smul.u32 2, %s12
      $region36: #{forward.12} parent=23 // pred_fallthru
        _
      // Predicated region
      $region37: #{forward.12} parent=23 // pred_check
        %p239 = pneg %p110
      $region38: #{forward.12} parent=23 // pred_check_branch
        %241 = sbr.rel (%p239) target = $region40
      $region39: #{forward.12} parent=23 // pred_region
        %s242 = smul.u32 2, %s12
        %p243 = scmp.lt.s32.totalorder %s242, 3
        %s244 = scalar_select %p243, %s242, 3
        %s245 = smul.addr %s244, 2
        %s246 = smul.addr %s245, 4
        %s247 = scalar_lea.vmem %s3, %s246
        %s248 = smul.u32 2, %s12
      $region40: #{forward.12} parent=23 // pred_fallthru
        _
    $region24: #{forward.12} parent=5 // pred_fallthru
      _
    %p249 = scmp.le.s32.totalorder 1, %s12
    %p250 = scmp.lt.s32.totalorder %s12, 3
    %p251 = pnand %p249, %p250
    %p252 = pneg %p251
    // Predicated region
    $region41: #{forward.12} parent=5 // pred_check
      _
    $region42: #{forward.12} parent=5 // pred_check_branch
      %254 = sbr.rel (%p251) target = $region44
    $region43: #{forward.12} parent=5 // pred_region
      %s255 = ssub.s32 %s12, 1
      %s256 = smul.u32 2, %s17
      %p257 = scmp.lt.s32.totalorder %s256, 3
      %s258 = scalar_select %p257, %s256, 3
      %s259 = smul.addr %s258, 2
      %s260 = smul.addr %s259, 4
      %s261 = scalar_lea.vmem %s0, %s260
      %p262 = pneg %p38
      %p263 = pneg %p35
      %s264 = smul.u32 2, %s17
      %p265 = scmp.lt.s32.totalorder %s264, 3
      %s266 = scalar_select %p265, %s264, 3
      %s267 = smul.addr %s266, 2
      %s268 = smul.addr %s267, 4
      %s269 = scalar_lea.vmem %s1, %s268
      %p270 = pneg %p64
      %p271 = pneg %p61
      %s272 = smul.u32 2, %s17
      %p273 = scmp.lt.s32.totalorder %s272, 3
      %s274 = scalar_select %p273, %s272, 3
      %s275 = smul.addr %s274, 2
      %s276 = smul.addr %s275, 4
      %s277 = scalar_lea.vmem %s2, %s276
      %p278 = pneg %p90
      %p279 = pneg %p87
      %s280 = smul.u32 2, %s17
      %p281 = scmp.lt.s32.totalorder %s280, 3
      %s282 = scalar_select %p281, %s280, 3
      %s283 = smul.addr %s282, 2
      %s284 = smul.addr %s283, 4
      %s285 = scalar_lea.vmem %s3, %s284
      %p286 = pneg %p116
      %p287 = pneg %p113
      %p288 = pneg %p137
      %p289 = pneg %p134
      %p290 = pneg %p158
      %p291 = pneg %p155
      %p292 = pneg %p184
      %p293 = pneg %p181
      %s294 = smul.u32 2, %s17
      %p295 = scmp.lt.s32.totalorder %s294, 3
      %s296 = scalar_select %p295, %s294, 3
      %s297 = smul.addr %s296, 4
      %s298 = scalar_lea.vmem %s6, %s297
      %s299 = smul.u32 2, %s17
      %p300 = scmp.lt.s32.totalorder %s299, 3
      %s301 = scalar_select %p300, %s299, 3
      %s302 = smul.addr %s301, 2
      %s303 = smul.addr %s302, 4
      %s304 = scalar_lea.vmem %s0, %s303
      %s305 = smul.u32 2, %s17
      %s306 = smul.u32 2, %s17
      %p307 = scmp.lt.s32.totalorder %s306, 3
      %s308 = scalar_select %p307, %s306, 3
      %s309 = smul.addr %s308, 2
      %s310 = smul.addr %s309, 4
      %s311 = scalar_lea.vmem %s1, %s310
      %s312 = smul.u32 2, %s17
      %s313 = smul.u32 2, %s17
      %p314 = scmp.lt.s32.totalorder %s313, 3
      %s315 = scalar_select %p314, %s313, 3
      %s316 = smul.addr %s315, 2
      %s317 = smul.addr %s316, 4
      %s318 = scalar_lea.vmem %s2, %s317
      %s319 = smul.u32 2, %s17
      %s320 = smul.u32 2, %s17
      %p321 = scmp.lt.s32.totalorder %s320, 3
      %s322 = scalar_select %p321, %s320, 3
      %s323 = smul.addr %s322, 2
      %s324 = smul.addr %s323, 4
      %s325 = scalar_lea.vmem %s3, %s324
      %s326 = smul.u32 2, %s17
      %s327 = smul.u32 2, %s17
      %p328 = scmp.lt.s32.totalorder %s327, 3
      %s329 = scalar_select %p328, %s327, 3
      %s330 = smul.addr %s329, 4
      %s331 = scalar_lea.vmem %s6, %s330
      %s332 = smul.u32 2, %s17
      %v334 = vld [vmem:[%s4] sm:$0xf]
      %v335 = vld [vmem:[%s4 + $0x4] sm:$0xf]
      %v336 = vld [vmem:[%s4 + $0x8] sm:$0xf]
      %v337 = vld [vmem:[%s4 + $0xc] sm:$0xf]
      %v338 = vld [vmem:[%s4 + $0x10] sm:$0xf]
      %v339 = vld [vmem:[%s4 + $0x14] sm:$0xf]
      %v340 = vld [vmem:[%s4 + $0x18] sm:$0xf]
      %v341 = vld [vmem:[%s4 + $0x1c] sm:$0xf]
      %v342 = vld [vmem:[%s4 + $0x20] sm:$0xf]
      %v343 = vld [vmem:[%s4 + $0x24] sm:$0xf]
      %v344 = vld [vmem:[%s4 + $0x28] sm:$0xf]
      %v345 = vld [vmem:[%s4 + $0x2c] sm:$0xf]
      %v346 = vld [vmem:[%s4 + $0x30] sm:$0xf]
      %v347 = vld [vmem:[%s4 + $0x34] sm:$0xf]
      %v348 = vld [vmem:[%s4 + $0x38] sm:$0xf]
      %v349 = vld [vmem:[%s4 + $0x3c] sm:$0xf]
      %v350 = vld [vmem:[%s4 + $0x40] sm:$0xf]
      %v351 = vld [vmem:[%s4 + $0x44] sm:$0xf]
      %v352 = vld [vmem:[%s4 + $0x48] sm:$0xf]
      %v353 = vld [vmem:[%s4 + $0x4c] sm:$0xf]
      %v354 = vld [vmem:[%s4 + $0x50] sm:$0xf]
      %v355 = vld [vmem:[%s4 + $0x54] sm:$0xf]
      %v356 = vld [vmem:[%s4 + $0x58] sm:$0xf]
      %v357 = vld [vmem:[%s4 + $0x5c] sm:$0xf]
      %v358 = vld [vmem:[%s4 + $0x60] sm:$0xf]
      %v359 = vld [vmem:[%s4 + $0x64] sm:$0xf]
      %v360 = vld [vmem:[%s4 + $0x68] sm:$0xf]
      %v361 = vld [vmem:[%s4 + $0x6c] sm:$0xf]
      %v362 = vld [vmem:[%s4 + $0x70] sm:$0xf]
      %v363 = vld [vmem:[%s4 + $0x74] sm:$0xf]
      %v364 = vld [vmem:[%s4 + $0x78] sm:$0xf]
      %v365 = vld [vmem:[%s4 + $0x7c] sm:$0x1]
      %v366 = vld [vmem:[%s304] sm:$0xff]
      %v367 = vld [vmem:[%s304 + $0x8] sm:$0xff]
      %v370 = vunpack.c.l.b16 %v366
      %v371 = vunpack.c.h.b16 %v366
      %v372 = vunpack.c.l.b16 %v367
      %v373 = vunpack.c.h.b16 %v367
      %v374 = vpack.c.b16 %v372, %v370
      %v375 = vpack.c.b16 %v373, %v371
      %v409 = vunpack.c.l.b16 %v334
      %v410 = vunpack.c.l.b16 %v335
      %v411 = vunpack.c.l.b16 %v336
      %v412 = vunpack.c.l.b16 %v337
      %v413 = vunpack.c.l.b16 %v338
      %v414 = vunpack.c.l.b16 %v339
      %v415 = vunpack.c.l.b16 %v340
      %v416 = vunpack.c.l.b16 %v341
      %v417 = vunpack.c.l.b16 %v342
      %v418 = vunpack.c.l.b16 %v343
      %v419 = vunpack.c.l.b16 %v344
      %v420 = vunpack.c.l.b16 %v345
      %v421 = vunpack.c.l.b16 %v346
      %v422 = vunpack.c.l.b16 %v347
      %v423 = vunpack.c.l.b16 %v348
      %v424 = vunpack.c.l.b16 %v349
      %v425 = vunpack.c.l.b16 %v350
      %v426 = vunpack.c.l.b16 %v351
      %v427 = vunpack.c.l.b16 %v352
      %v428 = vunpack.c.l.b16 %v353
      %v429 = vunpack.c.l.b16 %v354
      %v430 = vunpack.c.l.b16 %v355
      %v431 = vunpack.c.l.b16 %v356
      %v432 = vunpack.c.l.b16 %v357
      %v433 = vunpack.c.l.b16 %v358
      %v434 = vunpack.c.l.b16 %v359
      %v435 = vunpack.c.l.b16 %v360
      %v436 = vunpack.c.l.b16 %v361
      %v437 = vunpack.c.l.b16 %v362
      %v438 = vunpack.c.l.b16 %v363
      %v439 = vunpack.c.l.b16 %v364
      %v440 = vunpack.c.l.b16 %v365
      %v441 = vpack.c.b16 %v410, %v409
      %v442 = vpack.c.b16 %v412, %v411
      %v443 = vpack.c.b16 %v414, %v413
      %v444 = vpack.c.b16 %v416, %v415
      %v445 = vpack.c.b16 %v418, %v417
      %v446 = vpack.c.b16 %v420, %v419
      %v447 = vpack.c.b16 %v422, %v421
      %v448 = vpack.c.b16 %v424, %v423
      %v449 = vpack.c.b16 %v426, %v425
      %v450 = vpack.c.b16 %v428, %v427
      %v451 = vpack.c.b16 %v430, %v429
      %v452 = vpack.c.b16 %v432, %v431
      %v453 = vpack.c.b16 %v434, %v433
      %v454 = vpack.c.b16 %v436, %v435
      %v455 = vpack.c.b16 %v438, %v437
      %v456 = vpack.c.b16 %v440, %v439
      %vm472 = vcmask 998400
      %v474 = vsel %vm472, %v375, 0
      %vm476 = vcmask 1044480
      %v478 = vsel %vm476, %v456, 0
      %480 = vmatprep.subr.bf16.mxu0 0
      %481 = vmatpush1.bf16.msra.mxu0 %v448
      %482 = vmatprep.subr.bf16.mxu0 0
      %483 = vmatpush1.bf16.msra.mxu0 %v447
      %484 = vmatprep.subr.bf16.mxu0 0
      %485 = vmatpush1.bf16.msra.mxu0 %v446
      %486 = vmatprep.subr.bf16.mxu0 0
      %487 = vmatpush1.bf16.msra.mxu0 %v445
      %488 = vmatprep.subr.bf16.mxu0 0
      %489 = vmatpush1.bf16.msra.mxu0 %v444
      %490 = vmatprep.subr.bf16.mxu0 0
      %491 = vmatpush1.bf16.msra.mxu0 %v443
      %492 = vmatprep.subr.bf16.mxu0 0
      %493 = vmatpush1.bf16.msra.mxu0 %v442
      %494 = vmatprep.subr.bf16.mxu0 0
      %495 = vmatpush1.bf16.msra.mxu0 %v441
      %496 = vmatprep.subr.bf16.mxu0 0
      %497 = vmatpush2.bf16.msra.mxu0 %v478
      %498 = vmatprep.subr.bf16.mxu0 0
      %499 = vmatpush2.bf16.msra.mxu0 %v455
      %500 = vmatprep.subr.bf16.mxu0 0
      %501 = vmatpush2.bf16.msra.mxu0 %v454
      %502 = vmatprep.subr.bf16.mxu0 0
      %503 = vmatpush2.bf16.msra.mxu0 %v453
      %504 = vmatprep.subr.bf16.mxu0 0
      %505 = vmatpush2.bf16.msra.mxu0 %v452
      %506 = vmatprep.subr.bf16.mxu0 0
      %507 = vmatpush2.bf16.msra.mxu0 %v451
      %508 = vmatprep.subr.bf16.mxu0 0
      %509 = vmatpush2.bf16.msra.mxu0 %v450
      %510 = vmatprep.subr.bf16.mxu0 0
      %511 = vmatpush2.bf16.msra.mxu0 %v449
      %512 = vmatprep.mubr.bf16.mxu0 %v474
      %513 = vmatmul.mubr.bf16.gmra.mxu0 %v374
      %v514 = vpop.f32.mrf.mxu0
      %v515 = vadd.f32 0.0, %v514
      %v516 = vpop.f32.mrf.mxu0
      %v517 = vpop.f32.mrf.mxu0
      %v518 = vadd.f32 0.0, %v517
      %v519 = vpop.f32.mrf.mxu0
      %520 = vdwg.mxu0
      %v521 = vld [vmem:[%s311] sm:$0xff]
      %v522 = vld [vmem:[%s311 + $0x8] sm:$0xff]
      %v525 = vunpack.c.l.b16 %v521
      %v526 = vunpack.c.h.b16 %v521
      %v527 = vunpack.c.l.b16 %v522
      %v528 = vunpack.c.h.b16 %v522
      %v529 = vpack.c.b16 %v527, %v525
      %v530 = vpack.c.b16 %v528, %v526
      %v533 = vsel %vm472, %v530, 0
      %535 = vmatprep.subr.bf16.mxu0 0
      %536 = vmatpush1.bf16.msra.mxu0 %v448
      %537 = vmatprep.subr.bf16.mxu0 0
      %538 = vmatpush1.bf16.msra.mxu0 %v447
      %539 = vmatprep.subr.bf16.mxu0 0
      %540 = vmatpush1.bf16.msra.mxu0 %v446
      %541 = vmatprep.subr.bf16.mxu0 0
      %542 = vmatpush1.bf16.msra.mxu0 %v445
      %543 = vmatprep.subr.bf16.mxu0 0
      %544 = vmatpush1.bf16.msra.mxu0 %v444
      %545 = vmatprep.subr.bf16.mxu0 0
      %546 = vmatpush1.bf16.msra.mxu0 %v443
      %547 = vmatprep.subr.bf16.mxu0 0
      %548 = vmatpush1.bf16.msra.mxu0 %v442
      %549 = vmatprep.subr.bf16.mxu0 0
      %550 = vmatpush1.bf16.msra.mxu0 %v441
      %551 = vmatprep.subr.bf16.mxu0 0
      %552 = vmatpush2.bf16.msra.mxu0 %v478
      %553 = vmatprep.subr.bf16.mxu0 0
      %554 = vmatpush2.bf16.msra.mxu0 %v455
      %555 = vmatprep.subr.bf16.mxu0 0
      %556 = vmatpush2.bf16.msra.mxu0 %v454
      %557 = vmatprep.subr.bf16.mxu0 0
      %558 = vmatpush2.bf16.msra.mxu0 %v453
      %559 = vmatprep.subr.bf16.mxu0 0
      %560 = vmatpush2.bf16.msra.mxu0 %v452
      %561 = vmatprep.subr.bf16.mxu0 0
      %562 = vmatpush2.bf16.msra.mxu0 %v451
      %563 = vmatprep.subr.bf16.mxu0 0
      %564 = vmatpush2.bf16.msra.mxu0 %v450
      %565 = vmatprep.subr.bf16.mxu0 0
      %566 = vmatpush2.bf16.msra.mxu0 %v449
      %567 = vmatprep.mubr.bf16.mxu0 %v533
      %568 = vmatmul.mubr.bf16.gmra.mxu0 %v529
      %v569 = vpop.f32.mrf.mxu0
      %v570 = vadd.f32 0.0, %v569
      %v571 = vpop.f32.mrf.mxu0
      %v572 = vpop.f32.mrf.mxu0
      %v573 = vadd.f32 0.0, %v572
      %v574 = vpop.f32.mrf.mxu0
      %575 = vdwg.mxu0
      %v576 = vmax.f32 %v515, %v570
      %v577 = vmax.f32 %v518, %v573
      %v578 = vld [vmem:[%s318] sm:$0xff]
      %v579 = vld [vmem:[%s318 + $0x8] sm:$0xff]
      %v582 = vunpack.c.l.b16 %v578
      %v583 = vunpack.c.h.b16 %v578
      %v584 = vunpack.c.l.b16 %v579
      %v585 = vunpack.c.h.b16 %v579
      %v586 = vpack.c.b16 %v584, %v582
      %v587 = vpack.c.b16 %v585, %v583
      %v590 = vsel %vm472, %v587, 0
      %592 = vmatprep.subr.bf16.mxu0 0
      %593 = vmatpush1.bf16.msra.mxu0 %v448
      %594 = vmatprep.subr.bf16.mxu0 0
      %595 = vmatpush1.bf16.msra.mxu0 %v447
      %596 = vmatprep.subr.bf16.mxu0 0
      %597 = vmatpush1.bf16.msra.mxu0 %v446
      %598 = vmatprep.subr.bf16.mxu0 0
      %599 = vmatpush1.bf16.msra.mxu0 %v445
      %600 = vmatprep.subr.bf16.mxu0 0
      %601 = vmatpush1.bf16.msra.mxu0 %v444
      %602 = vmatprep.subr.bf16.mxu0 0
      %603 = vmatpush1.bf16.msra.mxu0 %v443
      %604 = vmatprep.subr.bf16.mxu0 0
      %605 = vmatpush1.bf16.msra.mxu0 %v442
      %606 = vmatprep.subr.bf16.mxu0 0
      %607 = vmatpush1.bf16.msra.mxu0 %v441
      %608 = vmatprep.subr.bf16.mxu0 0
      %609 = vmatpush2.bf16.msra.mxu0 %v478
      %610 = vmatprep.subr.bf16.mxu0 0
      %611 = vmatpush2.bf16.msra.mxu0 %v455
      %612 = vmatprep.subr.bf16.mxu0 0
      %613 = vmatpush2.bf16.msra.mxu0 %v454
      %614 = vmatprep.subr.bf16.mxu0 0
      %615 = vmatpush2.bf16.msra.mxu0 %v453
      %616 = vmatprep.subr.bf16.mxu0 0
      %617 = vmatpush2.bf16.msra.mxu0 %v452
      %618 = vmatprep.subr.bf16.mxu0 0
      %619 = vmatpush2.bf16.msra.mxu0 %v451
      %620 = vmatprep.subr.bf16.mxu0 0
      %621 = vmatpush2.bf16.msra.mxu0 %v450
      %622 = vmatprep.subr.bf16.mxu0 0
      %623 = vmatpush2.bf16.msra.mxu0 %v449
      %624 = vmatprep.mubr.bf16.mxu0 %v590
      %625 = vmatmul.mubr.bf16.gmra.mxu0 %v586
      %v626 = vpop.f32.mrf.mxu0
      %v627 = vadd.f32 0.0, %v626
      %v628 = vpop.f32.mrf.mxu0
      %v629 = vpop.f32.mrf.mxu0
      %v630 = vadd.f32 0.0, %v629
      %v631 = vpop.f32.mrf.mxu0
      %632 = vdwg.mxu0
      %v633 = vmax.f32 %v576, %v627
      %v634 = vmax.f32 %v577, %v630
      %v635 = vld [vmem:[%s325] sm:$0xff]
      %v636 = vld [vmem:[%s325 + $0x8] sm:$0xff]
      %v639 = vunpack.c.l.b16 %v635
      %v640 = vunpack.c.h.b16 %v635
      %v641 = vunpack.c.l.b16 %v636
      %v642 = vunpack.c.h.b16 %v636
      %v643 = vpack.c.b16 %v641, %v639
      %v644 = vpack.c.b16 %v642, %v640
      %v647 = vsel %vm472, %v644, 0
      %649 = vmatprep.subr.bf16.mxu0 0
      %650 = vmatpush1.bf16.msra.mxu0 %v448
      %651 = vmatprep.subr.bf16.mxu0 0
      %652 = vmatpush1.bf16.msra.mxu0 %v447
      %653 = vmatprep.subr.bf16.mxu0 0
      %654 = vmatpush1.bf16.msra.mxu0 %v446
      %655 = vmatprep.subr.bf16.mxu0 0
      %656 = vmatpush1.bf16.msra.mxu0 %v445
      %657 = vmatprep.subr.bf16.mxu0 0
      %658 = vmatpush1.bf16.msra.mxu0 %v444
      %659 = vmatprep.subr.bf16.mxu0 0
      %660 = vmatpush1.bf16.msra.mxu0 %v443
      %661 = vmatprep.subr.bf16.mxu0 0
      %662 = vmatpush1.bf16.msra.mxu0 %v442
      %663 = vmatprep.subr.bf16.mxu0 0
      %664 = vmatpush1.bf16.msra.mxu0 %v441
      %665 = vmatprep.subr.bf16.mxu0 0
      %666 = vmatpush2.bf16.msra.mxu0 %v478
      %667 = vmatprep.subr.bf16.mxu0 0
      %668 = vmatpush2.bf16.msra.mxu0 %v455
      %669 = vmatprep.subr.bf16.mxu0 0
      %670 = vmatpush2.bf16.msra.mxu0 %v454
      %671 = vmatprep.subr.bf16.mxu0 0
      %672 = vmatpush2.bf16.msra.mxu0 %v453
      %673 = vmatprep.subr.bf16.mxu0 0
      %674 = vmatpush2.bf16.msra.mxu0 %v452
      %675 = vmatprep.subr.bf16.mxu0 0
      %676 = vmatpush2.bf16.msra.mxu0 %v451
      %677 = vmatprep.subr.bf16.mxu0 0
      %678 = vmatpush2.bf16.msra.mxu0 %v450
      %679 = vmatprep.subr.bf16.mxu0 0
      %680 = vmatpush2.bf16.msra.mxu0 %v449
      %681 = vmatprep.mubr.bf16.mxu0 %v647
      %682 = vmatmul.mubr.bf16.gmra.mxu0 %v643
      %v683 = vpop.f32.mrf.mxu0
      %v684 = vadd.f32 0.0, %v683
      %v685 = vpop.f32.mrf.mxu0
      %v686 = vpop.f32.mrf.mxu0
      %v687 = vadd.f32 0.0, %v686
      %v688 = vpop.f32.mrf.mxu0
      %689 = vdwg.mxu0
      %v690 = vmax.f32 %v633, %v684
      %v691 = vmax.f32 %v634, %v687
      %v692 = vld [vmem:[%s5] sm:$0x1]
      %v694 = vlaneseq
      %v695 = vshrl.u32 %v694, 7
      %v696 = vsub.s32 0, %v695
      %v697 = vrot.slane %v692, %v696
      %v699 = vadd.f32 %v690, %v697
      %v700 = vadd.f32 %v691, %v697
      %v701 = vmax.f32 %v699, 0.0
      %v702 = vmax.f32 %v700, 0.0
      %v703 = vpack.c.bf16 %v702, %v701
      %v705 = vunpack.c.l.b16 %v703
      %v706 = vunpack.c.h.b16 %v703
      %v707 = vpack.c.b16 %v705, %v705
      %v708 = vpack.c.b16 %v706, %v706
      %vm711 = vcmask 158720
      %712 = vst.msk [vmem:[%s331] sm:$0xf] %vm711, %v707
      %713 = vst.msk [vmem:[%s331 + $0x4] sm:$0xf] %vm711, %v708
      %s714 = smul.u32 2, %s17
      %p715 = scmp.lt.s32.totalorder %s714, 3
      %s716 = scalar_select %p715, %s714, 3
      %s717 = smul.addr %s716, 4
      %s718 = scalar_lea.vmem %s6, %s717
      // Predicated region
      $region45: #{forward.12} parent=43 // pred_check
        %p719 = pneg %p181
      $region46: #{forward.12} parent=43 // pred_check_branch
        %721 = sbr.rel (%p719) target = $region48
      $region47: #{forward.12} parent=43 // pred_region
        %s722 = smul.u32 2, %s17
      $region48: #{forward.12} parent=43 // pred_fallthru
        _
    $region44: #{forward.12} parent=5 // pred_fallthru
      _
    %p723 = scmp.le.s32.totalorder 2, %s12
    // Predicated region
    $region49: #{forward.12} parent=5 // pred_check
      %p724 = pneg %p723
    $region50: #{forward.12} parent=5 // pred_check_branch
      %726 = sbr.rel (%p724) target = $region52
    $region51: #{forward.12} parent=5 // pred_region
      %s727 = ssub.s32 %s12, 2
      // Predicated region
      $region53: #{forward.12} parent=51 // pred_check
        %p728 = pneg %p187
      $region54: #{forward.12} parent=51 // pred_check_branch
        %730 = sbr.rel (%p728) target = $region56
      $region55: #{forward.12} parent=51 // pred_region
        %s731 = smul.u32 2, %s18
        %p732 = scmp.lt.s32.totalorder %s731, 3
        %s733 = scalar_select %p732, %s731, 3
        %s734 = smul.addr %s733, 4
        %s735 = scalar_lea.vmem %s6, %s734
      $region56: #{forward.12} parent=51 // pred_fallthru
        _
    $region52: #{forward.12} parent=5 // pred_fallthru
      _
  $region6: #{forward.12} parent=0 // loop_footer
    %s16 = sadd.s32 1, %s12
  $region7: #{forward.12} parent=0 // loop_footer_branch
    %11 = sbr.rel target = $region3
  $region8: #{forward.12} parent=0 // loop_exit
    _

// kernel: forward.13
$region0: #{forward.13}
  #allocation0 [shape = 'u32[]', space=smem, size = 0x4, offset = 0x4, fixed_abs, tag = 'smem constant byte address 0x4 - core index']
  #allocation1 [shape = 'u32[144,128]{1,0:T(1,128)}', space=vmem, size = 0x12000, scoped, tag = 'internal scratch']
  %s0 = inlined_call_operand.vmem [shape: bf16[2,320], index: 0, kind: input, shape index: {}]
  %s1 = inlined_call_operand.vmem [shape: bf16[320,50], index: 1, kind: input, shape index: {}]
  %s2 = inlined_call_operand.vmem [shape: f32[1,50], index: 2, kind: input, shape index: {}]
  %s3 = inlined_call_operand.vmem [shape: bf16[50,10], index: 3, kind: input, shape index: {}]
  %s4 = inlined_call_operand.vmem [shape: f32[1,10], index: 4, kind: input, shape index: {}]
  %s5 = inlined_call_operand.hbm [shape: f32[2,10], index: 5, kind: output, shape index: {}]
  %s6 = sld [smem:[#allocation0]]
  $region30: #{forward.13} parent=0
    _
  %s8 = ssub.s32 1, %s6
  %s9 = scalar_select 0, %s8, %s6
  $region1: #{forward.13} parent=0
    #allocation2 [shape = 'u8[1024]{0}', space=vmem, size = 0x400, scoped, tag = 'output window, operand 0, single buffered']
    #allocation3 [shape = 's32[1]{0}', space=sflag, size = 0x4, scoped, tag = 'scoped memory for forward.13']
    %10 = vsyncpa [#allocation3], 0
    // Predicated region
    $region2: #{forward.13} parent=1 // pred_check
      _
    $region3: #{forward.13} parent=1 // pred_check_branch
      %12 = sbr.rel (0) target = $region5
    $region4: #{forward.13} parent=1 // pred_region
      _
    $region5: #{forward.13} parent=1 // pred_fallthru
      _
    // Predicated region
    $region6: #{forward.13} parent=1 // pred_check
      _
    $region7: #{forward.13} parent=1 // pred_check_branch
      %14 = sbr.rel (0) target = $region9
    $region8: #{forward.13} parent=1 // pred_region
      _
    $region9: #{forward.13} parent=1 // pred_fallthru
      _
    // Predicated region
    $region10: #{forward.13} parent=1 // pred_check
      _
    $region11: #{forward.13} parent=1 // pred_check_branch
      %16 = sbr.rel (0) target = $region13
    $region12: #{forward.13} parent=1 // pred_region
      _
    $region13: #{forward.13} parent=1 // pred_fallthru
      _
    // Predicated region
    $region14: #{forward.13} parent=1 // pred_check
      _
    $region15: #{forward.13} parent=1 // pred_check_branch
      %18 = sbr.rel (0) target = $region17
    $region16: #{forward.13} parent=1 // pred_region
      _
    $region17: #{forward.13} parent=1 // pred_fallthru
      _
    // Predicated region
    $region18: #{forward.13} parent=1 // pred_check
      _
    $region19: #{forward.13} parent=1 // pred_check_branch
      %20 = sbr.rel (0) target = $region21
    $region20: #{forward.13} parent=1 // pred_region
      _
    $region21: #{forward.13} parent=1 // pred_fallthru
      _
    %v22 = vld [vmem:[%s0] sm:$0x7]
    %v23 = vld [vmem:[%s1] sm:$0xf]
    %v24 = vld [vmem:[%s1 + $0x4] sm:$0xf]
    %v25 = vld [vmem:[%s1 + $0x8] sm:$0xf]
    %v26 = vld [vmem:[%s1 + $0xc] sm:$0xf]
    %v27 = vld [vmem:[%s1 + $0x10] sm:$0xf]
    %v28 = vld [vmem:[%s1 + $0x14] sm:$0xf]
    %v29 = vld [vmem:[%s1 + $0x18] sm:$0xf]
    %v30 = vld [vmem:[%s1 + $0x1c] sm:$0xf]
    %v31 = vld [vmem:[%s1 + $0x20] sm:$0xf]
    %v32 = vld [vmem:[%s1 + $0x24] sm:$0xf]
    %v33 = vld [vmem:[%s1 + $0x28] sm:$0xf]
    %v34 = vld [vmem:[%s1 + $0x2c] sm:$0xf]
    %v35 = vld [vmem:[%s1 + $0x30] sm:$0xf]
    %v36 = vld [vmem:[%s1 + $0x34] sm:$0xf]
    %v37 = vld [vmem:[%s1 + $0x38] sm:$0xf]
    %v38 = vld [vmem:[%s1 + $0x3c] sm:$0xf]
    %v39 = vld [vmem:[%s1 + $0x40] sm:$0xf]
    %v40 = vld [vmem:[%s1 + $0x44] sm:$0xf]
    %v41 = vld [vmem:[%s1 + $0x48] sm:$0xf]
    %v42 = vld [vmem:[%s1 + $0x4c] sm:$0xf]
    %v43 = vld [vmem:[%s1 + $0x50] sm:$0xf]
    %v44 = vld [vmem:[%s1 + $0x54] sm:$0xf]
    %v45 = vld [vmem:[%s1 + $0x58] sm:$0xf]
    %v46 = vld [vmem:[%s1 + $0x5c] sm:$0xf]
    %v47 = vld [vmem:[%s1 + $0x60] sm:$0xf]
    %v48 = vld [vmem:[%s1 + $0x64] sm:$0xf]
    %v49 = vld [vmem:[%s1 + $0x68] sm:$0xf]
    %v50 = vld [vmem:[%s1 + $0x6c] sm:$0xf]
    %v51 = vld [vmem:[%s1 + $0x70] sm:$0xf]
    %v52 = vld [vmem:[%s1 + $0x74] sm:$0xf]
    %v53 = vld [vmem:[%s1 + $0x78] sm:$0xf]
    %v54 = vld [vmem:[%s1 + $0x7c] sm:$0xf]
    %v55 = vld [vmem:[%s1 + $0x80] sm:$0xf]
    %v56 = vld [vmem:[%s1 + $0x84] sm:$0xf]
    %v57 = vld [vmem:[%s1 + $0x88] sm:$0xf]
    %v58 = vld [vmem:[%s1 + $0x8c] sm:$0xf]
    %v59 = vld [vmem:[%s1 + $0x90] sm:$0xf]
    %v60 = vld [vmem:[%s1 + $0x94] sm:$0xf]
    %v61 = vld [vmem:[%s1 + $0x98] sm:$0xf]
    %v62 = vld [vmem:[%s1 + $0x9c] sm:$0xf]
    %v63 = vld [vmem:[%s2] sm:$0x1]
    %v65 = vlaneseq
    %v66 = vshrl.u32 %v65, 7
    %v67 = vsub.s32 0, %v66
    %v68 = vrot.slane %v63, %v67
    %v72 = vunpack.c.l.s4 1966171168
    %v73 = vunpack.c.0.s8 %v72
    %v74 = vlaneseq
    %v75 = vshrl.u32 %v74, 7
    %v76 = vsub.s32 %v73, %v75
    %v77 = vrot.slane %v22, %v76
    %v78 = vcombine.high %v77, %v77
    %v80 = vunpack.c.l.s4 1966171168
    %v81 = vunpack.c.0.s8 %v80
    %v82 = vlaneseq
    %v83 = vshrl.u32 %v82, 7
    %v84 = vsub.s32 %v81, %v83
    %v85 = vrot.slane %v77, %v84
    %v87 = vunpack.c.l.s4 1966171168
    %v88 = vunpack.c.0.s8 %v87
    %v89 = vlaneseq
    %v90 = vshrl.u32 %v89, 7
    %v91 = vsub.s32 %v88, %v90
    %v92 = vrot.slane %v78, %v91
    %v93 = vcombine.high %v85, %v85
    %v136 = vunpack.c.l.b16 %v23
    %v137 = vunpack.c.l.b16 %v24
    %v138 = vunpack.c.l.b16 %v25
    %v139 = vunpack.c.l.b16 %v26
    %v140 = vunpack.c.l.b16 %v27
    %v141 = vunpack.c.l.b16 %v28
    %v142 = vunpack.c.l.b16 %v29
    %v143 = vunpack.c.l.b16 %v30
    %v144 = vunpack.c.l.b16 %v31
    %v145 = vunpack.c.l.b16 %v32
    %v146 = vunpack.c.l.b16 %v33
    %v147 = vunpack.c.l.b16 %v34
    %v148 = vunpack.c.l.b16 %v35
    %v149 = vunpack.c.l.b16 %v36
    %v150 = vunpack.c.l.b16 %v37
    %v151 = vunpack.c.l.b16 %v38
    %v152 = vunpack.c.l.b16 %v39
    %v153 = vunpack.c.l.b16 %v40
    %v154 = vunpack.c.l.b16 %v41
    %v155 = vunpack.c.l.b16 %v42
    %v156 = vunpack.c.l.b16 %v43
    %v157 = vunpack.c.l.b16 %v44
    %v158 = vunpack.c.l.b16 %v45
    %v159 = vunpack.c.l.b16 %v46
    %v160 = vunpack.c.l.b16 %v47
    %v161 = vunpack.c.l.b16 %v48
    %v162 = vunpack.c.l.b16 %v49
    %v163 = vunpack.c.l.b16 %v50
    %v164 = vunpack.c.l.b16 %v51
    %v165 = vunpack.c.l.b16 %v52
    %v166 = vunpack.c.l.b16 %v53
    %v167 = vunpack.c.l.b16 %v54
    %v168 = vunpack.c.l.b16 %v55
    %v169 = vunpack.c.l.b16 %v56
    %v170 = vunpack.c.l.b16 %v57
    %v171 = vunpack.c.l.b16 %v58
    %v172 = vunpack.c.l.b16 %v59
    %v173 = vunpack.c.l.b16 %v60
    %v174 = vunpack.c.l.b16 %v61
    %v175 = vunpack.c.l.b16 %v62
    %v176 = vpack.c.b16 %v137, %v136
    %v177 = vpack.c.b16 %v139, %v138
    %v178 = vpack.c.b16 %v141, %v140
    %v179 = vpack.c.b16 %v143, %v142
    %v180 = vpack.c.b16 %v145, %v144
    %v181 = vpack.c.b16 %v147, %v146
    %v182 = vpack.c.b16 %v149, %v148
    %v183 = vpack.c.b16 %v151, %v150
    %v184 = vpack.c.b16 %v153, %v152
    %v185 = vpack.c.b16 %v155, %v154
    %v186 = vpack.c.b16 %v157, %v156
    %v187 = vpack.c.b16 %v159, %v158
    %v188 = vpack.c.b16 %v161, %v160
    %v189 = vpack.c.b16 %v163, %v162
    %v190 = vpack.c.b16 %v165, %v164
    %v191 = vpack.c.b16 %v167, %v166
    %v192 = vpack.c.b16 %v169, %v168
    %v193 = vpack.c.b16 %v171, %v170
    %v194 = vpack.c.b16 %v173, %v172
    %v195 = vpack.c.b16 %v175, %v174
    %vm216 = vcmask 523264
    %v218 = vsel %vm216, %v93, 0
    %220 = vmatprep.subr.bf16.mxu0 0
    %221 = vmatpush1.bf16.msra.mxu0 %v183
    %222 = vmatprep.subr.bf16.mxu0 0
    %223 = vmatpush1.bf16.msra.mxu0 %v182
    %224 = vmatprep.subr.bf16.mxu0 0
    %225 = vmatpush1.bf16.msra.mxu0 %v181
    %226 = vmatprep.subr.bf16.mxu0 0
    %227 = vmatpush1.bf16.msra.mxu0 %v180
    %228 = vmatprep.subr.bf16.mxu0 0
    %229 = vmatpush1.bf16.msra.mxu0 %v179
    %230 = vmatprep.subr.bf16.mxu0 0
    %231 = vmatpush1.bf16.msra.mxu0 %v178
    %232 = vmatprep.subr.bf16.mxu0 0
    %233 = vmatpush1.bf16.msra.mxu0 %v177
    %234 = vmatprep.subr.bf16.mxu0 0
    %235 = vmatpush1.bf16.msra.mxu0 %v176
    %236 = vmatprep.subr.bf16.mxu0 0
    %237 = vmatpush2.bf16.msra.mxu0 %v191
    %238 = vmatprep.subr.bf16.mxu0 0
    %239 = vmatpush2.bf16.msra.mxu0 %v190
    %240 = vmatprep.subr.bf16.mxu0 0
    %241 = vmatpush2.bf16.msra.mxu0 %v189
    %242 = vmatprep.subr.bf16.mxu0 0
    %243 = vmatpush2.bf16.msra.mxu0 %v188
    %244 = vmatprep.subr.bf16.mxu0 0
    %245 = vmatpush2.bf16.msra.mxu0 %v187
    %246 = vmatprep.subr.bf16.mxu0 0
    %247 = vmatpush2.bf16.msra.mxu0 %v186
    %248 = vmatprep.subr.bf16.mxu0 0
    %249 = vmatpush2.bf16.msra.mxu0 %v185
    %250 = vmatprep.subr.bf16.mxu0 0
    %251 = vmatpush2.bf16.msra.mxu0 %v184
    %252 = vmatprep.mubr.bf16.mxu0 %v92
    %253 = vmatmul.mubr.bf16.gmra.mxu0 %v85
    %v254 = vpop.f32.mrf.mxu0
    %v255 = vadd.f32 %v68, %v254
    %v256 = vpop.f32.mrf.mxu0
    %v257 = vpop.f32.mrf.mxu0
    %v258 = vpop.f32.mrf.mxu0
    %259 = vdwg.mxu0
    %260 = vmatprep.subr.bf16.mxu0 0
    %261 = vmatpush1.bf16.msra.mxu0 0
    %262 = vmatprep.subr.bf16.mxu0 0
    %263 = vmatpush1.bf16.msra.mxu0 0
    %264 = vmatprep.subr.bf16.mxu0 0
    %265 = vmatpush1.bf16.msra.mxu0 0
    %266 = vmatprep.subr.bf16.mxu0 0
    %267 = vmatpush1.bf16.msra.mxu0 0
    %268 = vmatprep.subr.bf16.mxu0 0
    %269 = vmatpush1.bf16.msra.mxu0 %v195
    %270 = vmatprep.subr.bf16.mxu0 0
    %271 = vmatpush1.bf16.msra.mxu0 %v194
    %272 = vmatprep.subr.bf16.mxu0 0
    %273 = vmatpush1.bf16.msra.mxu0 %v193
    %274 = vmatprep.subr.bf16.mxu0 0
    %275 = vmatpush1.bf16.msra.mxu0 %v192
    %276 = vmatprep.subr.bf16.mxu0 0
    %277 = vmatpush2.bf16.msra.mxu0 0
    %278 = vmatprep.subr.bf16.mxu0 0
    %279 = vmatpush2.bf16.msra.mxu0 0
    %280 = vmatprep.subr.bf16.mxu0 0
    %281 = vmatpush2.bf16.msra.mxu0 0
    %282 = vmatprep.subr.bf16.mxu0 0
    %283 = vmatpush2.bf16.msra.mxu0 0
    %284 = vmatprep.subr.bf16.mxu0 0
    %285 = vmatpush2.bf16.msra.mxu0 0
    %286 = vmatprep.subr.bf16.mxu0 0
    %287 = vmatpush2.bf16.msra.mxu0 0
    %288 = vmatprep.subr.bf16.mxu0 0
    %289 = vmatpush2.bf16.msra.mxu0 0
    %290 = vmatprep.subr.bf16.mxu0 0
    %291 = vmatpush2.bf16.msra.mxu0 0
    %292 = vmatprep.mubr.bf16.mxu0 0
    %293 = vmatmul.mubr.bf16.gmra.mxu0 %v218
    %v294 = vpop.f32.mrf.mxu0
    %v295 = vadd.f32 %v255, %v294
    %v296 = vpop.f32.mrf.mxu0
    %v297 = vpop.f32.mrf.mxu0
    %v298 = vpop.f32.mrf.mxu0
    %299 = vdwg.mxu0
    %v300 = vmax.f32 %v295, 0.0
    %v301 = vpack.c.bf16 %v300, %v300
    %v302 = vld [vmem:[%s3] sm:$0xf]
    %v303 = vld [vmem:[%s3 + $0x4] sm:$0xf]
    %v304 = vld [vmem:[%s3 + $0x8] sm:$0xf]
    %v305 = vld [vmem:[%s3 + $0xc] sm:$0xf]
    %v306 = vld [vmem:[%s3 + $0x10] sm:$0xf]
    %v307 = vld [vmem:[%s3 + $0x14] sm:$0xf]
    %v308 = vld [vmem:[%s3 + $0x18] sm:$0x1]
    %v309 = vld [vmem:[%s4] sm:$0x1]
    %v311 = vlaneseq
    %v312 = vshrl.u32 %v311, 7
    %v313 = vsub.s32 0, %v312
    %v314 = vrot.slane %v309, %v313
    %v323 = vunpack.c.l.b16 %v302
    %v324 = vunpack.c.l.b16 %v303
    %v325 = vunpack.c.l.b16 %v304
    %v326 = vunpack.c.l.b16 %v305
    %v327 = vunpack.c.l.b16 %v306
    %v328 = vunpack.c.l.b16 %v307
    %v329 = vunpack.c.l.b16 %v308
    %v330 = vpack.c.b16 %v324, %v323
    %v331 = vpack.c.b16 %v326, %v325
    %v332 = vpack.c.b16 %v328, %v327
    %v333 = vpack.c.b16 %v329, %v329
    %vm337 = vcmask 408576
    %v339 = vsel %vm337, %v301, 0
    %vm341 = vcmask 1040384
    %v343 = vsel %vm341, %v333, 0
    %345 = vmatprep.subr.bf16.mxu0 0
    %346 = vmatpush1.bf16.msra.mxu0 0
    %347 = vmatprep.subr.bf16.mxu0 0
    %348 = vmatpush1.bf16.msra.mxu0 0
    %349 = vmatprep.subr.bf16.mxu0 0
    %350 = vmatpush1.bf16.msra.mxu0 0
    %351 = vmatprep.subr.bf16.mxu0 0
    %352 = vmatpush1.bf16.msra.mxu0 0
    %353 = vmatprep.subr.bf16.mxu0 0
    %354 = vmatpush1.bf16.msra.mxu0 %v343
    %355 = vmatprep.subr.bf16.mxu0 0
    %356 = vmatpush1.bf16.msra.mxu0 %v332
    %357 = vmatprep.subr.bf16.mxu0 0
    %358 = vmatpush1.bf16.msra.mxu0 %v331
    %359 = vmatprep.subr.bf16.mxu0 0
    %360 = vmatpush1.bf16.msra.mxu0 %v330
    %361 = vmatprep.subr.bf16.mxu0 0
    %362 = vmatpush2.bf16.msra.mxu0 0
    %363 = vmatprep.subr.bf16.mxu0 0
    %364 = vmatpush2.bf16.msra.mxu0 0
    %365 = vmatprep.subr.bf16.mxu0 0
    %366 = vmatpush2.bf16.msra.mxu0 0
    %367 = vmatprep.subr.bf16.mxu0 0
    %368 = vmatpush2.bf16.msra.mxu0 0
    %369 = vmatprep.subr.bf16.mxu0 0
    %370 = vmatpush2.bf16.msra.mxu0 0
    %371 = vmatprep.subr.bf16.mxu0 0
    %372 = vmatpush2.bf16.msra.mxu0 0
    %373 = vmatprep.subr.bf16.mxu0 0
    %374 = vmatpush2.bf16.msra.mxu0 0
    %375 = vmatprep.subr.bf16.mxu0 0
    %376 = vmatpush2.bf16.msra.mxu0 0
    %377 = vmatprep.mubr.bf16.mxu0 0
    %378 = vmatmul.mubr.bf16.gmra.mxu0 %v339
    %v379 = vpop.f32.mrf.mxu0
    %v380 = vadd.f32 %v314, %v379
    %v381 = vpop.f32.mrf.mxu0
    %v382 = vpop.f32.mrf.mxu0
    %v383 = vpop.f32.mrf.mxu0
    %384 = vdwg.mxu0
    %vm385 = vcmask 74752
    %v386 = vsel %vm385, %v380, -inf
    %387 = vmax.xlane.f32.xlu0 %v386
    %v388 = vpop.xlane.xlu0 %387
    %v389 = vsub.f32 %v380, %v388
    %v390 = vmul.f32 %v389, 1.442695
    %v391 = vpow.pop %v390
    %v392 = vsel %vm385, %v391, 0.0
    %393 = vadd.xlane.f32.xlu0 %v392
    %v394 = vpop.xlane.xlu0 %393
    %v395 = vlog2.pop %v394
    %v396 = vmul.f32 %v395, 0.6931472
    %v397 = vsub.f32 %v389, %v396
    %398 = vst.msk [vmem:[#allocation2] sm:$0x3] %vm385, %v397
    // Predicated region
    $region22: #{forward.13} parent=1 // pred_check
      _
    $region23: #{forward.13} parent=1 // pred_check_branch
      %400 = sbr.rel (0) target = $region25
    $region24: #{forward.13} parent=1 // pred_region
      %s402 = ssub.s32 32, 32
      %403 = vsyncadd [#allocation3], %s402
      %s405 = sshll.u32 [#allocation2], 4
      %s406 = int_to_ptr.vmem [resolvable:$true] %s405
      %408 = dma.vmem_to_hbm [thread:$0]  %s406, 32, %s5, [#allocation3]
    $region25: #{forward.13} parent=1 // pred_fallthru
      _
    // Predicated region
    $region26: #{forward.13} parent=1 // pred_check
      _
    $region27: #{forward.13} parent=1 // pred_check_branch
      %410 = sbr.rel (0) target = $region29
    $region28: #{forward.13} parent=1 // pred_region
      %411 = dma.done [#allocation3], 32
    $region29: #{forward.13} parent=1 // pred_fallthru
      _
    %412 = vsyncpa [#allocation3], 1

</llo_original>
